<compile_context>
chip_gen: v5e
topology: v5e:2x2
jax: 0.10.0
libtpu: 0.0.40
codegen_flags: <defaults>
</compile_context>

<pallas_src>
import jax
import jax.numpy as jnp
from jax.experimental import pallas as pl
from jax.experimental.pallas import tpu as pltpu

# fc1..fc10 dimensions from the module's __init__.
LAYER_DIMS = [5000, 3, 20, 20, 20, 20, 20, 20, 20, 20, 2]
NUM_LAYERS = len(LAYER_DIMS) - 1  # 10


def _round_up(x, m):
    return (x + m - 1) // m * m


def pinn_mlp_kernel(x_ref, *refs):
    """refs = (w1, b1, w2, b2, ..., w10, b10, out_ref).

    One grid step processes a (TB, 5000) tile of x; all weights are full
    blocks with a constant index_map so they stay VMEM-resident across steps.
    W1 is stored lane-dense as [3, 5000]; fc1 contracts the last axes.
    """
    o_ref = refs[-1]
    param_refs = refs[:-1]

    x = x_ref[...]                                 # (TB, 5000), bf16 (or f32)
    w1 = param_refs[0][...]                        # (3, 5000), same dtype as x
    b1 = param_refs[1][...].astype(jnp.float32)    # (1, 3)

    # fc1: x @ W1^T, f32 accumulation on the MXU.
    h = jax.lax.dot_general(
        x, w1,
        dimension_numbers=(((1,), (1,)), ((), ())),
        preferred_element_type=jnp.float32,
    ) + b1
    h = jnp.tanh(h)

    # fc2 .. fc10 (tiny, f32; weights stored [in, out]).
    for i in range(1, NUM_LAYERS):
        w = param_refs[2 * i][...].astype(jnp.float32)
        b = param_refs[2 * i + 1][...].astype(jnp.float32)
        h = jnp.dot(h, w, preferred_element_type=jnp.float32) + b
        if i < NUM_LAYERS - 1:                     # no activation on the final layer
            h = jnp.tanh(h)

    o_ref[...] = h.astype(o_ref.dtype)


def pinn_forward(x, params, *, block_rows=1024, use_bf16_inputs=True):
    """x: [batch, 5000]; params[0] = (W1[3,5000], b1[1,3]); params[i>0] = (W[in,out], b[1,out])."""
    B, D = x.shape
    assert D == LAYER_DIMS[0]
    n_out = LAYER_DIMS[-1]

    # Batch tile: multiple of 16 (bf16 sublane packing); pad batch to a multiple of it.
    tb = min(block_rows, _round_up(B, 16))
    tb = _round_up(tb, 16)
    Bp = _round_up(B, tb)
    if Bp != B:
        x = jnp.pad(x, ((0, Bp - B), (0, 0)))

    x_dtype = jnp.bfloat16 if use_bf16_inputs else jnp.float32
    x = x.astype(x_dtype)

    (w1, b1) = params[0]
    flat = [w1.astype(x_dtype), b1]
    for w, b in params[1:]:
        flat.extend([w, b])

    grid = (pl.cdiv(Bp, tb),)

    in_specs = [pl.BlockSpec((tb, D), lambda i: (i, 0))]
    for p in flat:
        # Full-array blocks, constant block index -> DMA'd once, stays resident.
        in_specs.append(pl.BlockSpec(p.shape, lambda i: (0, 0)))
    out_specs = pl.BlockSpec((tb, n_out), lambda i: (i, 0))

    # Scheduling hint: HBM-bound on streaming x.
    flops = 2 * Bp * sum(LAYER_DIMS[i] * LAYER_DIMS[i + 1] for i in range(NUM_LAYERS))
    transcendentals = Bp * sum(LAYER_DIMS[1:-1])
    bytes_accessed = (
        Bp * D * jnp.dtype(x_dtype).itemsize
        + sum(int(p.size) * p.dtype.itemsize for p in flat)
        + Bp * n_out * 4
    )
    cost = pl.CostEstimate(
        flops=int(flops),
        transcendentals=int(transcendentals),
        bytes_accessed=int(bytes_accessed),
    )

    # Raise the scoped VMEM limit only if the double-buffered x tile needs it
    # (keeps defaults for small tiles; caps at v7x's 64 MiB physical VMEM).
    x_tile_bytes = tb * D * jnp.dtype(x_dtype).itemsize
    vmem_needed = 2 * x_tile_bytes + 4 * 1024 * 1024
    cp_kwargs = dict(dimension_semantics=("parallel",))
    if vmem_needed > 32 * 1024 * 1024:
        cp_kwargs["vmem_limit_bytes"] = min(int(vmem_needed * 1.5), 64 * 1024 * 1024)
    compiler_params = pltpu.CompilerParams(**cp_kwargs)

    out = pl.pallas_call(
        pinn_mlp_kernel,
        out_shape=jax.ShapeDtypeStruct((Bp, n_out), jnp.float32),
        grid=grid,
        in_specs=in_specs,
        out_specs=out_specs,
        compiler_params=compiler_params,
        cost_estimate=cost,
    )(x, *flat)

    return out[:B]


def init_params(key):
    """Deterministic init mimicking PyTorch nn.Linear default:
    U(-1/sqrt(fan_in), 1/sqrt(fan_in)). W1 stored [out, in] (lane-dense);
    all other weights stored [in, out]; biases [1, out]."""
    params = []
    for i in range(NUM_LAYERS):
        fan_in, fan_out = LAYER_DIMS[i], LAYER_DIMS[i + 1]
        key, kw, kb = jax.random.split(key, 3)
        bound = 1.0 / jnp.sqrt(jnp.float32(fan_in))
        if i == 0:
            w = jax.random.uniform(kw, (fan_out, fan_in), jnp.float32, -bound, bound)
        else:
            w = jax.random.uniform(kw, (fan_in, fan_out), jnp.float32, -bound, bound)
        b = jax.random.uniform(kb, (1, fan_out), jnp.float32, -bound, bound)
        params.append((w, b))
    return params


def reference_forward(x, params, *, use_bf16_inputs=True):
    """Pure-JAX reference matching the kernel's numerics (bf16-cast x / W1)."""
    w1, b1 = params[0]
    if use_bf16_inputs:
        x = x.astype(jnp.bfloat16).astype(jnp.float32)
        w1 = w1.astype(jnp.bfloat16).astype(jnp.float32)
    h = x @ w1.T + b1
    h = jnp.tanh(h)
    for i in range(1, NUM_LAYERS):
        w, b = params[i]
        h = h @ w + b
        if i < NUM_LAYERS - 1:
            h = jnp.tanh(h)
    return h


if __name__ == "__main__":
    key = jax.random.PRNGKey(0)
    key, kx = jax.random.split(key)

    batch = 256                     # fc1 fixes the feature dim at 5000
    x = jax.random.normal(kx, (batch, LAYER_DIMS[0]), jnp.float32)

    params = init_params(key)

    # Small tile for the test so the grid (2 steps) is actually exercised.
    out = pinn_forward(x, params, block_rows=128, use_bf16_inputs=True)
    out = jax.block_until_ready(out)

    ref = reference_forward(x, params, use_bf16_inputs=True)
    assert out.shape == (batch, LAYER_DIMS[-1])
    assert jnp.allclose(out, ref, atol=1e-3, rtol=1e-3)

    print("KERNEL_OK")
</pallas_src>

<mosaic_0001>
module attributes {stable_mosaic.version = 11 : i64} {
  func.func @pinn_mlp_kernel(%arg0: i32, %arg1: memref<128x5000xbf16, #tpu.memory_space<vmem>>, %arg2: memref<3x5000xbf16, #tpu.memory_space<vmem>>, %arg3: memref<1x3xf32, #tpu.memory_space<vmem>>, %arg4: memref<3x20xf32, #tpu.memory_space<vmem>>, %arg5: memref<1x20xf32, #tpu.memory_space<vmem>>, %arg6: memref<20x20xf32, #tpu.memory_space<vmem>>, %arg7: memref<1x20xf32, #tpu.memory_space<vmem>>, %arg8: memref<20x20xf32, #tpu.memory_space<vmem>>, %arg9: memref<1x20xf32, #tpu.memory_space<vmem>>, %arg10: memref<20x20xf32, #tpu.memory_space<vmem>>, %arg11: memref<1x20xf32, #tpu.memory_space<vmem>>, %arg12: memref<20x20xf32, #tpu.memory_space<vmem>>, %arg13: memref<1x20xf32, #tpu.memory_space<vmem>>, %arg14: memref<20x20xf32, #tpu.memory_space<vmem>>, %arg15: memref<1x20xf32, #tpu.memory_space<vmem>>, %arg16: memref<20x20xf32, #tpu.memory_space<vmem>>, %arg17: memref<1x20xf32, #tpu.memory_space<vmem>>, %arg18: memref<20x20xf32, #tpu.memory_space<vmem>>, %arg19: memref<1x20xf32, #tpu.memory_space<vmem>>, %arg20: memref<20x2xf32, #tpu.memory_space<vmem>>, %arg21: memref<1x2xf32, #tpu.memory_space<vmem>>, %arg22: memref<128x2xf32, #tpu.memory_space<vmem>>) attributes {dimension_semantics = [#tpu.dimension_semantics<parallel>], iteration_bounds = array<i64: 2>, scalar_prefetch = 0 : i64, scratch_operands = 0 : i64, tpu.core_type = #tpu.core_type<tc>, window_params = [{transform_indices = @transform_0, window_bounds = array<i64: 128, 5000>}, {pipeline_mode = #tpu.pipeline_mode<synchronous>, transform_indices = @transform_1, window_bounds = array<i64: 3, 5000>}, {pipeline_mode = #tpu.pipeline_mode<synchronous>, transform_indices = @transform_2, window_bounds = array<i64: 1, 3>}, {pipeline_mode = #tpu.pipeline_mode<synchronous>, transform_indices = @transform_3, window_bounds = array<i64: 3, 20>}, {pipeline_mode = #tpu.pipeline_mode<synchronous>, transform_indices = @transform_4, window_bounds = array<i64: 1, 20>}, {pipeline_mode = #tpu.pipeline_mode<synchronous>, transform_indices = @transform_5, window_bounds = array<i64: 20, 20>}, {pipeline_mode = #tpu.pipeline_mode<synchronous>, transform_indices = @transform_6, window_bounds = array<i64: 1, 20>}, {pipeline_mode = #tpu.pipeline_mode<synchronous>, transform_indices = @transform_7, window_bounds = array<i64: 20, 20>}, {pipeline_mode = #tpu.pipeline_mode<synchronous>, transform_indices = @transform_8, window_bounds = array<i64: 1, 20>}, {pipeline_mode = #tpu.pipeline_mode<synchronous>, transform_indices = @transform_9, window_bounds = array<i64: 20, 20>}, {pipeline_mode = #tpu.pipeline_mode<synchronous>, transform_indices = @transform_10, window_bounds = array<i64: 1, 20>}, {pipeline_mode = #tpu.pipeline_mode<synchronous>, transform_indices = @transform_11, window_bounds = array<i64: 20, 20>}, {pipeline_mode = #tpu.pipeline_mode<synchronous>, transform_indices = @transform_12, window_bounds = array<i64: 1, 20>}, {pipeline_mode = #tpu.pipeline_mode<synchronous>, transform_indices = @transform_13, window_bounds = array<i64: 20, 20>}, {pipeline_mode = #tpu.pipeline_mode<synchronous>, transform_indices = @transform_14, window_bounds = array<i64: 1, 20>}, {pipeline_mode = #tpu.pipeline_mode<synchronous>, transform_indices = @transform_15, window_bounds = array<i64: 20, 20>}, {pipeline_mode = #tpu.pipeline_mode<synchronous>, transform_indices = @transform_16, window_bounds = array<i64: 1, 20>}, {pipeline_mode = #tpu.pipeline_mode<synchronous>, transform_indices = @transform_17, window_bounds = array<i64: 20, 20>}, {pipeline_mode = #tpu.pipeline_mode<synchronous>, transform_indices = @transform_18, window_bounds = array<i64: 1, 20>}, {pipeline_mode = #tpu.pipeline_mode<synchronous>, transform_indices = @transform_19, window_bounds = array<i64: 20, 2>}, {pipeline_mode = #tpu.pipeline_mode<synchronous>, transform_indices = @transform_20, window_bounds = array<i64: 1, 2>}, {transform_indices = @transform_21, window_bounds = array<i64: 128, 2>}]} {
    %c0 = arith.constant 0 : index
    %c0_0 = arith.constant 0 : index
    %0 = vector.load %arg1[%c0, %c0_0] : memref<128x5000xbf16, #tpu.memory_space<vmem>>, vector<128x5000xbf16>
    %c0_1 = arith.constant 0 : index
    %c0_2 = arith.constant 0 : index
    %1 = vector.load %arg2[%c0_1, %c0_2] : memref<3x5000xbf16, #tpu.memory_space<vmem>>, vector<3x5000xbf16>
    %c0_3 = arith.constant 0 : index
    %c0_4 = arith.constant 0 : index
    %2 = vector.load %arg3[%c0_3, %c0_4] : memref<1x3xf32, #tpu.memory_space<vmem>>, vector<1x3xf32>
    %cst = arith.constant dense<0.000000e+00> : vector<128x3xf32>
    %3 = tpu.matmul %0, %1, %cst {dimension_numbers = #tpu.dot_dimension_numbers<[1], [1], [0], [0], [0, 0, 1, 0], [], []>} : vector<128x5000xbf16>, vector<3x5000xbf16>, vector<128x3xf32> -> vector<128x3xf32>
    %4 = vector.broadcast %2 : vector<1x3xf32> to vector<128x3xf32>
    %5 = arith.addf %3, %4 : vector<128x3xf32>
    %6 = math.tanh %5 : vector<128x3xf32>
    %c0_5 = arith.constant 0 : index
    %c0_6 = arith.constant 0 : index
    %7 = vector.load %arg4[%c0_5, %c0_6] : memref<3x20xf32, #tpu.memory_space<vmem>>, vector<3x20xf32>
    %c0_7 = arith.constant 0 : index
    %c0_8 = arith.constant 0 : index
    %8 = vector.load %arg5[%c0_7, %c0_8] : memref<1x20xf32, #tpu.memory_space<vmem>>, vector<1x20xf32>
    %cst_9 = arith.constant dense<0.000000e+00> : vector<128x20xf32>
    %9 = tpu.matmul %6, %7, %cst_9 {dimension_numbers = #tpu.dot_dimension_numbers<[1], [0], [0], [1], [0, 0, 1, 1], [], []>} : vector<128x3xf32>, vector<3x20xf32>, vector<128x20xf32> -> vector<128x20xf32>
    %10 = vector.broadcast %8 : vector<1x20xf32> to vector<128x20xf32>
    %11 = arith.addf %9, %10 : vector<128x20xf32>
    %12 = math.tanh %11 : vector<128x20xf32>
    %c0_10 = arith.constant 0 : index
    %c0_11 = arith.constant 0 : index
    %13 = vector.load %arg6[%c0_10, %c0_11] : memref<20x20xf32, #tpu.memory_space<vmem>>, vector<20x20xf32>
    %c0_12 = arith.constant 0 : index
    %c0_13 = arith.constant 0 : index
    %14 = vector.load %arg7[%c0_12, %c0_13] : memref<1x20xf32, #tpu.memory_space<vmem>>, vector<1x20xf32>
    %cst_14 = arith.constant dense<0.000000e+00> : vector<128x20xf32>
    %15 = tpu.matmul %12, %13, %cst_14 {dimension_numbers = #tpu.dot_dimension_numbers<[1], [0], [0], [1], [0, 0, 1, 1], [], []>} : vector<128x20xf32>, vector<20x20xf32>, vector<128x20xf32> -> vector<128x20xf32>
    %16 = vector.broadcast %14 : vector<1x20xf32> to vector<128x20xf32>
    %17 = arith.addf %15, %16 : vector<128x20xf32>
    %18 = math.tanh %17 : vector<128x20xf32>
    %c0_15 = arith.constant 0 : index
    %c0_16 = arith.constant 0 : index
    %19 = vector.load %arg8[%c0_15, %c0_16] : memref<20x20xf32, #tpu.memory_space<vmem>>, vector<20x20xf32>
    %c0_17 = arith.constant 0 : index
    %c0_18 = arith.constant 0 : index
    %20 = vector.load %arg9[%c0_17, %c0_18] : memref<1x20xf32, #tpu.memory_space<vmem>>, vector<1x20xf32>
    %cst_19 = arith.constant dense<0.000000e+00> : vector<128x20xf32>
    %21 = tpu.matmul %18, %19, %cst_19 {dimension_numbers = #tpu.dot_dimension_numbers<[1], [0], [0], [1], [0, 0, 1, 1], [], []>} : vector<128x20xf32>, vector<20x20xf32>, vector<128x20xf32> -> vector<128x20xf32>
    %22 = vector.broadcast %20 : vector<1x20xf32> to vector<128x20xf32>
    %23 = arith.addf %21, %22 : vector<128x20xf32>
    %24 = math.tanh %23 : vector<128x20xf32>
    %c0_20 = arith.constant 0 : index
    %c0_21 = arith.constant 0 : index
    %25 = vector.load %arg10[%c0_20, %c0_21] : memref<20x20xf32, #tpu.memory_space<vmem>>, vector<20x20xf32>
    %c0_22 = arith.constant 0 : index
    %c0_23 = arith.constant 0 : index
    %26 = vector.load %arg11[%c0_22, %c0_23] : memref<1x20xf32, #tpu.memory_space<vmem>>, vector<1x20xf32>
    %cst_24 = arith.constant dense<0.000000e+00> : vector<128x20xf32>
    %27 = tpu.matmul %24, %25, %cst_24 {dimension_numbers = #tpu.dot_dimension_numbers<[1], [0], [0], [1], [0, 0, 1, 1], [], []>} : vector<128x20xf32>, vector<20x20xf32>, vector<128x20xf32> -> vector<128x20xf32>
    %28 = vector.broadcast %26 : vector<1x20xf32> to vector<128x20xf32>
    %29 = arith.addf %27, %28 : vector<128x20xf32>
    %30 = math.tanh %29 : vector<128x20xf32>
    %c0_25 = arith.constant 0 : index
    %c0_26 = arith.constant 0 : index
    %31 = vector.load %arg12[%c0_25, %c0_26] : memref<20x20xf32, #tpu.memory_space<vmem>>, vector<20x20xf32>
    %c0_27 = arith.constant 0 : index
    %c0_28 = arith.constant 0 : index
    %32 = vector.load %arg13[%c0_27, %c0_28] : memref<1x20xf32, #tpu.memory_space<vmem>>, vector<1x20xf32>
    %cst_29 = arith.constant dense<0.000000e+00> : vector<128x20xf32>
    %33 = tpu.matmul %30, %31, %cst_29 {dimension_numbers = #tpu.dot_dimension_numbers<[1], [0], [0], [1], [0, 0, 1, 1], [], []>} : vector<128x20xf32>, vector<20x20xf32>, vector<128x20xf32> -> vector<128x20xf32>
    %34 = vector.broadcast %32 : vector<1x20xf32> to vector<128x20xf32>
    %35 = arith.addf %33, %34 : vector<128x20xf32>
    %36 = math.tanh %35 : vector<128x20xf32>
    %c0_30 = arith.constant 0 : index
    %c0_31 = arith.constant 0 : index
    %37 = vector.load %arg14[%c0_30, %c0_31] : memref<20x20xf32, #tpu.memory_space<vmem>>, vector<20x20xf32>
    %c0_32 = arith.constant 0 : index
    %c0_33 = arith.constant 0 : index
    %38 = vector.load %arg15[%c0_32, %c0_33] : memref<1x20xf32, #tpu.memory_space<vmem>>, vector<1x20xf32>
    %cst_34 = arith.constant dense<0.000000e+00> : vector<128x20xf32>
    %39 = tpu.matmul %36, %37, %cst_34 {dimension_numbers = #tpu.dot_dimension_numbers<[1], [0], [0], [1], [0, 0, 1, 1], [], []>} : vector<128x20xf32>, vector<20x20xf32>, vector<128x20xf32> -> vector<128x20xf32>
    %40 = vector.broadcast %38 : vector<1x20xf32> to vector<128x20xf32>
    %41 = arith.addf %39, %40 : vector<128x20xf32>
    %42 = math.tanh %41 : vector<128x20xf32>
    %c0_35 = arith.constant 0 : index
    %c0_36 = arith.constant 0 : index
    %43 = vector.load %arg16[%c0_35, %c0_36] : memref<20x20xf32, #tpu.memory_space<vmem>>, vector<20x20xf32>
    %c0_37 = arith.constant 0 : index
    %c0_38 = arith.constant 0 : index
    %44 = vector.load %arg17[%c0_37, %c0_38] : memref<1x20xf32, #tpu.memory_space<vmem>>, vector<1x20xf32>
    %cst_39 = arith.constant dense<0.000000e+00> : vector<128x20xf32>
    %45 = tpu.matmul %42, %43, %cst_39 {dimension_numbers = #tpu.dot_dimension_numbers<[1], [0], [0], [1], [0, 0, 1, 1], [], []>} : vector<128x20xf32>, vector<20x20xf32>, vector<128x20xf32> -> vector<128x20xf32>
    %46 = vector.broadcast %44 : vector<1x20xf32> to vector<128x20xf32>
    %47 = arith.addf %45, %46 : vector<128x20xf32>
    %48 = math.tanh %47 : vector<128x20xf32>
    %c0_40 = arith.constant 0 : index
    %c0_41 = arith.constant 0 : index
    %49 = vector.load %arg18[%c0_40, %c0_41] : memref<20x20xf32, #tpu.memory_space<vmem>>, vector<20x20xf32>
    %c0_42 = arith.constant 0 : index
    %c0_43 = arith.constant 0 : index
    %50 = vector.load %arg19[%c0_42, %c0_43] : memref<1x20xf32, #tpu.memory_space<vmem>>, vector<1x20xf32>
    %cst_44 = arith.constant dense<0.000000e+00> : vector<128x20xf32>
    %51 = tpu.matmul %48, %49, %cst_44 {dimension_numbers = #tpu.dot_dimension_numbers<[1], [0], [0], [1], [0, 0, 1, 1], [], []>} : vector<128x20xf32>, vector<20x20xf32>, vector<128x20xf32> -> vector<128x20xf32>
    %52 = vector.broadcast %50 : vector<1x20xf32> to vector<128x20xf32>
    %53 = arith.addf %51, %52 : vector<128x20xf32>
    %54 = math.tanh %53 : vector<128x20xf32>
    %c0_45 = arith.constant 0 : index
    %c0_46 = arith.constant 0 : index
    %55 = vector.load %arg20[%c0_45, %c0_46] : memref<20x2xf32, #tpu.memory_space<vmem>>, vector<20x2xf32>
    %c0_47 = arith.constant 0 : index
    %c0_48 = arith.constant 0 : index
    %56 = vector.load %arg21[%c0_47, %c0_48] : memref<1x2xf32, #tpu.memory_space<vmem>>, vector<1x2xf32>
    %cst_49 = arith.constant dense<0.000000e+00> : vector<128x2xf32>
    %57 = tpu.matmul %54, %55, %cst_49 {dimension_numbers = #tpu.dot_dimension_numbers<[1], [0], [0], [1], [0, 0, 1, 1], [], []>} : vector<128x20xf32>, vector<20x2xf32>, vector<128x2xf32> -> vector<128x2xf32>
    %58 = vector.broadcast %56 : vector<1x2xf32> to vector<128x2xf32>
    %59 = arith.addf %57, %58 : vector<128x2xf32>
    %c0_50 = arith.constant 0 : index
    %c0_51 = arith.constant 0 : index
    %60 = vector.load %arg22[%c0_50, %c0_51] : memref<128x2xf32, #tpu.memory_space<vmem>>, vector<128x2xf32>
    tpu.vector_store %arg22[%c0_50, %c0_51], %59 {strides = array<i32>} : memref<128x2xf32, #tpu.memory_space<vmem>>, vector<128x2xf32>,
    return
  }
  func.func @transform_0(%arg0: i32) -> (i32, i32) {
    %c0_i32 = arith.constant 0 : i32
    %c0_i32_0 = arith.constant 0 : i32
    return %arg0, %c0_i32 : i32, i32
  }
  func.func @transform_1(%arg0: i32) -> (i32, i32) {
    %c0_i32 = arith.constant 0 : i32
    %c0_i32_0 = arith.constant 0 : i32
    %c0_i32_1 = arith.constant 0 : i32
    return %c0_i32, %c0_i32_0 : i32, i32
  }
  func.func @transform_2(%arg0: i32) -> (i32, i32) {
    %c0_i32 = arith.constant 0 : i32
    %c0_i32_0 = arith.constant 0 : i32
    %c0_i32_1 = arith.constant 0 : i32
    return %c0_i32, %c0_i32_0 : i32, i32
  }
  func.func @transform_3(%arg0: i32) -> (i32, i32) {
    %c0_i32 = arith.constant 0 : i32
    %c0_i32_0 = arith.constant 0 : i32
    %c0_i32_1 = arith.constant 0 : i32
    return %c0_i32, %c0_i32_0 : i32, i32
  }
  func.func @transform_4(%arg0: i32) -> (i32, i32) {
    %c0_i32 = arith.constant 0 : i32
    %c0_i32_0 = arith.constant 0 : i32
    %c0_i32_1 = arith.constant 0 : i32
    return %c0_i32, %c0_i32_0 : i32, i32
  }
  func.func @transform_5(%arg0: i32) -> (i32, i32) {
    %c0_i32 = arith.constant 0 : i32
    %c0_i32_0 = arith.constant 0 : i32
    %c0_i32_1 = arith.constant 0 : i32
    return %c0_i32, %c0_i32_0 : i32, i32
  }
  func.func @transform_6(%arg0: i32) -> (i32, i32) {
    %c0_i32 = arith.constant 0 : i32
    %c0_i32_0 = arith.constant 0 : i32
    %c0_i32_1 = arith.constant 0 : i32
    return %c0_i32, %c0_i32_0 : i32, i32
  }
  func.func @transform_7(%arg0: i32) -> (i32, i32) {
    %c0_i32 = arith.constant 0 : i32
    %c0_i32_0 = arith.constant 0 : i32
    %c0_i32_1 = arith.constant 0 : i32
    return %c0_i32, %c0_i32_0 : i32, i32
  }
  func.func @transform_8(%arg0: i32) -> (i32, i32) {
    %c0_i32 = arith.constant 0 : i32
    %c0_i32_0 = arith.constant 0 : i32
    %c0_i32_1 = arith.constant 0 : i32
    return %c0_i32, %c0_i32_0 : i32, i32
  }
  func.func @transform_9(%arg0: i32) -> (i32, i32) {
    %c0_i32 = arith.constant 0 : i32
    %c0_i32_0 = arith.constant 0 : i32
    %c0_i32_1 = arith.constant 0 : i32
    return %c0_i32, %c0_i32_0 : i32, i32
  }
  func.func @transform_10(%arg0: i32) -> (i32, i32) {
    %c0_i32 = arith.constant 0 : i32
    %c0_i32_0 = arith.constant 0 : i32
    %c0_i32_1 = arith.constant 0 : i32
    return %c0_i32, %c0_i32_0 : i32, i32
  }
  func.func @transform_11(%arg0: i32) -> (i32, i32) {
    %c0_i32 = arith.constant 0 : i32
    %c0_i32_0 = arith.constant 0 : i32
    %c0_i32_1 = arith.constant 0 : i32
    return %c0_i32, %c0_i32_0 : i32, i32
  }
  func.func @transform_12(%arg0: i32) -> (i32, i32) {
    %c0_i32 = arith.constant 0 : i32
    %c0_i32_0 = arith.constant 0 : i32
    %c0_i32_1 = arith.constant 0 : i32
    return %c0_i32, %c0_i32_0 : i32, i32
  }
  func.func @transform_13(%arg0: i32) -> (i32, i32) {
    %c0_i32 = arith.constant 0 : i32
    %c0_i32_0 = arith.constant 0 : i32
    %c0_i32_1 = arith.constant 0 : i32
    return %c0_i32, %c0_i32_0 : i32, i32
  }
  func.func @transform_14(%arg0: i32) -> (i32, i32) {
    %c0_i32 = arith.constant 0 : i32
    %c0_i32_0 = arith.constant 0 : i32
    %c0_i32_1 = arith.constant 0 : i32
    return %c0_i32, %c0_i32_0 : i32, i32
  }
  func.func @transform_15(%arg0: i32) -> (i32, i32) {
    %c0_i32 = arith.constant 0 : i32
    %c0_i32_0 = arith.constant 0 : i32
    %c0_i32_1 = arith.constant 0 : i32
    return %c0_i32, %c0_i32_0 : i32, i32
  }
  func.func @transform_16(%arg0: i32) -> (i32, i32) {
    %c0_i32 = arith.constant 0 : i32
    %c0_i32_0 = arith.constant 0 : i32
    %c0_i32_1 = arith.constant 0 : i32
    return %c0_i32, %c0_i32_0 : i32, i32
  }
  func.func @transform_17(%arg0: i32) -> (i32, i32) {
    %c0_i32 = arith.constant 0 : i32
    %c0_i32_0 = arith.constant 0 : i32
    %c0_i32_1 = arith.constant 0 : i32
    return %c0_i32, %c0_i32_0 : i32, i32
  }
  func.func @transform_18(%arg0: i32) -> (i32, i32) {
    %c0_i32 = arith.constant 0 : i32
    %c0_i32_0 = arith.constant 0 : i32
    %c0_i32_1 = arith.constant 0 : i32
    return %c0_i32, %c0_i32_0 : i32, i32
  }
  func.func @transform_19(%arg0: i32) -> (i32, i32) {
    %c0_i32 = arith.constant 0 : i32
    %c0_i32_0 = arith.constant 0 : i32
    %c0_i32_1 = arith.constant 0 : i32
    return %c0_i32, %c0_i32_0 : i32, i32
  }
  func.func @transform_20(%arg0: i32) -> (i32, i32) {
    %c0_i32 = arith.constant 0 : i32
    %c0_i32_0 = arith.constant 0 : i32
    %c0_i32_1 = arith.constant 0 : i32
    return %c0_i32, %c0_i32_0 : i32, i32
  }
  func.func @transform_21(%arg0: i32) -> (i32, i32) {
    %c0_i32 = arith.constant 0 : i32
    %c0_i32_0 = arith.constant 0 : i32
    return %arg0, %c0_i32 : i32, i32
  }
}

</mosaic_0001>

<llo_original>
// kernel: tpu_custom_call.1
$region0: #{tpu_custom_call.1}
  #allocation0 [shape = 'u32[]', space=smem, size = 0x4, offset = 0x4, fixed_abs, tag = 'smem constant byte address 0x4 - core index']
  #allocation1 [shape = 'u32[72,128]{1,0:T(1,128)}', space=vmem, size = 0x9000, scoped, tag = 'internal scratch']
  %s0 = inlined_call_operand.vmem [shape: bf16[256,5000], index: 0, kind: input, shape index: {}]
  %s1 = inlined_call_operand.vmem [shape: bf16[3,5000], index: 1, kind: input, shape index: {}]
  %s2 = inlined_call_operand.vmem [shape: f32[1,3], index: 2, kind: input, shape index: {}]
  %s3 = inlined_call_operand.vmem [shape: f32[3,20], index: 3, kind: input, shape index: {}]
  %s4 = inlined_call_operand.vmem [shape: f32[1,20], index: 4, kind: input, shape index: {}]
  %s5 = inlined_call_operand.vmem [shape: f32[20,20], index: 5, kind: input, shape index: {}]
  %s6 = inlined_call_operand.vmem [shape: f32[1,20], index: 6, kind: input, shape index: {}]
  %s7 = inlined_call_operand.vmem [shape: f32[20,20], index: 7, kind: input, shape index: {}]
  %s8 = inlined_call_operand.vmem [shape: f32[1,20], index: 8, kind: input, shape index: {}]
  %s9 = inlined_call_operand.vmem [shape: f32[20,20], index: 9, kind: input, shape index: {}]
  %s10 = inlined_call_operand.vmem [shape: f32[1,20], index: 10, kind: input, shape index: {}]
  %s11 = inlined_call_operand.vmem [shape: f32[20,20], index: 11, kind: input, shape index: {}]
  %s12 = inlined_call_operand.vmem [shape: f32[1,20], index: 12, kind: input, shape index: {}]
  %s13 = inlined_call_operand.vmem [shape: f32[20,20], index: 13, kind: input, shape index: {}]
  %s14 = inlined_call_operand.vmem [shape: f32[1,20], index: 14, kind: input, shape index: {}]
  %s15 = inlined_call_operand.vmem [shape: f32[20,20], index: 15, kind: input, shape index: {}]
  %s16 = inlined_call_operand.vmem [shape: f32[1,20], index: 16, kind: input, shape index: {}]
  %s17 = inlined_call_operand.vmem [shape: f32[20,20], index: 17, kind: input, shape index: {}]
  %s18 = inlined_call_operand.vmem [shape: f32[1,20], index: 18, kind: input, shape index: {}]
  %s19 = inlined_call_operand.vmem [shape: f32[20,2], index: 19, kind: input, shape index: {}]
  %s20 = inlined_call_operand.vmem [shape: f32[1,2], index: 20, kind: input, shape index: {}]
  %s21 = inlined_call_operand.vmem [shape: f32[256,2], index: 21, kind: output, shape index: {}]
  %s22 = sld [smem:[#allocation0]]
  $region117: #{tpu_custom_call.1} parent=0
    _
  %s24 = ssub.s32 1, %s22
  %s25 = scalar_select 0, %s24, %s22
  loop: start=0, step=1, limit=4
  $region2: #{tpu_custom_call.1} parent=0 // loop_pre_header
    _
  $region3: #{tpu_custom_call.1} parent=0 // loop_header
    %s27 = sphi 0, %s31
    %p28 = scmp.ge.s32.totalorder %s27, 4
    %s37 = sphi 0, %s39
    %s40 = sphi 0, %s37
    %s41 = sphi 0, %s40
    %s57 = sphi 0, %s41
    %s61 = sphi 0, %s61
    %s63 = sphi 0, %s61
    %s64 = sphi 0, %s63
    %s78 = sphi 0, %s64
    %s82 = sphi 0, %s82
    %s84 = sphi 0, %s82
    %s85 = sphi 0, %s84
    %s99 = sphi 0, %s85
    %s103 = sphi 0, %s103
    %s105 = sphi 0, %s103
    %s106 = sphi 0, %s105
    %s120 = sphi 0, %s106
    %s124 = sphi 0, %s124
    %s126 = sphi 0, %s124
    %s127 = sphi 0, %s126
    %s141 = sphi 0, %s127
    %s145 = sphi 0, %s145
    %s147 = sphi 0, %s145
    %s148 = sphi 0, %s147
    %s162 = sphi 0, %s148
    %s166 = sphi 0, %s166
    %s168 = sphi 0, %s166
    %s169 = sphi 0, %s168
    %s183 = sphi 0, %s169
    %s187 = sphi 0, %s187
    %s189 = sphi 0, %s187
    %s190 = sphi 0, %s189
    %s204 = sphi 0, %s190
    %s208 = sphi 0, %s208
    %s210 = sphi 0, %s208
    %s211 = sphi 0, %s210
    %s225 = sphi 0, %s211
    %s229 = sphi 0, %s229
    %s231 = sphi 0, %s229
    %s232 = sphi 0, %s231
    %s246 = sphi 0, %s232
    %s250 = sphi 0, %s250
    %s252 = sphi 0, %s250
    %s253 = sphi 0, %s252
    %s267 = sphi 0, %s253
    %s271 = sphi 0, %s271
    %s273 = sphi 0, %s271
    %s274 = sphi 0, %s273
    %s288 = sphi 0, %s274
    %s292 = sphi 0, %s292
    %s294 = sphi 0, %s292
    %s295 = sphi 0, %s294
    %s309 = sphi 0, %s295
    %s313 = sphi 0, %s313
    %s315 = sphi 0, %s313
    %s316 = sphi 0, %s315
    %s330 = sphi 0, %s316
    %s334 = sphi 0, %s334
    %s336 = sphi 0, %s334
    %s337 = sphi 0, %s336
    %s351 = sphi 0, %s337
    %s355 = sphi 0, %s355
    %s357 = sphi 0, %s355
    %s358 = sphi 0, %s357
    %s372 = sphi 0, %s358
    %s376 = sphi 0, %s376
    %s378 = sphi 0, %s376
    %s379 = sphi 0, %s378
    %s393 = sphi 0, %s379
    %s397 = sphi 0, %s397
    %s399 = sphi 0, %s397
    %s400 = sphi 0, %s399
    %s414 = sphi 0, %s400
    %s418 = sphi 0, %s418
    %s420 = sphi 0, %s418
    %s421 = sphi 0, %s420
    %s435 = sphi 0, %s421
    %s439 = sphi 0, %s439
    %s441 = sphi 0, %s439
    %s442 = sphi 0, %s441
    %s456 = sphi 0, %s442
    %s460 = sphi 0, %s460
    %s462 = sphi 0, %s460
    %s463 = sphi 0, %s462
    %s477 = sphi 0, %s463
    %s483 = sphi 0, %s485
    %s486 = sphi 0, %s483
    %s487 = sphi 0, %s486
    %s503 = sphi 0, %s487
  $region4: #{tpu_custom_call.1} parent=0 // loop_header_branch
    %30 = sbr.rel (%p28) target = $region8
  $region5: #{tpu_custom_call.1} parent=0 // loop_body
    %s32 = ssub.s32 %s27, 1
    %s33 = ssub.s32 %s27, 2
    %s34 = sadd.s32 %s27, 1
    %s35 = ssub.s32 %s27, %s34
    %p36 = scmp.eq.s32.totalorder %s35, 0
    %s38 = sadd.s32 %s37, 1
    %s39 = scalar_select %p36, %s37, %s38
    %p42 = pneg %p36
    %p43 = scmp.eq.s32.totalorder %s27, 1
    %p44 = por %p42, %p43
    %p45 = scmp.ne.s32.totalorder %s37, %s40
    %p46 = scmp.eq.s32.totalorder %s27, 0
    %p47 = por %p45, %p46
    %p48 = scmp.ne.s32.totalorder %s37, %s40
    %p49 = scmp.eq.s32.totalorder %s32, 1
    %p50 = por %p48, %p49
    %p51 = scmp.ne.s32.totalorder %s40, %s41
    %p52 = scmp.eq.s32.totalorder %s32, 0
    %p53 = por %p51, %p52
    %p54 = scmp.ne.s32.totalorder %s40, %s41
    %p55 = scmp.eq.s32.totalorder %s33, 1
    %p56 = por %p54, %p55
    %p58 = scmp.ne.s32.totalorder %s41, %s57
    %p59 = scmp.eq.s32.totalorder %s33, 0
    %p60 = por %p58, %p59
    %s62 = sadd.s32 %s61, 1
    %p65 = scmp.eq.s32.totalorder %s27, 1
    %p66 = scmp.ne.s32.totalorder %s61, %s63
    %p67 = scmp.eq.s32.totalorder %s27, 0
    %p68 = por %p66, %p67
    %p69 = scmp.ne.s32.totalorder %s61, %s63
    %p70 = scmp.eq.s32.totalorder %s32, 1
    %p71 = por %p69, %p70
    %p72 = scmp.ne.s32.totalorder %s63, %s64
    %p73 = scmp.eq.s32.totalorder %s32, 0
    %p74 = por %p72, %p73
    %p75 = scmp.ne.s32.totalorder %s63, %s64
    %p76 = scmp.eq.s32.totalorder %s33, 1
    %p77 = por %p75, %p76
    %p79 = scmp.ne.s32.totalorder %s64, %s78
    %p80 = scmp.eq.s32.totalorder %s33, 0
    %p81 = por %p79, %p80
    %s83 = sadd.s32 %s82, 1
    %p86 = scmp.eq.s32.totalorder %s27, 1
    %p87 = scmp.ne.s32.totalorder %s82, %s84
    %p88 = scmp.eq.s32.totalorder %s27, 0
    %p89 = por %p87, %p88
    %p90 = scmp.ne.s32.totalorder %s82, %s84
    %p91 = scmp.eq.s32.totalorder %s32, 1
    %p92 = por %p90, %p91
    %p93 = scmp.ne.s32.totalorder %s84, %s85
    %p94 = scmp.eq.s32.totalorder %s32, 0
    %p95 = por %p93, %p94
    %p96 = scmp.ne.s32.totalorder %s84, %s85
    %p97 = scmp.eq.s32.totalorder %s33, 1
    %p98 = por %p96, %p97
    %p100 = scmp.ne.s32.totalorder %s85, %s99
    %p101 = scmp.eq.s32.totalorder %s33, 0
    %p102 = por %p100, %p101
    %s104 = sadd.s32 %s103, 1
    %p107 = scmp.eq.s32.totalorder %s27, 1
    %p108 = scmp.ne.s32.totalorder %s103, %s105
    %p109 = scmp.eq.s32.totalorder %s27, 0
    %p110 = por %p108, %p109
    %p111 = scmp.ne.s32.totalorder %s103, %s105
    %p112 = scmp.eq.s32.totalorder %s32, 1
    %p113 = por %p111, %p112
    %p114 = scmp.ne.s32.totalorder %s105, %s106
    %p115 = scmp.eq.s32.totalorder %s32, 0
    %p116 = por %p114, %p115
    %p117 = scmp.ne.s32.totalorder %s105, %s106
    %p118 = scmp.eq.s32.totalorder %s33, 1
    %p119 = por %p117, %p118
    %p121 = scmp.ne.s32.totalorder %s106, %s120
    %p122 = scmp.eq.s32.totalorder %s33, 0
    %p123 = por %p121, %p122
    %s125 = sadd.s32 %s124, 1
    %p128 = scmp.eq.s32.totalorder %s27, 1
    %p129 = scmp.ne.s32.totalorder %s124, %s126
    %p130 = scmp.eq.s32.totalorder %s27, 0
    %p131 = por %p129, %p130
    %p132 = scmp.ne.s32.totalorder %s124, %s126
    %p133 = scmp.eq.s32.totalorder %s32, 1
    %p134 = por %p132, %p133
    %p135 = scmp.ne.s32.totalorder %s126, %s127
    %p136 = scmp.eq.s32.totalorder %s32, 0
    %p137 = por %p135, %p136
    %p138 = scmp.ne.s32.totalorder %s126, %s127
    %p139 = scmp.eq.s32.totalorder %s33, 1
    %p140 = por %p138, %p139
    %p142 = scmp.ne.s32.totalorder %s127, %s141
    %p143 = scmp.eq.s32.totalorder %s33, 0
    %p144 = por %p142, %p143
    %s146 = sadd.s32 %s145, 1
    %p149 = scmp.eq.s32.totalorder %s27, 1
    %p150 = scmp.ne.s32.totalorder %s145, %s147
    %p151 = scmp.eq.s32.totalorder %s27, 0
    %p152 = por %p150, %p151
    %p153 = scmp.ne.s32.totalorder %s145, %s147
    %p154 = scmp.eq.s32.totalorder %s32, 1
    %p155 = por %p153, %p154
    %p156 = scmp.ne.s32.totalorder %s147, %s148
    %p157 = scmp.eq.s32.totalorder %s32, 0
    %p158 = por %p156, %p157
    %p159 = scmp.ne.s32.totalorder %s147, %s148
    %p160 = scmp.eq.s32.totalorder %s33, 1
    %p161 = por %p159, %p160
    %p163 = scmp.ne.s32.totalorder %s148, %s162
    %p164 = scmp.eq.s32.totalorder %s33, 0
    %p165 = por %p163, %p164
    %s167 = sadd.s32 %s166, 1
    %p170 = scmp.eq.s32.totalorder %s27, 1
    %p171 = scmp.ne.s32.totalorder %s166, %s168
    %p172 = scmp.eq.s32.totalorder %s27, 0
    %p173 = por %p171, %p172
    %p174 = scmp.ne.s32.totalorder %s166, %s168
    %p175 = scmp.eq.s32.totalorder %s32, 1
    %p176 = por %p174, %p175
    %p177 = scmp.ne.s32.totalorder %s168, %s169
    %p178 = scmp.eq.s32.totalorder %s32, 0
    %p179 = por %p177, %p178
    %p180 = scmp.ne.s32.totalorder %s168, %s169
    %p181 = scmp.eq.s32.totalorder %s33, 1
    %p182 = por %p180, %p181
    %p184 = scmp.ne.s32.totalorder %s169, %s183
    %p185 = scmp.eq.s32.totalorder %s33, 0
    %p186 = por %p184, %p185
    %s188 = sadd.s32 %s187, 1
    %p191 = scmp.eq.s32.totalorder %s27, 1
    %p192 = scmp.ne.s32.totalorder %s187, %s189
    %p193 = scmp.eq.s32.totalorder %s27, 0
    %p194 = por %p192, %p193
    %p195 = scmp.ne.s32.totalorder %s187, %s189
    %p196 = scmp.eq.s32.totalorder %s32, 1
    %p197 = por %p195, %p196
    %p198 = scmp.ne.s32.totalorder %s189, %s190
    %p199 = scmp.eq.s32.totalorder %s32, 0
    %p200 = por %p198, %p199
    %p201 = scmp.ne.s32.totalorder %s189, %s190
    %p202 = scmp.eq.s32.totalorder %s33, 1
    %p203 = por %p201, %p202
    %p205 = scmp.ne.s32.totalorder %s190, %s204
    %p206 = scmp.eq.s32.totalorder %s33, 0
    %p207 = por %p205, %p206
    %s209 = sadd.s32 %s208, 1
    %p212 = scmp.eq.s32.totalorder %s27, 1
    %p213 = scmp.ne.s32.totalorder %s208, %s210
    %p214 = scmp.eq.s32.totalorder %s27, 0
    %p215 = por %p213, %p214
    %p216 = scmp.ne.s32.totalorder %s208, %s210
    %p217 = scmp.eq.s32.totalorder %s32, 1
    %p218 = por %p216, %p217
    %p219 = scmp.ne.s32.totalorder %s210, %s211
    %p220 = scmp.eq.s32.totalorder %s32, 0
    %p221 = por %p219, %p220
    %p222 = scmp.ne.s32.totalorder %s210, %s211
    %p223 = scmp.eq.s32.totalorder %s33, 1
    %p224 = por %p222, %p223
    %p226 = scmp.ne.s32.totalorder %s211, %s225
    %p227 = scmp.eq.s32.totalorder %s33, 0
    %p228 = por %p226, %p227
    %s230 = sadd.s32 %s229, 1
    %p233 = scmp.eq.s32.totalorder %s27, 1
    %p234 = scmp.ne.s32.totalorder %s229, %s231
    %p235 = scmp.eq.s32.totalorder %s27, 0
    %p236 = por %p234, %p235
    %p237 = scmp.ne.s32.totalorder %s229, %s231
    %p238 = scmp.eq.s32.totalorder %s32, 1
    %p239 = por %p237, %p238
    %p240 = scmp.ne.s32.totalorder %s231, %s232
    %p241 = scmp.eq.s32.totalorder %s32, 0
    %p242 = por %p240, %p241
    %p243 = scmp.ne.s32.totalorder %s231, %s232
    %p244 = scmp.eq.s32.totalorder %s33, 1
    %p245 = por %p243, %p244
    %p247 = scmp.ne.s32.totalorder %s232, %s246
    %p248 = scmp.eq.s32.totalorder %s33, 0
    %p249 = por %p247, %p248
    %s251 = sadd.s32 %s250, 1
    %p254 = scmp.eq.s32.totalorder %s27, 1
    %p255 = scmp.ne.s32.totalorder %s250, %s252
    %p256 = scmp.eq.s32.totalorder %s27, 0
    %p257 = por %p255, %p256
    %p258 = scmp.ne.s32.totalorder %s250, %s252
    %p259 = scmp.eq.s32.totalorder %s32, 1
    %p260 = por %p258, %p259
    %p261 = scmp.ne.s32.totalorder %s252, %s253
    %p262 = scmp.eq.s32.totalorder %s32, 0
    %p263 = por %p261, %p262
    %p264 = scmp.ne.s32.totalorder %s252, %s253
    %p265 = scmp.eq.s32.totalorder %s33, 1
    %p266 = por %p264, %p265
    %p268 = scmp.ne.s32.totalorder %s253, %s267
    %p269 = scmp.eq.s32.totalorder %s33, 0
    %p270 = por %p268, %p269
    %s272 = sadd.s32 %s271, 1
    %p275 = scmp.eq.s32.totalorder %s27, 1
    %p276 = scmp.ne.s32.totalorder %s271, %s273
    %p277 = scmp.eq.s32.totalorder %s27, 0
    %p278 = por %p276, %p277
    %p279 = scmp.ne.s32.totalorder %s271, %s273
    %p280 = scmp.eq.s32.totalorder %s32, 1
    %p281 = por %p279, %p280
    %p282 = scmp.ne.s32.totalorder %s273, %s274
    %p283 = scmp.eq.s32.totalorder %s32, 0
    %p284 = por %p282, %p283
    %p285 = scmp.ne.s32.totalorder %s273, %s274
    %p286 = scmp.eq.s32.totalorder %s33, 1
    %p287 = por %p285, %p286
    %p289 = scmp.ne.s32.totalorder %s274, %s288
    %p290 = scmp.eq.s32.totalorder %s33, 0
    %p291 = por %p289, %p290
    %s293 = sadd.s32 %s292, 1
    %p296 = scmp.eq.s32.totalorder %s27, 1
    %p297 = scmp.ne.s32.totalorder %s292, %s294
    %p298 = scmp.eq.s32.totalorder %s27, 0
    %p299 = por %p297, %p298
    %p300 = scmp.ne.s32.totalorder %s292, %s294
    %p301 = scmp.eq.s32.totalorder %s32, 1
    %p302 = por %p300, %p301
    %p303 = scmp.ne.s32.totalorder %s294, %s295
    %p304 = scmp.eq.s32.totalorder %s32, 0
    %p305 = por %p303, %p304
    %p306 = scmp.ne.s32.totalorder %s294, %s295
    %p307 = scmp.eq.s32.totalorder %s33, 1
    %p308 = por %p306, %p307
    %p310 = scmp.ne.s32.totalorder %s295, %s309
    %p311 = scmp.eq.s32.totalorder %s33, 0
    %p312 = por %p310, %p311
    %s314 = sadd.s32 %s313, 1
    %p317 = scmp.eq.s32.totalorder %s27, 1
    %p318 = scmp.ne.s32.totalorder %s313, %s315
    %p319 = scmp.eq.s32.totalorder %s27, 0
    %p320 = por %p318, %p319
    %p321 = scmp.ne.s32.totalorder %s313, %s315
    %p322 = scmp.eq.s32.totalorder %s32, 1
    %p323 = por %p321, %p322
    %p324 = scmp.ne.s32.totalorder %s315, %s316
    %p325 = scmp.eq.s32.totalorder %s32, 0
    %p326 = por %p324, %p325
    %p327 = scmp.ne.s32.totalorder %s315, %s316
    %p328 = scmp.eq.s32.totalorder %s33, 1
    %p329 = por %p327, %p328
    %p331 = scmp.ne.s32.totalorder %s316, %s330
    %p332 = scmp.eq.s32.totalorder %s33, 0
    %p333 = por %p331, %p332
    %s335 = sadd.s32 %s334, 1
    %p338 = scmp.eq.s32.totalorder %s27, 1
    %p339 = scmp.ne.s32.totalorder %s334, %s336
    %p340 = scmp.eq.s32.totalorder %s27, 0
    %p341 = por %p339, %p340
    %p342 = scmp.ne.s32.totalorder %s334, %s336
    %p343 = scmp.eq.s32.totalorder %s32, 1
    %p344 = por %p342, %p343
    %p345 = scmp.ne.s32.totalorder %s336, %s337
    %p346 = scmp.eq.s32.totalorder %s32, 0
    %p347 = por %p345, %p346
    %p348 = scmp.ne.s32.totalorder %s336, %s337
    %p349 = scmp.eq.s32.totalorder %s33, 1
    %p350 = por %p348, %p349
    %p352 = scmp.ne.s32.totalorder %s337, %s351
    %p353 = scmp.eq.s32.totalorder %s33, 0
    %p354 = por %p352, %p353
    %s356 = sadd.s32 %s355, 1
    %p359 = scmp.eq.s32.totalorder %s27, 1
    %p360 = scmp.ne.s32.totalorder %s355, %s357
    %p361 = scmp.eq.s32.totalorder %s27, 0
    %p362 = por %p360, %p361
    %p363 = scmp.ne.s32.totalorder %s355, %s357
    %p364 = scmp.eq.s32.totalorder %s32, 1
    %p365 = por %p363, %p364
    %p366 = scmp.ne.s32.totalorder %s357, %s358
    %p367 = scmp.eq.s32.totalorder %s32, 0
    %p368 = por %p366, %p367
    %p369 = scmp.ne.s32.totalorder %s357, %s358
    %p370 = scmp.eq.s32.totalorder %s33, 1
    %p371 = por %p369, %p370
    %p373 = scmp.ne.s32.totalorder %s358, %s372
    %p374 = scmp.eq.s32.totalorder %s33, 0
    %p375 = por %p373, %p374
    %s377 = sadd.s32 %s376, 1
    %p380 = scmp.eq.s32.totalorder %s27, 1
    %p381 = scmp.ne.s32.totalorder %s376, %s378
    %p382 = scmp.eq.s32.totalorder %s27, 0
    %p383 = por %p381, %p382
    %p384 = scmp.ne.s32.totalorder %s376, %s378
    %p385 = scmp.eq.s32.totalorder %s32, 1
    %p386 = por %p384, %p385
    %p387 = scmp.ne.s32.totalorder %s378, %s379
    %p388 = scmp.eq.s32.totalorder %s32, 0
    %p389 = por %p387, %p388
    %p390 = scmp.ne.s32.totalorder %s378, %s379
    %p391 = scmp.eq.s32.totalorder %s33, 1
    %p392 = por %p390, %p391
    %p394 = scmp.ne.s32.totalorder %s379, %s393
    %p395 = scmp.eq.s32.totalorder %s33, 0
    %p396 = por %p394, %p395
    %s398 = sadd.s32 %s397, 1
    %p401 = scmp.eq.s32.totalorder %s27, 1
    %p402 = scmp.ne.s32.totalorder %s397, %s399
    %p403 = scmp.eq.s32.totalorder %s27, 0
    %p404 = por %p402, %p403
    %p405 = scmp.ne.s32.totalorder %s397, %s399
    %p406 = scmp.eq.s32.totalorder %s32, 1
    %p407 = por %p405, %p406
    %p408 = scmp.ne.s32.totalorder %s399, %s400
    %p409 = scmp.eq.s32.totalorder %s32, 0
    %p410 = por %p408, %p409
    %p411 = scmp.ne.s32.totalorder %s399, %s400
    %p412 = scmp.eq.s32.totalorder %s33, 1
    %p413 = por %p411, %p412
    %p415 = scmp.ne.s32.totalorder %s400, %s414
    %p416 = scmp.eq.s32.totalorder %s33, 0
    %p417 = por %p415, %p416
    %s419 = sadd.s32 %s418, 1
    %p422 = scmp.eq.s32.totalorder %s27, 1
    %p423 = scmp.ne.s32.totalorder %s418, %s420
    %p424 = scmp.eq.s32.totalorder %s27, 0
    %p425 = por %p423, %p424
    %p426 = scmp.ne.s32.totalorder %s418, %s420
    %p427 = scmp.eq.s32.totalorder %s32, 1
    %p428 = por %p426, %p427
    %p429 = scmp.ne.s32.totalorder %s420, %s421
    %p430 = scmp.eq.s32.totalorder %s32, 0
    %p431 = por %p429, %p430
    %p432 = scmp.ne.s32.totalorder %s420, %s421
    %p433 = scmp.eq.s32.totalorder %s33, 1
    %p434 = por %p432, %p433
    %p436 = scmp.ne.s32.totalorder %s421, %s435
    %p437 = scmp.eq.s32.totalorder %s33, 0
    %p438 = por %p436, %p437
    %s440 = sadd.s32 %s439, 1
    %p443 = scmp.eq.s32.totalorder %s27, 1
    %p444 = scmp.ne.s32.totalorder %s439, %s441
    %p445 = scmp.eq.s32.totalorder %s27, 0
    %p446 = por %p444, %p445
    %p447 = scmp.ne.s32.totalorder %s439, %s441
    %p448 = scmp.eq.s32.totalorder %s32, 1
    %p449 = por %p447, %p448
    %p450 = scmp.ne.s32.totalorder %s441, %s442
    %p451 = scmp.eq.s32.totalorder %s32, 0
    %p452 = por %p450, %p451
    %p453 = scmp.ne.s32.totalorder %s441, %s442
    %p454 = scmp.eq.s32.totalorder %s33, 1
    %p455 = por %p453, %p454
    %p457 = scmp.ne.s32.totalorder %s442, %s456
    %p458 = scmp.eq.s32.totalorder %s33, 0
    %p459 = por %p457, %p458
    %s461 = sadd.s32 %s460, 1
    %p464 = scmp.eq.s32.totalorder %s27, 1
    %p465 = scmp.ne.s32.totalorder %s460, %s462
    %p466 = scmp.eq.s32.totalorder %s27, 0
    %p467 = por %p465, %p466
    %p468 = scmp.ne.s32.totalorder %s460, %s462
    %p469 = scmp.eq.s32.totalorder %s32, 1
    %p470 = por %p468, %p469
    %p471 = scmp.ne.s32.totalorder %s462, %s463
    %p472 = scmp.eq.s32.totalorder %s32, 0
    %p473 = por %p471, %p472
    %p474 = scmp.ne.s32.totalorder %s462, %s463
    %p475 = scmp.eq.s32.totalorder %s33, 1
    %p476 = por %p474, %p475
    %p478 = scmp.ne.s32.totalorder %s463, %s477
    %p479 = scmp.eq.s32.totalorder %s33, 0
    %p480 = por %p478, %p479
    %s481 = ssub.s32 %s27, %s34
    %p482 = scmp.eq.s32.totalorder %s481, 0
    %s484 = sadd.s32 %s483, 1
    %s485 = scalar_select %p482, %s483, %s484
    %p488 = pneg %p482
    %p489 = scmp.eq.s32.totalorder %s27, 1
    %p490 = por %p488, %p489
    %p491 = scmp.ne.s32.totalorder %s483, %s486
    %p492 = scmp.eq.s32.totalorder %s27, 0
    %p493 = por %p491, %p492
    %p494 = scmp.ne.s32.totalorder %s483, %s486
    %p495 = scmp.eq.s32.totalorder %s32, 1
    %p496 = por %p494, %p495
    %p497 = scmp.ne.s32.totalorder %s486, %s487
    %p498 = scmp.eq.s32.totalorder %s32, 0
    %p499 = por %p497, %p498
    %p500 = scmp.ne.s32.totalorder %s486, %s487
    %p501 = scmp.eq.s32.totalorder %s33, 1
    %p502 = por %p500, %p501
    %p504 = scmp.ne.s32.totalorder %s487, %s503
    %p505 = scmp.eq.s32.totalorder %s33, 0
    %p506 = por %p504, %p505
    %p507 = scmp.le.s32.totalorder 1, %s27
    %p508 = scmp.lt.s32.totalorder %s27, 3
    %p509 = pnand %p507, %p508
    %p510 = pneg %p509
    // Predicated region
    $region9: #{tpu_custom_call.1} parent=5 // pred_check
      _
    $region10: #{tpu_custom_call.1} parent=5 // pred_check_branch
      %512 = sbr.rel (%p509) target = $region12
    $region11: #{tpu_custom_call.1} parent=5 // pred_region
      %s513 = ssub.s32 %s27, 1
      // Predicated region
      $region13: #{tpu_custom_call.1} parent=11 // pred_check
        %p514 = pneg %p74
      $region14: #{tpu_custom_call.1} parent=11 // pred_check_branch
        %516 = sbr.rel (%p514) target = $region16
      $region15: #{tpu_custom_call.1} parent=11 // pred_region
        _
      $region16: #{tpu_custom_call.1} parent=11 // pred_fallthru
        _
      // Predicated region
      $region17: #{tpu_custom_call.1} parent=11 // pred_check
        %p517 = pneg %p95
      $region18: #{tpu_custom_call.1} parent=11 // pred_check_branch
        %519 = sbr.rel (%p517) target = $region20
      $region19: #{tpu_custom_call.1} parent=11 // pred_region
        _
      $region20: #{tpu_custom_call.1} parent=11 // pred_fallthru
        _
      // Predicated region
      $region21: #{tpu_custom_call.1} parent=11 // pred_check
        %p520 = pneg %p116
      $region22: #{tpu_custom_call.1} parent=11 // pred_check_branch
        %522 = sbr.rel (%p520) target = $region24
      $region23: #{tpu_custom_call.1} parent=11 // pred_region
        _
      $region24: #{tpu_custom_call.1} parent=11 // pred_fallthru
        _
      // Predicated region
      $region25: #{tpu_custom_call.1} parent=11 // pred_check
        %p523 = pneg %p137
      $region26: #{tpu_custom_call.1} parent=11 // pred_check_branch
        %525 = sbr.rel (%p523) target = $region28
      $region27: #{tpu_custom_call.1} parent=11 // pred_region
        _
      $region28: #{tpu_custom_call.1} parent=11 // pred_fallthru
        _
      // Predicated region
      $region29: #{tpu_custom_call.1} parent=11 // pred_check
        %p526 = pneg %p158
      $region30: #{tpu_custom_call.1} parent=11 // pred_check_branch
        %528 = sbr.rel (%p526) target = $region32
      $region31: #{tpu_custom_call.1} parent=11 // pred_region
        _
      $region32: #{tpu_custom_call.1} parent=11 // pred_fallthru
        _
      // Predicated region
      $region33: #{tpu_custom_call.1} parent=11 // pred_check
        %p529 = pneg %p179
      $region34: #{tpu_custom_call.1} parent=11 // pred_check_branch
        %531 = sbr.rel (%p529) target = $region36
      $region35: #{tpu_custom_call.1} parent=11 // pred_region
        _
      $region36: #{tpu_custom_call.1} parent=11 // pred_fallthru
        _
      // Predicated region
      $region37: #{tpu_custom_call.1} parent=11 // pred_check
        %p532 = pneg %p200
      $region38: #{tpu_custom_call.1} parent=11 // pred_check_branch
        %534 = sbr.rel (%p532) target = $region40
      $region39: #{tpu_custom_call.1} parent=11 // pred_region
        _
      $region40: #{tpu_custom_call.1} parent=11 // pred_fallthru
        _
      // Predicated region
      $region41: #{tpu_custom_call.1} parent=11 // pred_check
        %p535 = pneg %p221
      $region42: #{tpu_custom_call.1} parent=11 // pred_check_branch
        %537 = sbr.rel (%p535) target = $region44
      $region43: #{tpu_custom_call.1} parent=11 // pred_region
        _
      $region44: #{tpu_custom_call.1} parent=11 // pred_fallthru
        _
      // Predicated region
      $region45: #{tpu_custom_call.1} parent=11 // pred_check
        %p538 = pneg %p242
      $region46: #{tpu_custom_call.1} parent=11 // pred_check_branch
        %540 = sbr.rel (%p538) target = $region48
      $region47: #{tpu_custom_call.1} parent=11 // pred_region
        _
      $region48: #{tpu_custom_call.1} parent=11 // pred_fallthru
        _
      // Predicated region
      $region49: #{tpu_custom_call.1} parent=11 // pred_check
        %p541 = pneg %p263
      $region50: #{tpu_custom_call.1} parent=11 // pred_check_branch
        %543 = sbr.rel (%p541) target = $region52
      $region51: #{tpu_custom_call.1} parent=11 // pred_region
        _
      $region52: #{tpu_custom_call.1} parent=11 // pred_fallthru
        _
      // Predicated region
      $region53: #{tpu_custom_call.1} parent=11 // pred_check
        %p544 = pneg %p284
      $region54: #{tpu_custom_call.1} parent=11 // pred_check_branch
        %546 = sbr.rel (%p544) target = $region56
      $region55: #{tpu_custom_call.1} parent=11 // pred_region
        _
      $region56: #{tpu_custom_call.1} parent=11 // pred_fallthru
        _
      // Predicated region
      $region57: #{tpu_custom_call.1} parent=11 // pred_check
        %p547 = pneg %p305
      $region58: #{tpu_custom_call.1} parent=11 // pred_check_branch
        %549 = sbr.rel (%p547) target = $region60
      $region59: #{tpu_custom_call.1} parent=11 // pred_region
        _
      $region60: #{tpu_custom_call.1} parent=11 // pred_fallthru
        _
      // Predicated region
      $region61: #{tpu_custom_call.1} parent=11 // pred_check
        %p550 = pneg %p326
      $region62: #{tpu_custom_call.1} parent=11 // pred_check_branch
        %552 = sbr.rel (%p550) target = $region64
      $region63: #{tpu_custom_call.1} parent=11 // pred_region
        _
      $region64: #{tpu_custom_call.1} parent=11 // pred_fallthru
        _
      // Predicated region
      $region65: #{tpu_custom_call.1} parent=11 // pred_check
        %p553 = pneg %p347
      $region66: #{tpu_custom_call.1} parent=11 // pred_check_branch
        %555 = sbr.rel (%p553) target = $region68
      $region67: #{tpu_custom_call.1} parent=11 // pred_region
        _
      $region68: #{tpu_custom_call.1} parent=11 // pred_fallthru
        _
      // Predicated region
      $region69: #{tpu_custom_call.1} parent=11 // pred_check
        %p556 = pneg %p368
      $region70: #{tpu_custom_call.1} parent=11 // pred_check_branch
        %558 = sbr.rel (%p556) target = $region72
      $region71: #{tpu_custom_call.1} parent=11 // pred_region
        _
      $region72: #{tpu_custom_call.1} parent=11 // pred_fallthru
        _
      // Predicated region
      $region73: #{tpu_custom_call.1} parent=11 // pred_check
        %p559 = pneg %p389
      $region74: #{tpu_custom_call.1} parent=11 // pred_check_branch
        %561 = sbr.rel (%p559) target = $region76
      $region75: #{tpu_custom_call.1} parent=11 // pred_region
        _
      $region76: #{tpu_custom_call.1} parent=11 // pred_fallthru
        _
      // Predicated region
      $region77: #{tpu_custom_call.1} parent=11 // pred_check
        %p562 = pneg %p410
      $region78: #{tpu_custom_call.1} parent=11 // pred_check_branch
        %564 = sbr.rel (%p562) target = $region80
      $region79: #{tpu_custom_call.1} parent=11 // pred_region
        _
      $region80: #{tpu_custom_call.1} parent=11 // pred_fallthru
        _
      // Predicated region
      $region81: #{tpu_custom_call.1} parent=11 // pred_check
        %p565 = pneg %p431
      $region82: #{tpu_custom_call.1} parent=11 // pred_check_branch
        %567 = sbr.rel (%p565) target = $region84
      $region83: #{tpu_custom_call.1} parent=11 // pred_region
        _
      $region84: #{tpu_custom_call.1} parent=11 // pred_fallthru
        _
      // Predicated region
      $region85: #{tpu_custom_call.1} parent=11 // pred_check
        %p568 = pneg %p452
      $region86: #{tpu_custom_call.1} parent=11 // pred_check_branch
        %570 = sbr.rel (%p568) target = $region88
      $region87: #{tpu_custom_call.1} parent=11 // pred_region
        _
      $region88: #{tpu_custom_call.1} parent=11 // pred_fallthru
        _
      // Predicated region
      $region89: #{tpu_custom_call.1} parent=11 // pred_check
        %p571 = pneg %p473
      $region90: #{tpu_custom_call.1} parent=11 // pred_check_branch
        %573 = sbr.rel (%p571) target = $region92
      $region91: #{tpu_custom_call.1} parent=11 // pred_region
        _
      $region92: #{tpu_custom_call.1} parent=11 // pred_fallthru
        _
    $region12: #{tpu_custom_call.1} parent=5 // pred_fallthru
      _
    %p574 = scmp.lt.s32.totalorder %s27, 2
    // Predicated region
    $region93: #{tpu_custom_call.1} parent=5 // pred_check
      %p575 = pneg %p574
    $region94: #{tpu_custom_call.1} parent=5 // pred_check_branch
      %577 = sbr.rel (%p575) target = $region96
    $region95: #{tpu_custom_call.1} parent=5 // pred_region
      // Predicated region
      $region97: #{tpu_custom_call.1} parent=95 // pred_check
        %p578 = pneg %p47
      $region98: #{tpu_custom_call.1} parent=95 // pred_check_branch
        %580 = sbr.rel (%p578) target = $region100
      $region99: #{tpu_custom_call.1} parent=95 // pred_region
        %s581 = smul.u32 16, %s27
        %p582 = scmp.lt.s32.totalorder %s581, 31
        %s583 = scalar_select %p582, %s581, 31
        %s584 = smul.addr %s583, 40
        %s585 = smul.addr %s584, 4
        %s586 = scalar_lea.vmem %s0, %s585
        %s587 = smul.u32 16, %s27
      $region100: #{tpu_custom_call.1} parent=95 // pred_fallthru
        _
    $region96: #{tpu_custom_call.1} parent=5 // pred_fallthru
      _
    %p588 = scmp.le.s32.totalorder 1, %s27
    %p589 = scmp.lt.s32.totalorder %s27, 3
    %p590 = pnand %p588, %p589
    %p591 = pneg %p590
    // Predicated region
    $region101: #{tpu_custom_call.1} parent=5 // pred_check
      _
    $region102: #{tpu_custom_call.1} parent=5 // pred_check_branch
      %593 = sbr.rel (%p590) target = $region104
    $region103: #{tpu_custom_call.1} parent=5 // pred_region
      %s594 = ssub.s32 %s27, 1
      %s595 = smul.u32 16, %s32
      %p596 = scmp.lt.s32.totalorder %s595, 31
      %s597 = scalar_select %p596, %s595, 31
      %s598 = smul.addr %s597, 40
      %s599 = smul.addr %s598, 4
      %s600 = scalar_lea.vmem %s0, %s599
      %p601 = pneg %p53
      %p602 = pneg %p50
      %p603 = pneg %p74
      %p604 = pneg %p71
      %p605 = pneg %p95
      %p606 = pneg %p92
      %p607 = pneg %p116
      %p608 = pneg %p113
      %p609 = pneg %p137
      %p610 = pneg %p134
      %p611 = pneg %p158
      %p612 = pneg %p155
      %p613 = pneg %p179
      %p614 = pneg %p176
      %p615 = pneg %p200
      %p616 = pneg %p197
      %p617 = pneg %p221
      %p618 = pneg %p218
      %p619 = pneg %p242
      %p620 = pneg %p239
      %p621 = pneg %p263
      %p622 = pneg %p260
      %p623 = pneg %p284
      %p624 = pneg %p281
      %p625 = pneg %p305
      %p626 = pneg %p302
      %p627 = pneg %p326
      %p628 = pneg %p323
      %p629 = pneg %p347
      %p630 = pneg %p344
      %p631 = pneg %p368
      %p632 = pneg %p365
      %p633 = pneg %p389
      %p634 = pneg %p386
      %p635 = pneg %p410
      %p636 = pneg %p407
      %p637 = pneg %p431
      %p638 = pneg %p428
      %p639 = pneg %p452
      %p640 = pneg %p449
      %p641 = pneg %p473
      %p642 = pneg %p470
      %p643 = pneg %p499
      %p644 = pneg %p496
      %s645 = smul.u32 16, %s32
      %p646 = scmp.lt.s32.totalorder %s645, 31
      %s647 = scalar_select %p646, %s645, 31
      %s648 = smul.addr %s647, 8
      %s649 = scalar_lea.vmem %s21, %s648
      %s650 = smul.u32 16, %s32
      %p651 = scmp.lt.s32.totalorder %s650, 31
      %s652 = scalar_select %p651, %s650, 31
      %s653 = smul.addr %s652, 40
      %s654 = smul.addr %s653, 4
      %s655 = scalar_lea.vmem %s0, %s654
      %s656 = smul.u32 16, %s32
      %s657 = smul.u32 16, %s32
      %p658 = scmp.lt.s32.totalorder %s657, 31
      %s659 = scalar_select %p658, %s657, 31
      %s660 = smul.addr %s659, 8
      %s661 = scalar_lea.vmem %s21, %s660
      %s662 = smul.u32 16, %s32
      %v664 = vld [vmem:[%s655] sm:$0xff]
      %v665 = vld [vmem:[%s655 + $0x8] sm:$0xff]
      %v666 = vld [vmem:[%s655 + $0x10] sm:$0xff]
      %v667 = vld [vmem:[%s655 + $0x18] sm:$0xff]
      %v668 = vld [vmem:[%s655 + $0x20] sm:$0xff]
      %v669 = vld [vmem:[%s655 + $0x28] sm:$0xff]
      %v670 = vld [vmem:[%s655 + $0x30] sm:$0xff]
      %v671 = vld [vmem:[%s655 + $0x38] sm:$0xff]
      %v672 = vld [vmem:[%s655 + $0x40] sm:$0xff]
      %v673 = vld [vmem:[%s655 + $0x48] sm:$0xff]
      %v674 = vld [vmem:[%s655 + $0x50] sm:$0xff]
      %v675 = vld [vmem:[%s655 + $0x58] sm:$0xff]
      %v676 = vld [vmem:[%s655 + $0x60] sm:$0xff]
      %v677 = vld [vmem:[%s655 + $0x68] sm:$0xff]
      %v678 = vld [vmem:[%s655 + $0x70] sm:$0xff]
      %v679 = vld [vmem:[%s655 + $0x78] sm:$0xff]
      %v680 = vld [vmem:[%s655 + $0x80] sm:$0xff]
      %v681 = vld [vmem:[%s655 + $0x88] sm:$0xff]
      %v682 = vld [vmem:[%s655 + $0x90] sm:$0xff]
      %v683 = vld [vmem:[%s655 + $0x98] sm:$0xff]
      %v684 = vld [vmem:[%s655 + $0xa0] sm:$0xff]
      %v685 = vld [vmem:[%s655 + $0xa8] sm:$0xff]
      %v686 = vld [vmem:[%s655 + $0xb0] sm:$0xff]
      %v687 = vld [vmem:[%s655 + $0xb8] sm:$0xff]
      %v688 = vld [vmem:[%s655 + $0xc0] sm:$0xff]
      %v689 = vld [vmem:[%s655 + $0xc8] sm:$0xff]
      %v690 = vld [vmem:[%s655 + $0xd0] sm:$0xff]
      %v691 = vld [vmem:[%s655 + $0xd8] sm:$0xff]
      %v692 = vld [vmem:[%s655 + $0xe0] sm:$0xff]
      %v693 = vld [vmem:[%s655 + $0xe8] sm:$0xff]
      %v694 = vld [vmem:[%s655 + $0xf0] sm:$0xff]
      %v695 = vld [vmem:[%s655 + $0xf8] sm:$0xff]
      %v696 = vld [vmem:[%s655 + $0x100] sm:$0xff]
      %v697 = vld [vmem:[%s655 + $0x108] sm:$0xff]
      %v698 = vld [vmem:[%s655 + $0x110] sm:$0xff]
      %v699 = vld [vmem:[%s655 + $0x118] sm:$0xff]
      %v700 = vld [vmem:[%s655 + $0x120] sm:$0xff]
      %v701 = vld [vmem:[%s655 + $0x128] sm:$0xff]
      %v702 = vld [vmem:[%s655 + $0x130] sm:$0xff]
      %v703 = vld [vmem:[%s655 + $0x138] sm:$0xff]
      %v704 = vld [vmem:[%s655 + $0x140] sm:$0xff]
      %v705 = vld [vmem:[%s655 + $0x148] sm:$0xff]
      %v706 = vld [vmem:[%s655 + $0x150] sm:$0xff]
      %v707 = vld [vmem:[%s655 + $0x158] sm:$0xff]
      %v708 = vld [vmem:[%s655 + $0x160] sm:$0xff]
      %v709 = vld [vmem:[%s655 + $0x168] sm:$0xff]
      %v710 = vld [vmem:[%s655 + $0x170] sm:$0xff]
      %v711 = vld [vmem:[%s655 + $0x178] sm:$0xff]
      %v712 = vld [vmem:[%s655 + $0x180] sm:$0xff]
      %v713 = vld [vmem:[%s655 + $0x188] sm:$0xff]
      %v714 = vld [vmem:[%s655 + $0x190] sm:$0xff]
      %v715 = vld [vmem:[%s655 + $0x198] sm:$0xff]
      %v716 = vld [vmem:[%s655 + $0x1a0] sm:$0xff]
      %v717 = vld [vmem:[%s655 + $0x1a8] sm:$0xff]
      %v718 = vld [vmem:[%s655 + $0x1b0] sm:$0xff]
      %v719 = vld [vmem:[%s655 + $0x1b8] sm:$0xff]
      %v720 = vld [vmem:[%s655 + $0x1c0] sm:$0xff]
      %v721 = vld [vmem:[%s655 + $0x1c8] sm:$0xff]
      %v722 = vld [vmem:[%s655 + $0x1d0] sm:$0xff]
      %v723 = vld [vmem:[%s655 + $0x1d8] sm:$0xff]
      %v724 = vld [vmem:[%s655 + $0x1e0] sm:$0xff]
      %v725 = vld [vmem:[%s655 + $0x1e8] sm:$0xff]
      %v726 = vld [vmem:[%s655 + $0x1f0] sm:$0xff]
      %v727 = vld [vmem:[%s655 + $0x1f8] sm:$0xff]
      %v728 = vld [vmem:[%s655 + $0x200] sm:$0xff]
      %v729 = vld [vmem:[%s655 + $0x208] sm:$0xff]
      %v730 = vld [vmem:[%s655 + $0x210] sm:$0xff]
      %v731 = vld [vmem:[%s655 + $0x218] sm:$0xff]
      %v732 = vld [vmem:[%s655 + $0x220] sm:$0xff]
      %v733 = vld [vmem:[%s655 + $0x228] sm:$0xff]
      %v734 = vld [vmem:[%s655 + $0x230] sm:$0xff]
      %v735 = vld [vmem:[%s655 + $0x238] sm:$0xff]
      %v736 = vld [vmem:[%s655 + $0x240] sm:$0xff]
      %v737 = vld [vmem:[%s655 + $0x248] sm:$0xff]
      %v738 = vld [vmem:[%s655 + $0x250] sm:$0xff]
      %v739 = vld [vmem:[%s655 + $0x258] sm:$0xff]
      %v740 = vld [vmem:[%s655 + $0x260] sm:$0xff]
      %v741 = vld [vmem:[%s655 + $0x268] sm:$0xff]
      %v742 = vld [vmem:[%s655 + $0x270] sm:$0xff]
      %v743 = vld [vmem:[%s655 + $0x278] sm:$0xff]
      %v744 = vld [vmem:[%s655 + $0x280] sm:$0xff]
      %v745 = vld [vmem:[%s655 + $0x288] sm:$0xff]
      %v746 = vld [vmem:[%s655 + $0x290] sm:$0xff]
      %v747 = vld [vmem:[%s655 + $0x298] sm:$0xff]
      %v748 = vld [vmem:[%s655 + $0x2a0] sm:$0xff]
      %v749 = vld [vmem:[%s655 + $0x2a8] sm:$0xff]
      %v750 = vld [vmem:[%s655 + $0x2b0] sm:$0xff]
      %v751 = vld [vmem:[%s655 + $0x2b8] sm:$0xff]
      %v752 = vld [vmem:[%s655 + $0x2c0] sm:$0xff]
      %v753 = vld [vmem:[%s655 + $0x2c8] sm:$0xff]
      %v754 = vld [vmem:[%s655 + $0x2d0] sm:$0xff]
      %v755 = vld [vmem:[%s655 + $0x2d8] sm:$0xff]
      %v756 = vld [vmem:[%s655 + $0x2e0] sm:$0xff]
      %v757 = vld [vmem:[%s655 + $0x2e8] sm:$0xff]
      %v758 = vld [vmem:[%s655 + $0x2f0] sm:$0xff]
      %v759 = vld [vmem:[%s655 + $0x2f8] sm:$0xff]
      %v760 = vld [vmem:[%s655 + $0x300] sm:$0xff]
      %v761 = vld [vmem:[%s655 + $0x308] sm:$0xff]
      %v762 = vld [vmem:[%s655 + $0x310] sm:$0xff]
      %v763 = vld [vmem:[%s655 + $0x318] sm:$0xff]
      %v764 = vld [vmem:[%s655 + $0x320] sm:$0xff]
      %v765 = vld [vmem:[%s655 + $0x328] sm:$0xff]
      %v766 = vld [vmem:[%s655 + $0x330] sm:$0xff]
      %v767 = vld [vmem:[%s655 + $0x338] sm:$0xff]
      %v768 = vld [vmem:[%s655 + $0x340] sm:$0xff]
      %v769 = vld [vmem:[%s655 + $0x348] sm:$0xff]
      %v770 = vld [vmem:[%s655 + $0x350] sm:$0xff]
      %v771 = vld [vmem:[%s655 + $0x358] sm:$0xff]
      %v772 = vld [vmem:[%s655 + $0x360] sm:$0xff]
      %v773 = vld [vmem:[%s655 + $0x368] sm:$0xff]
      %v774 = vld [vmem:[%s655 + $0x370] sm:$0xff]
      %v775 = vld [vmem:[%s655 + $0x378] sm:$0xff]
      %v776 = vld [vmem:[%s655 + $0x380] sm:$0xff]
      %v777 = vld [vmem:[%s655 + $0x388] sm:$0xff]
      %v778 = vld [vmem:[%s655 + $0x390] sm:$0xff]
      %v779 = vld [vmem:[%s655 + $0x398] sm:$0xff]
      %v780 = vld [vmem:[%s655 + $0x3a0] sm:$0xff]
      %v781 = vld [vmem:[%s655 + $0x3a8] sm:$0xff]
      %v782 = vld [vmem:[%s655 + $0x3b0] sm:$0xff]
      %v783 = vld [vmem:[%s655 + $0x3b8] sm:$0xff]
      %v784 = vld [vmem:[%s655 + $0x3c0] sm:$0xff]
      %v785 = vld [vmem:[%s655 + $0x3c8] sm:$0xff]
      %v786 = vld [vmem:[%s655 + $0x3d0] sm:$0xff]
      %v787 = vld [vmem:[%s655 + $0x3d8] sm:$0xff]
      %v788 = vld [vmem:[%s655 + $0x3e0] sm:$0xff]
      %v789 = vld [vmem:[%s655 + $0x3e8] sm:$0xff]
      %v790 = vld [vmem:[%s655 + $0x3f0] sm:$0xff]
      %v791 = vld [vmem:[%s655 + $0x3f8] sm:$0xff]
      %v792 = vld [vmem:[%s655 + $0x400] sm:$0xff]
      %v793 = vld [vmem:[%s655 + $0x408] sm:$0xff]
      %v794 = vld [vmem:[%s655 + $0x410] sm:$0xff]
      %v795 = vld [vmem:[%s655 + $0x418] sm:$0xff]
      %v796 = vld [vmem:[%s655 + $0x420] sm:$0xff]
      %v797 = vld [vmem:[%s655 + $0x428] sm:$0xff]
      %v798 = vld [vmem:[%s655 + $0x430] sm:$0xff]
      %v799 = vld [vmem:[%s655 + $0x438] sm:$0xff]
      %v800 = vld [vmem:[%s655 + $0x440] sm:$0xff]
      %v801 = vld [vmem:[%s655 + $0x448] sm:$0xff]
      %v802 = vld [vmem:[%s655 + $0x450] sm:$0xff]
      %v803 = vld [vmem:[%s655 + $0x458] sm:$0xff]
      %v804 = vld [vmem:[%s655 + $0x460] sm:$0xff]
      %v805 = vld [vmem:[%s655 + $0x468] sm:$0xff]
      %v806 = vld [vmem:[%s655 + $0x470] sm:$0xff]
      %v807 = vld [vmem:[%s655 + $0x478] sm:$0xff]
      %v808 = vld [vmem:[%s655 + $0x480] sm:$0xff]
      %v809 = vld [vmem:[%s655 + $0x488] sm:$0xff]
      %v810 = vld [vmem:[%s655 + $0x490] sm:$0xff]
      %v811 = vld [vmem:[%s655 + $0x498] sm:$0xff]
      %v812 = vld [vmem:[%s655 + $0x4a0] sm:$0xff]
      %v813 = vld [vmem:[%s655 + $0x4a8] sm:$0xff]
      %v814 = vld [vmem:[%s655 + $0x4b0] sm:$0xff]
      %v815 = vld [vmem:[%s655 + $0x4b8] sm:$0xff]
      %v816 = vld [vmem:[%s655 + $0x4c0] sm:$0xff]
      %v817 = vld [vmem:[%s655 + $0x4c8] sm:$0xff]
      %v818 = vld [vmem:[%s655 + $0x4d0] sm:$0xff]
      %v819 = vld [vmem:[%s655 + $0x4d8] sm:$0xff]
      %v820 = vld [vmem:[%s655 + $0x4e0] sm:$0xff]
      %v821 = vld [vmem:[%s655 + $0x4e8] sm:$0xff]
      %v822 = vld [vmem:[%s655 + $0x4f0] sm:$0xff]
      %v823 = vld [vmem:[%s655 + $0x4f8] sm:$0xff]
      %v824 = vld [vmem:[%s655 + $0x500] sm:$0xff]
      %v825 = vld [vmem:[%s655 + $0x508] sm:$0xff]
      %v826 = vld [vmem:[%s655 + $0x510] sm:$0xff]
      %v827 = vld [vmem:[%s655 + $0x518] sm:$0xff]
      %v828 = vld [vmem:[%s655 + $0x520] sm:$0xff]
      %v829 = vld [vmem:[%s655 + $0x528] sm:$0xff]
      %v830 = vld [vmem:[%s655 + $0x530] sm:$0xff]
      %v831 = vld [vmem:[%s655 + $0x538] sm:$0xff]
      %v832 = vld [vmem:[%s655 + $0x540] sm:$0xff]
      %v833 = vld [vmem:[%s655 + $0x548] sm:$0xff]
      %v834 = vld [vmem:[%s655 + $0x550] sm:$0xff]
      %v835 = vld [vmem:[%s655 + $0x558] sm:$0xff]
      %v836 = vld [vmem:[%s655 + $0x560] sm:$0xff]
      %v837 = vld [vmem:[%s655 + $0x568] sm:$0xff]
      %v838 = vld [vmem:[%s655 + $0x570] sm:$0xff]
      %v839 = vld [vmem:[%s655 + $0x578] sm:$0xff]
      %v840 = vld [vmem:[%s655 + $0x580] sm:$0xff]
      %v841 = vld [vmem:[%s655 + $0x588] sm:$0xff]
      %v842 = vld [vmem:[%s655 + $0x590] sm:$0xff]
      %v843 = vld [vmem:[%s655 + $0x598] sm:$0xff]
      %v844 = vld [vmem:[%s655 + $0x5a0] sm:$0xff]
      %v845 = vld [vmem:[%s655 + $0x5a8] sm:$0xff]
      %v846 = vld [vmem:[%s655 + $0x5b0] sm:$0xff]
      %v847 = vld [vmem:[%s655 + $0x5b8] sm:$0xff]
      %v848 = vld [vmem:[%s655 + $0x5c0] sm:$0xff]
      %v849 = vld [vmem:[%s655 + $0x5c8] sm:$0xff]
      %v850 = vld [vmem:[%s655 + $0x5d0] sm:$0xff]
      %v851 = vld [vmem:[%s655 + $0x5d8] sm:$0xff]
      %v852 = vld [vmem:[%s655 + $0x5e0] sm:$0xff]
      %v853 = vld [vmem:[%s655 + $0x5e8] sm:$0xff]
      %v854 = vld [vmem:[%s655 + $0x5f0] sm:$0xff]
      %v855 = vld [vmem:[%s655 + $0x5f8] sm:$0xff]
      %v856 = vld [vmem:[%s655 + $0x600] sm:$0xff]
      %v857 = vld [vmem:[%s655 + $0x608] sm:$0xff]
      %v858 = vld [vmem:[%s655 + $0x610] sm:$0xff]
      %v859 = vld [vmem:[%s655 + $0x618] sm:$0xff]
      %v860 = vld [vmem:[%s655 + $0x620] sm:$0xff]
      %v861 = vld [vmem:[%s655 + $0x628] sm:$0xff]
      %v862 = vld [vmem:[%s655 + $0x630] sm:$0xff]
      %v863 = vld [vmem:[%s655 + $0x638] sm:$0xff]
      %v864 = vld [vmem:[%s655 + $0x640] sm:$0xff]
      %v865 = vld [vmem:[%s655 + $0x648] sm:$0xff]
      %v866 = vld [vmem:[%s655 + $0x650] sm:$0xff]
      %v867 = vld [vmem:[%s655 + $0x658] sm:$0xff]
      %v868 = vld [vmem:[%s655 + $0x660] sm:$0xff]
      %v869 = vld [vmem:[%s655 + $0x668] sm:$0xff]
      %v870 = vld [vmem:[%s655 + $0x670] sm:$0xff]
      %v871 = vld [vmem:[%s655 + $0x678] sm:$0xff]
      %v872 = vld [vmem:[%s655 + $0x680] sm:$0xff]
      %v873 = vld [vmem:[%s655 + $0x688] sm:$0xff]
      %v874 = vld [vmem:[%s655 + $0x690] sm:$0xff]
      %v875 = vld [vmem:[%s655 + $0x698] sm:$0xff]
      %v876 = vld [vmem:[%s655 + $0x6a0] sm:$0xff]
      %v877 = vld [vmem:[%s655 + $0x6a8] sm:$0xff]
      %v878 = vld [vmem:[%s655 + $0x6b0] sm:$0xff]
      %v879 = vld [vmem:[%s655 + $0x6b8] sm:$0xff]
      %v880 = vld [vmem:[%s655 + $0x6c0] sm:$0xff]
      %v881 = vld [vmem:[%s655 + $0x6c8] sm:$0xff]
      %v882 = vld [vmem:[%s655 + $0x6d0] sm:$0xff]
      %v883 = vld [vmem:[%s655 + $0x6d8] sm:$0xff]
      %v884 = vld [vmem:[%s655 + $0x6e0] sm:$0xff]
      %v885 = vld [vmem:[%s655 + $0x6e8] sm:$0xff]
      %v886 = vld [vmem:[%s655 + $0x6f0] sm:$0xff]
      %v887 = vld [vmem:[%s655 + $0x6f8] sm:$0xff]
      %v888 = vld [vmem:[%s655 + $0x700] sm:$0xff]
      %v889 = vld [vmem:[%s655 + $0x708] sm:$0xff]
      %v890 = vld [vmem:[%s655 + $0x710] sm:$0xff]
      %v891 = vld [vmem:[%s655 + $0x718] sm:$0xff]
      %v892 = vld [vmem:[%s655 + $0x720] sm:$0xff]
      %v893 = vld [vmem:[%s655 + $0x728] sm:$0xff]
      %v894 = vld [vmem:[%s655 + $0x730] sm:$0xff]
      %v895 = vld [vmem:[%s655 + $0x738] sm:$0xff]
      %v896 = vld [vmem:[%s655 + $0x740] sm:$0xff]
      %v897 = vld [vmem:[%s655 + $0x748] sm:$0xff]
      %v898 = vld [vmem:[%s655 + $0x750] sm:$0xff]
      %v899 = vld [vmem:[%s655 + $0x758] sm:$0xff]
      %v900 = vld [vmem:[%s655 + $0x760] sm:$0xff]
      %v901 = vld [vmem:[%s655 + $0x768] sm:$0xff]
      %v902 = vld [vmem:[%s655 + $0x770] sm:$0xff]
      %v903 = vld [vmem:[%s655 + $0x778] sm:$0xff]
      %v904 = vld [vmem:[%s655 + $0x780] sm:$0xff]
      %v905 = vld [vmem:[%s655 + $0x788] sm:$0xff]
      %v906 = vld [vmem:[%s655 + $0x790] sm:$0xff]
      %v907 = vld [vmem:[%s655 + $0x798] sm:$0xff]
      %v908 = vld [vmem:[%s655 + $0x7a0] sm:$0xff]
      %v909 = vld [vmem:[%s655 + $0x7a8] sm:$0xff]
      %v910 = vld [vmem:[%s655 + $0x7b0] sm:$0xff]
      %v911 = vld [vmem:[%s655 + $0x7b8] sm:$0xff]
      %v912 = vld [vmem:[%s655 + $0x7c0] sm:$0xff]
      %v913 = vld [vmem:[%s655 + $0x7c8] sm:$0xff]
      %v914 = vld [vmem:[%s655 + $0x7d0] sm:$0xff]
      %v915 = vld [vmem:[%s655 + $0x7d8] sm:$0xff]
      %v916 = vld [vmem:[%s655 + $0x7e0] sm:$0xff]
      %v917 = vld [vmem:[%s655 + $0x7e8] sm:$0xff]
      %v918 = vld [vmem:[%s655 + $0x7f0] sm:$0xff]
      %v919 = vld [vmem:[%s655 + $0x7f8] sm:$0xff]
      %v920 = vld [vmem:[%s655 + $0x800] sm:$0xff]
      %v921 = vld [vmem:[%s655 + $0x808] sm:$0xff]
      %v922 = vld [vmem:[%s655 + $0x810] sm:$0xff]
      %v923 = vld [vmem:[%s655 + $0x818] sm:$0xff]
      %v924 = vld [vmem:[%s655 + $0x820] sm:$0xff]
      %v925 = vld [vmem:[%s655 + $0x828] sm:$0xff]
      %v926 = vld [vmem:[%s655 + $0x830] sm:$0xff]
      %v927 = vld [vmem:[%s655 + $0x838] sm:$0xff]
      %v928 = vld [vmem:[%s655 + $0x840] sm:$0xff]
      %v929 = vld [vmem:[%s655 + $0x848] sm:$0xff]
      %v930 = vld [vmem:[%s655 + $0x850] sm:$0xff]
      %v931 = vld [vmem:[%s655 + $0x858] sm:$0xff]
      %v932 = vld [vmem:[%s655 + $0x860] sm:$0xff]
      %v933 = vld [vmem:[%s655 + $0x868] sm:$0xff]
      %v934 = vld [vmem:[%s655 + $0x870] sm:$0xff]
      %v935 = vld [vmem:[%s655 + $0x878] sm:$0xff]
      %v936 = vld [vmem:[%s655 + $0x880] sm:$0xff]
      %v937 = vld [vmem:[%s655 + $0x888] sm:$0xff]
      %v938 = vld [vmem:[%s655 + $0x890] sm:$0xff]
      %v939 = vld [vmem:[%s655 + $0x898] sm:$0xff]
      %v940 = vld [vmem:[%s655 + $0x8a0] sm:$0xff]
      %v941 = vld [vmem:[%s655 + $0x8a8] sm:$0xff]
      %v942 = vld [vmem:[%s655 + $0x8b0] sm:$0xff]
      %v943 = vld [vmem:[%s655 + $0x8b8] sm:$0xff]
      %v944 = vld [vmem:[%s655 + $0x8c0] sm:$0xff]
      %v945 = vld [vmem:[%s655 + $0x8c8] sm:$0xff]
      %v946 = vld [vmem:[%s655 + $0x8d0] sm:$0xff]
      %v947 = vld [vmem:[%s655 + $0x8d8] sm:$0xff]
      %v948 = vld [vmem:[%s655 + $0x8e0] sm:$0xff]
      %v949 = vld [vmem:[%s655 + $0x8e8] sm:$0xff]
      %v950 = vld [vmem:[%s655 + $0x8f0] sm:$0xff]
      %v951 = vld [vmem:[%s655 + $0x8f8] sm:$0xff]
      %v952 = vld [vmem:[%s655 + $0x900] sm:$0xff]
      %v953 = vld [vmem:[%s655 + $0x908] sm:$0xff]
      %v954 = vld [vmem:[%s655 + $0x910] sm:$0xff]
      %v955 = vld [vmem:[%s655 + $0x918] sm:$0xff]
      %v956 = vld [vmem:[%s655 + $0x920] sm:$0xff]
      %v957 = vld [vmem:[%s655 + $0x928] sm:$0xff]
      %v958 = vld [vmem:[%s655 + $0x930] sm:$0xff]
      %v959 = vld [vmem:[%s655 + $0x938] sm:$0xff]
      %v960 = vld [vmem:[%s655 + $0x940] sm:$0xff]
      %v961 = vld [vmem:[%s655 + $0x948] sm:$0xff]
      %v962 = vld [vmem:[%s655 + $0x950] sm:$0xff]
      %v963 = vld [vmem:[%s655 + $0x958] sm:$0xff]
      %v964 = vld [vmem:[%s655 + $0x960] sm:$0xff]
      %v965 = vld [vmem:[%s655 + $0x968] sm:$0xff]
      %v966 = vld [vmem:[%s655 + $0x970] sm:$0xff]
      %v967 = vld [vmem:[%s655 + $0x978] sm:$0xff]
      %v968 = vld [vmem:[%s655 + $0x980] sm:$0xff]
      %v969 = vld [vmem:[%s655 + $0x988] sm:$0xff]
      %v970 = vld [vmem:[%s655 + $0x990] sm:$0xff]
      %v971 = vld [vmem:[%s655 + $0x998] sm:$0xff]
      %v972 = vld [vmem:[%s655 + $0x9a0] sm:$0xff]
      %v973 = vld [vmem:[%s655 + $0x9a8] sm:$0xff]
      %v974 = vld [vmem:[%s655 + $0x9b0] sm:$0xff]
      %v975 = vld [vmem:[%s655 + $0x9b8] sm:$0xff]
      %v976 = vld [vmem:[%s655 + $0x9c0] sm:$0xff]
      %v977 = vld [vmem:[%s655 + $0x9c8] sm:$0xff]
      %v978 = vld [vmem:[%s655 + $0x9d0] sm:$0xff]
      %v979 = vld [vmem:[%s655 + $0x9d8] sm:$0xff]
      %v980 = vld [vmem:[%s655 + $0x9e0] sm:$0xff]
      %v981 = vld [vmem:[%s655 + $0x9e8] sm:$0xff]
      %v982 = vld [vmem:[%s655 + $0x9f0] sm:$0xff]
      %v983 = vld [vmem:[%s655 + $0x9f8] sm:$0xff]
      %v984 = vld [vmem:[%s1] sm:$0xff]
      %v985 = vld [vmem:[%s1 + $0x8] sm:$0xff]
      %v986 = vld [vmem:[%s1 + $0x10] sm:$0xff]
      %v987 = vld [vmem:[%s1 + $0x18] sm:$0xff]
      %v988 = vld [vmem:[%s1 + $0x20] sm:$0xff]
      %v989 = vld [vmem:[%s1 + $0x28] sm:$0xff]
      %v990 = vld [vmem:[%s1 + $0x30] sm:$0xff]
      %v991 = vld [vmem:[%s1 + $0x38] sm:$0xff]
      %v992 = vld [vmem:[%s1 + $0x40] sm:$0xff]
      %v993 = vld [vmem:[%s1 + $0x48] sm:$0xff]
      %v994 = vld [vmem:[%s2] sm:$0x1]
      %v996 = vperm.slane %v994, 0
      %v1318 = vunpack.c.l.b16 %v664
      %v1319 = vunpack.c.h.b16 %v664
      %v1320 = vunpack.c.l.b16 %v665
      %v1321 = vunpack.c.h.b16 %v665
      %v1322 = vunpack.c.l.b16 %v666
      %v1323 = vunpack.c.h.b16 %v666
      %v1324 = vunpack.c.l.b16 %v667
      %v1325 = vunpack.c.h.b16 %v667
      %v1326 = vunpack.c.l.b16 %v668
      %v1327 = vunpack.c.h.b16 %v668
      %v1328 = vunpack.c.l.b16 %v669
      %v1329 = vunpack.c.h.b16 %v669
      %v1330 = vunpack.c.l.b16 %v670
      %v1331 = vunpack.c.h.b16 %v670
      %v1332 = vunpack.c.l.b16 %v671
      %v1333 = vunpack.c.h.b16 %v671
      %v1334 = vunpack.c.l.b16 %v672
      %v1335 = vunpack.c.h.b16 %v672
      %v1336 = vunpack.c.l.b16 %v673
      %v1337 = vunpack.c.h.b16 %v673
      %v1338 = vunpack.c.l.b16 %v674
      %v1339 = vunpack.c.h.b16 %v674
      %v1340 = vunpack.c.l.b16 %v675
      %v1341 = vunpack.c.h.b16 %v675
      %v1342 = vunpack.c.l.b16 %v676
      %v1343 = vunpack.c.h.b16 %v676
      %v1344 = vunpack.c.l.b16 %v677
      %v1345 = vunpack.c.h.b16 %v677
      %v1346 = vunpack.c.l.b16 %v678
      %v1347 = vunpack.c.h.b16 %v678
      %v1348 = vunpack.c.l.b16 %v679
      %v1349 = vunpack.c.h.b16 %v679
      %v1350 = vunpack.c.l.b16 %v680
      %v1351 = vunpack.c.h.b16 %v680
      %v1352 = vunpack.c.l.b16 %v681
      %v1353 = vunpack.c.h.b16 %v681
      %v1354 = vunpack.c.l.b16 %v682
      %v1355 = vunpack.c.h.b16 %v682
      %v1356 = vunpack.c.l.b16 %v683
      %v1357 = vunpack.c.h.b16 %v683
      %v1358 = vunpack.c.l.b16 %v684
      %v1359 = vunpack.c.h.b16 %v684
      %v1360 = vunpack.c.l.b16 %v685
      %v1361 = vunpack.c.h.b16 %v685
      %v1362 = vunpack.c.l.b16 %v686
      %v1363 = vunpack.c.h.b16 %v686
      %v1364 = vunpack.c.l.b16 %v687
      %v1365 = vunpack.c.h.b16 %v687
      %v1366 = vunpack.c.l.b16 %v688
      %v1367 = vunpack.c.h.b16 %v688
      %v1368 = vunpack.c.l.b16 %v689
      %v1369 = vunpack.c.h.b16 %v689
      %v1370 = vunpack.c.l.b16 %v690
      %v1371 = vunpack.c.h.b16 %v690
      %v1372 = vunpack.c.l.b16 %v691
      %v1373 = vunpack.c.h.b16 %v691
      %v1374 = vunpack.c.l.b16 %v692
      %v1375 = vunpack.c.h.b16 %v692
      %v1376 = vunpack.c.l.b16 %v693
      %v1377 = vunpack.c.h.b16 %v693
      %v1378 = vunpack.c.l.b16 %v694
      %v1379 = vunpack.c.h.b16 %v694
      %v1380 = vunpack.c.l.b16 %v695
      %v1381 = vunpack.c.h.b16 %v695
      %v1382 = vunpack.c.l.b16 %v696
      %v1383 = vunpack.c.h.b16 %v696
      %v1384 = vunpack.c.l.b16 %v697
      %v1385 = vunpack.c.h.b16 %v697
      %v1386 = vunpack.c.l.b16 %v698
      %v1387 = vunpack.c.h.b16 %v698
      %v1388 = vunpack.c.l.b16 %v699
      %v1389 = vunpack.c.h.b16 %v699
      %v1390 = vunpack.c.l.b16 %v700
      %v1391 = vunpack.c.h.b16 %v700
      %v1392 = vunpack.c.l.b16 %v701
      %v1393 = vunpack.c.h.b16 %v701
      %v1394 = vunpack.c.l.b16 %v702
      %v1395 = vunpack.c.h.b16 %v702
      %v1396 = vunpack.c.l.b16 %v703
      %v1397 = vunpack.c.h.b16 %v703
      %v1398 = vunpack.c.l.b16 %v704
      %v1399 = vunpack.c.h.b16 %v704
      %v1400 = vunpack.c.l.b16 %v705
      %v1401 = vunpack.c.h.b16 %v705
      %v1402 = vunpack.c.l.b16 %v706
      %v1403 = vunpack.c.h.b16 %v706
      %v1404 = vunpack.c.l.b16 %v707
      %v1405 = vunpack.c.h.b16 %v707
      %v1406 = vunpack.c.l.b16 %v708
      %v1407 = vunpack.c.h.b16 %v708
      %v1408 = vunpack.c.l.b16 %v709
      %v1409 = vunpack.c.h.b16 %v709
      %v1410 = vunpack.c.l.b16 %v710
      %v1411 = vunpack.c.h.b16 %v710
      %v1412 = vunpack.c.l.b16 %v711
      %v1413 = vunpack.c.h.b16 %v711
      %v1414 = vunpack.c.l.b16 %v712
      %v1415 = vunpack.c.h.b16 %v712
      %v1416 = vunpack.c.l.b16 %v713
      %v1417 = vunpack.c.h.b16 %v713
      %v1418 = vunpack.c.l.b16 %v714
      %v1419 = vunpack.c.h.b16 %v714
      %v1420 = vunpack.c.l.b16 %v715
      %v1421 = vunpack.c.h.b16 %v715
      %v1422 = vunpack.c.l.b16 %v716
      %v1423 = vunpack.c.h.b16 %v716
      %v1424 = vunpack.c.l.b16 %v717
      %v1425 = vunpack.c.h.b16 %v717
      %v1426 = vunpack.c.l.b16 %v718
      %v1427 = vunpack.c.h.b16 %v718
      %v1428 = vunpack.c.l.b16 %v719
      %v1429 = vunpack.c.h.b16 %v719
      %v1430 = vunpack.c.l.b16 %v720
      %v1431 = vunpack.c.h.b16 %v720
      %v1432 = vunpack.c.l.b16 %v721
      %v1433 = vunpack.c.h.b16 %v721
      %v1434 = vunpack.c.l.b16 %v722
      %v1435 = vunpack.c.h.b16 %v722
      %v1436 = vunpack.c.l.b16 %v723
      %v1437 = vunpack.c.h.b16 %v723
      %v1438 = vunpack.c.l.b16 %v724
      %v1439 = vunpack.c.h.b16 %v724
      %v1440 = vunpack.c.l.b16 %v725
      %v1441 = vunpack.c.h.b16 %v725
      %v1442 = vunpack.c.l.b16 %v726
      %v1443 = vunpack.c.h.b16 %v726
      %v1444 = vunpack.c.l.b16 %v727
      %v1445 = vunpack.c.h.b16 %v727
      %v1446 = vunpack.c.l.b16 %v728
      %v1447 = vunpack.c.h.b16 %v728
      %v1448 = vunpack.c.l.b16 %v729
      %v1449 = vunpack.c.h.b16 %v729
      %v1450 = vunpack.c.l.b16 %v730
      %v1451 = vunpack.c.h.b16 %v730
      %v1452 = vunpack.c.l.b16 %v731
      %v1453 = vunpack.c.h.b16 %v731
      %v1454 = vunpack.c.l.b16 %v732
      %v1455 = vunpack.c.h.b16 %v732
      %v1456 = vunpack.c.l.b16 %v733
      %v1457 = vunpack.c.h.b16 %v733
      %v1458 = vunpack.c.l.b16 %v734
      %v1459 = vunpack.c.h.b16 %v734
      %v1460 = vunpack.c.l.b16 %v735
      %v1461 = vunpack.c.h.b16 %v735
      %v1462 = vunpack.c.l.b16 %v736
      %v1463 = vunpack.c.h.b16 %v736
      %v1464 = vunpack.c.l.b16 %v737
      %v1465 = vunpack.c.h.b16 %v737
      %v1466 = vunpack.c.l.b16 %v738
      %v1467 = vunpack.c.h.b16 %v738
      %v1468 = vunpack.c.l.b16 %v739
      %v1469 = vunpack.c.h.b16 %v739
      %v1470 = vunpack.c.l.b16 %v740
      %v1471 = vunpack.c.h.b16 %v740
      %v1472 = vunpack.c.l.b16 %v741
      %v1473 = vunpack.c.h.b16 %v741
      %v1474 = vunpack.c.l.b16 %v742
      %v1475 = vunpack.c.h.b16 %v742
      %v1476 = vunpack.c.l.b16 %v743
      %v1477 = vunpack.c.h.b16 %v743
      %v1478 = vunpack.c.l.b16 %v744
      %v1479 = vunpack.c.h.b16 %v744
      %v1480 = vunpack.c.l.b16 %v745
      %v1481 = vunpack.c.h.b16 %v745
      %v1482 = vunpack.c.l.b16 %v746
      %v1483 = vunpack.c.h.b16 %v746
      %v1484 = vunpack.c.l.b16 %v747
      %v1485 = vunpack.c.h.b16 %v747
      %v1486 = vunpack.c.l.b16 %v748
      %v1487 = vunpack.c.h.b16 %v748
      %v1488 = vunpack.c.l.b16 %v749
      %v1489 = vunpack.c.h.b16 %v749
      %v1490 = vunpack.c.l.b16 %v750
      %v1491 = vunpack.c.h.b16 %v750
      %v1492 = vunpack.c.l.b16 %v751
      %v1493 = vunpack.c.h.b16 %v751
      %v1494 = vunpack.c.l.b16 %v752
      %v1495 = vunpack.c.h.b16 %v752
      %v1496 = vunpack.c.l.b16 %v753
      %v1497 = vunpack.c.h.b16 %v753
      %v1498 = vunpack.c.l.b16 %v754
      %v1499 = vunpack.c.h.b16 %v754
      %v1500 = vunpack.c.l.b16 %v755
      %v1501 = vunpack.c.h.b16 %v755
      %v1502 = vunpack.c.l.b16 %v756
      %v1503 = vunpack.c.h.b16 %v756
      %v1504 = vunpack.c.l.b16 %v757
      %v1505 = vunpack.c.h.b16 %v757
      %v1506 = vunpack.c.l.b16 %v758
      %v1507 = vunpack.c.h.b16 %v758
      %v1508 = vunpack.c.l.b16 %v759
      %v1509 = vunpack.c.h.b16 %v759
      %v1510 = vunpack.c.l.b16 %v760
      %v1511 = vunpack.c.h.b16 %v760
      %v1512 = vunpack.c.l.b16 %v761
      %v1513 = vunpack.c.h.b16 %v761
      %v1514 = vunpack.c.l.b16 %v762
      %v1515 = vunpack.c.h.b16 %v762
      %v1516 = vunpack.c.l.b16 %v763
      %v1517 = vunpack.c.h.b16 %v763
      %v1518 = vunpack.c.l.b16 %v764
      %v1519 = vunpack.c.h.b16 %v764
      %v1520 = vunpack.c.l.b16 %v765
      %v1521 = vunpack.c.h.b16 %v765
      %v1522 = vunpack.c.l.b16 %v766
      %v1523 = vunpack.c.h.b16 %v766
      %v1524 = vunpack.c.l.b16 %v767
      %v1525 = vunpack.c.h.b16 %v767
      %v1526 = vunpack.c.l.b16 %v768
      %v1527 = vunpack.c.h.b16 %v768
      %v1528 = vunpack.c.l.b16 %v769
      %v1529 = vunpack.c.h.b16 %v769
      %v1530 = vunpack.c.l.b16 %v770
      %v1531 = vunpack.c.h.b16 %v770
      %v1532 = vunpack.c.l.b16 %v771
      %v1533 = vunpack.c.h.b16 %v771
      %v1534 = vunpack.c.l.b16 %v772
      %v1535 = vunpack.c.h.b16 %v772
      %v1536 = vunpack.c.l.b16 %v773
      %v1537 = vunpack.c.h.b16 %v773
      %v1538 = vunpack.c.l.b16 %v774
      %v1539 = vunpack.c.h.b16 %v774
      %v1540 = vunpack.c.l.b16 %v775
      %v1541 = vunpack.c.h.b16 %v775
      %v1542 = vunpack.c.l.b16 %v776
      %v1543 = vunpack.c.h.b16 %v776
      %v1544 = vunpack.c.l.b16 %v777
      %v1545 = vunpack.c.h.b16 %v777
      %v1546 = vunpack.c.l.b16 %v778
      %v1547 = vunpack.c.h.b16 %v778
      %v1548 = vunpack.c.l.b16 %v779
      %v1549 = vunpack.c.h.b16 %v779
      %v1550 = vunpack.c.l.b16 %v780
      %v1551 = vunpack.c.h.b16 %v780
      %v1552 = vunpack.c.l.b16 %v781
      %v1553 = vunpack.c.h.b16 %v781
      %v1554 = vunpack.c.l.b16 %v782
      %v1555 = vunpack.c.h.b16 %v782
      %v1556 = vunpack.c.l.b16 %v783
      %v1557 = vunpack.c.h.b16 %v783
      %v1558 = vunpack.c.l.b16 %v784
      %v1559 = vunpack.c.h.b16 %v784
      %v1560 = vunpack.c.l.b16 %v785
      %v1561 = vunpack.c.h.b16 %v785
      %v1562 = vunpack.c.l.b16 %v786
      %v1563 = vunpack.c.h.b16 %v786
      %v1564 = vunpack.c.l.b16 %v787
      %v1565 = vunpack.c.h.b16 %v787
      %v1566 = vunpack.c.l.b16 %v788
      %v1567 = vunpack.c.h.b16 %v788
      %v1568 = vunpack.c.l.b16 %v789
      %v1569 = vunpack.c.h.b16 %v789
      %v1570 = vunpack.c.l.b16 %v790
      %v1571 = vunpack.c.h.b16 %v790
      %v1572 = vunpack.c.l.b16 %v791
      %v1573 = vunpack.c.h.b16 %v791
      %v1574 = vunpack.c.l.b16 %v792
      %v1575 = vunpack.c.h.b16 %v792
      %v1576 = vunpack.c.l.b16 %v793
      %v1577 = vunpack.c.h.b16 %v793
      %v1578 = vunpack.c.l.b16 %v794
      %v1579 = vunpack.c.h.b16 %v794
      %v1580 = vunpack.c.l.b16 %v795
      %v1581 = vunpack.c.h.b16 %v795
      %v1582 = vunpack.c.l.b16 %v796
      %v1583 = vunpack.c.h.b16 %v796
      %v1584 = vunpack.c.l.b16 %v797
      %v1585 = vunpack.c.h.b16 %v797
      %v1586 = vunpack.c.l.b16 %v798
      %v1587 = vunpack.c.h.b16 %v798
      %v1588 = vunpack.c.l.b16 %v799
      %v1589 = vunpack.c.h.b16 %v799
      %v1590 = vunpack.c.l.b16 %v800
      %v1591 = vunpack.c.h.b16 %v800
      %v1592 = vunpack.c.l.b16 %v801
      %v1593 = vunpack.c.h.b16 %v801
      %v1594 = vunpack.c.l.b16 %v802
      %v1595 = vunpack.c.h.b16 %v802
      %v1596 = vunpack.c.l.b16 %v803
      %v1597 = vunpack.c.h.b16 %v803
      %v1598 = vunpack.c.l.b16 %v804
      %v1599 = vunpack.c.h.b16 %v804
      %v1600 = vunpack.c.l.b16 %v805
      %v1601 = vunpack.c.h.b16 %v805
      %v1602 = vunpack.c.l.b16 %v806
      %v1603 = vunpack.c.h.b16 %v806
      %v1604 = vunpack.c.l.b16 %v807
      %v1605 = vunpack.c.h.b16 %v807
      %v1606 = vunpack.c.l.b16 %v808
      %v1607 = vunpack.c.h.b16 %v808
      %v1608 = vunpack.c.l.b16 %v809
      %v1609 = vunpack.c.h.b16 %v809
      %v1610 = vunpack.c.l.b16 %v810
      %v1611 = vunpack.c.h.b16 %v810
      %v1612 = vunpack.c.l.b16 %v811
      %v1613 = vunpack.c.h.b16 %v811
      %v1614 = vunpack.c.l.b16 %v812
      %v1615 = vunpack.c.h.b16 %v812
      %v1616 = vunpack.c.l.b16 %v813
      %v1617 = vunpack.c.h.b16 %v813
      %v1618 = vunpack.c.l.b16 %v814
      %v1619 = vunpack.c.h.b16 %v814
      %v1620 = vunpack.c.l.b16 %v815
      %v1621 = vunpack.c.h.b16 %v815
      %v1622 = vunpack.c.l.b16 %v816
      %v1623 = vunpack.c.h.b16 %v816
      %v1624 = vunpack.c.l.b16 %v817
      %v1625 = vunpack.c.h.b16 %v817
      %v1626 = vunpack.c.l.b16 %v818
      %v1627 = vunpack.c.h.b16 %v818
      %v1628 = vunpack.c.l.b16 %v819
      %v1629 = vunpack.c.h.b16 %v819
      %v1630 = vunpack.c.l.b16 %v820
      %v1631 = vunpack.c.h.b16 %v820
      %v1632 = vunpack.c.l.b16 %v821
      %v1633 = vunpack.c.h.b16 %v821
      %v1634 = vunpack.c.l.b16 %v822
      %v1635 = vunpack.c.h.b16 %v822
      %v1636 = vunpack.c.l.b16 %v823
      %v1637 = vunpack.c.h.b16 %v823
      %v1638 = vunpack.c.l.b16 %v824
      %v1639 = vunpack.c.h.b16 %v824
      %v1640 = vunpack.c.l.b16 %v825
      %v1641 = vunpack.c.h.b16 %v825
      %v1642 = vunpack.c.l.b16 %v826
      %v1643 = vunpack.c.h.b16 %v826
      %v1644 = vunpack.c.l.b16 %v827
      %v1645 = vunpack.c.h.b16 %v827
      %v1646 = vunpack.c.l.b16 %v828
      %v1647 = vunpack.c.h.b16 %v828
      %v1648 = vunpack.c.l.b16 %v829
      %v1649 = vunpack.c.h.b16 %v829
      %v1650 = vunpack.c.l.b16 %v830
      %v1651 = vunpack.c.h.b16 %v830
      %v1652 = vunpack.c.l.b16 %v831
      %v1653 = vunpack.c.h.b16 %v831
      %v1654 = vunpack.c.l.b16 %v832
      %v1655 = vunpack.c.h.b16 %v832
      %v1656 = vunpack.c.l.b16 %v833
      %v1657 = vunpack.c.h.b16 %v833
      %v1658 = vunpack.c.l.b16 %v834
      %v1659 = vunpack.c.h.b16 %v834
      %v1660 = vunpack.c.l.b16 %v835
      %v1661 = vunpack.c.h.b16 %v835
      %v1662 = vunpack.c.l.b16 %v836
      %v1663 = vunpack.c.h.b16 %v836
      %v1664 = vunpack.c.l.b16 %v837
      %v1665 = vunpack.c.h.b16 %v837
      %v1666 = vunpack.c.l.b16 %v838
      %v1667 = vunpack.c.h.b16 %v838
      %v1668 = vunpack.c.l.b16 %v839
      %v1669 = vunpack.c.h.b16 %v839
      %v1670 = vunpack.c.l.b16 %v840
      %v1671 = vunpack.c.h.b16 %v840
      %v1672 = vunpack.c.l.b16 %v841
      %v1673 = vunpack.c.h.b16 %v841
      %v1674 = vunpack.c.l.b16 %v842
      %v1675 = vunpack.c.h.b16 %v842
      %v1676 = vunpack.c.l.b16 %v843
      %v1677 = vunpack.c.h.b16 %v843
      %v1678 = vunpack.c.l.b16 %v844
      %v1679 = vunpack.c.h.b16 %v844
      %v1680 = vunpack.c.l.b16 %v845
      %v1681 = vunpack.c.h.b16 %v845
      %v1682 = vunpack.c.l.b16 %v846
      %v1683 = vunpack.c.h.b16 %v846
      %v1684 = vunpack.c.l.b16 %v847
      %v1685 = vunpack.c.h.b16 %v847
      %v1686 = vunpack.c.l.b16 %v848
      %v1687 = vunpack.c.h.b16 %v848
      %v1688 = vunpack.c.l.b16 %v849
      %v1689 = vunpack.c.h.b16 %v849
      %v1690 = vunpack.c.l.b16 %v850
      %v1691 = vunpack.c.h.b16 %v850
      %v1692 = vunpack.c.l.b16 %v851
      %v1693 = vunpack.c.h.b16 %v851
      %v1694 = vunpack.c.l.b16 %v852
      %v1695 = vunpack.c.h.b16 %v852
      %v1696 = vunpack.c.l.b16 %v853
      %v1697 = vunpack.c.h.b16 %v853
      %v1698 = vunpack.c.l.b16 %v854
      %v1699 = vunpack.c.h.b16 %v854
      %v1700 = vunpack.c.l.b16 %v855
      %v1701 = vunpack.c.h.b16 %v855
      %v1702 = vunpack.c.l.b16 %v856
      %v1703 = vunpack.c.h.b16 %v856
      %v1704 = vunpack.c.l.b16 %v857
      %v1705 = vunpack.c.h.b16 %v857
      %v1706 = vunpack.c.l.b16 %v858
      %v1707 = vunpack.c.h.b16 %v858
      %v1708 = vunpack.c.l.b16 %v859
      %v1709 = vunpack.c.h.b16 %v859
      %v1710 = vunpack.c.l.b16 %v860
      %v1711 = vunpack.c.h.b16 %v860
      %v1712 = vunpack.c.l.b16 %v861
      %v1713 = vunpack.c.h.b16 %v861
      %v1714 = vunpack.c.l.b16 %v862
      %v1715 = vunpack.c.h.b16 %v862
      %v1716 = vunpack.c.l.b16 %v863
      %v1717 = vunpack.c.h.b16 %v863
      %v1718 = vunpack.c.l.b16 %v864
      %v1719 = vunpack.c.h.b16 %v864
      %v1720 = vunpack.c.l.b16 %v865
      %v1721 = vunpack.c.h.b16 %v865
      %v1722 = vunpack.c.l.b16 %v866
      %v1723 = vunpack.c.h.b16 %v866
      %v1724 = vunpack.c.l.b16 %v867
      %v1725 = vunpack.c.h.b16 %v867
      %v1726 = vunpack.c.l.b16 %v868
      %v1727 = vunpack.c.h.b16 %v868
      %v1728 = vunpack.c.l.b16 %v869
      %v1729 = vunpack.c.h.b16 %v869
      %v1730 = vunpack.c.l.b16 %v870
      %v1731 = vunpack.c.h.b16 %v870
      %v1732 = vunpack.c.l.b16 %v871
      %v1733 = vunpack.c.h.b16 %v871
      %v1734 = vunpack.c.l.b16 %v872
      %v1735 = vunpack.c.h.b16 %v872
      %v1736 = vunpack.c.l.b16 %v873
      %v1737 = vunpack.c.h.b16 %v873
      %v1738 = vunpack.c.l.b16 %v874
      %v1739 = vunpack.c.h.b16 %v874
      %v1740 = vunpack.c.l.b16 %v875
      %v1741 = vunpack.c.h.b16 %v875
      %v1742 = vunpack.c.l.b16 %v876
      %v1743 = vunpack.c.h.b16 %v876
      %v1744 = vunpack.c.l.b16 %v877
      %v1745 = vunpack.c.h.b16 %v877
      %v1746 = vunpack.c.l.b16 %v878
      %v1747 = vunpack.c.h.b16 %v878
      %v1748 = vunpack.c.l.b16 %v879
      %v1749 = vunpack.c.h.b16 %v879
      %v1750 = vunpack.c.l.b16 %v880
      %v1751 = vunpack.c.h.b16 %v880
      %v1752 = vunpack.c.l.b16 %v881
      %v1753 = vunpack.c.h.b16 %v881
      %v1754 = vunpack.c.l.b16 %v882
      %v1755 = vunpack.c.h.b16 %v882
      %v1756 = vunpack.c.l.b16 %v883
      %v1757 = vunpack.c.h.b16 %v883
      %v1758 = vunpack.c.l.b16 %v884
      %v1759 = vunpack.c.h.b16 %v884
      %v1760 = vunpack.c.l.b16 %v885
      %v1761 = vunpack.c.h.b16 %v885
      %v1762 = vunpack.c.l.b16 %v886
      %v1763 = vunpack.c.h.b16 %v886
      %v1764 = vunpack.c.l.b16 %v887
      %v1765 = vunpack.c.h.b16 %v887
      %v1766 = vunpack.c.l.b16 %v888
      %v1767 = vunpack.c.h.b16 %v888
      %v1768 = vunpack.c.l.b16 %v889
      %v1769 = vunpack.c.h.b16 %v889
      %v1770 = vunpack.c.l.b16 %v890
      %v1771 = vunpack.c.h.b16 %v890
      %v1772 = vunpack.c.l.b16 %v891
      %v1773 = vunpack.c.h.b16 %v891
      %v1774 = vunpack.c.l.b16 %v892
      %v1775 = vunpack.c.h.b16 %v892
      %v1776 = vunpack.c.l.b16 %v893
      %v1777 = vunpack.c.h.b16 %v893
      %v1778 = vunpack.c.l.b16 %v894
      %v1779 = vunpack.c.h.b16 %v894
      %v1780 = vunpack.c.l.b16 %v895
      %v1781 = vunpack.c.h.b16 %v895
      %v1782 = vunpack.c.l.b16 %v896
      %v1783 = vunpack.c.h.b16 %v896
      %v1784 = vunpack.c.l.b16 %v897
      %v1785 = vunpack.c.h.b16 %v897
      %v1786 = vunpack.c.l.b16 %v898
      %v1787 = vunpack.c.h.b16 %v898
      %v1788 = vunpack.c.l.b16 %v899
      %v1789 = vunpack.c.h.b16 %v899
      %v1790 = vunpack.c.l.b16 %v900
      %v1791 = vunpack.c.h.b16 %v900
      %v1792 = vunpack.c.l.b16 %v901
      %v1793 = vunpack.c.h.b16 %v901
      %v1794 = vunpack.c.l.b16 %v902
      %v1795 = vunpack.c.h.b16 %v902
      %v1796 = vunpack.c.l.b16 %v903
      %v1797 = vunpack.c.h.b16 %v903
      %v1798 = vunpack.c.l.b16 %v904
      %v1799 = vunpack.c.h.b16 %v904
      %v1800 = vunpack.c.l.b16 %v905
      %v1801 = vunpack.c.h.b16 %v905
      %v1802 = vunpack.c.l.b16 %v906
      %v1803 = vunpack.c.h.b16 %v906
      %v1804 = vunpack.c.l.b16 %v907
      %v1805 = vunpack.c.h.b16 %v907
      %v1806 = vunpack.c.l.b16 %v908
      %v1807 = vunpack.c.h.b16 %v908
      %v1808 = vunpack.c.l.b16 %v909
      %v1809 = vunpack.c.h.b16 %v909
      %v1810 = vunpack.c.l.b16 %v910
      %v1811 = vunpack.c.h.b16 %v910
      %v1812 = vunpack.c.l.b16 %v911
      %v1813 = vunpack.c.h.b16 %v911
      %v1814 = vunpack.c.l.b16 %v912
      %v1815 = vunpack.c.h.b16 %v912
      %v1816 = vunpack.c.l.b16 %v913
      %v1817 = vunpack.c.h.b16 %v913
      %v1818 = vunpack.c.l.b16 %v914
      %v1819 = vunpack.c.h.b16 %v914
      %v1820 = vunpack.c.l.b16 %v915
      %v1821 = vunpack.c.h.b16 %v915
      %v1822 = vunpack.c.l.b16 %v916
      %v1823 = vunpack.c.h.b16 %v916
      %v1824 = vunpack.c.l.b16 %v917
      %v1825 = vunpack.c.h.b16 %v917
      %v1826 = vunpack.c.l.b16 %v918
      %v1827 = vunpack.c.h.b16 %v918
      %v1828 = vunpack.c.l.b16 %v919
      %v1829 = vunpack.c.h.b16 %v919
      %v1830 = vunpack.c.l.b16 %v920
      %v1831 = vunpack.c.h.b16 %v920
      %v1832 = vunpack.c.l.b16 %v921
      %v1833 = vunpack.c.h.b16 %v921
      %v1834 = vunpack.c.l.b16 %v922
      %v1835 = vunpack.c.h.b16 %v922
      %v1836 = vunpack.c.l.b16 %v923
      %v1837 = vunpack.c.h.b16 %v923
      %v1838 = vunpack.c.l.b16 %v924
      %v1839 = vunpack.c.h.b16 %v924
      %v1840 = vunpack.c.l.b16 %v925
      %v1841 = vunpack.c.h.b16 %v925
      %v1842 = vunpack.c.l.b16 %v926
      %v1843 = vunpack.c.h.b16 %v926
      %v1844 = vunpack.c.l.b16 %v927
      %v1845 = vunpack.c.h.b16 %v927
      %v1846 = vunpack.c.l.b16 %v928
      %v1847 = vunpack.c.h.b16 %v928
      %v1848 = vunpack.c.l.b16 %v929
      %v1849 = vunpack.c.h.b16 %v929
      %v1850 = vunpack.c.l.b16 %v930
      %v1851 = vunpack.c.h.b16 %v930
      %v1852 = vunpack.c.l.b16 %v931
      %v1853 = vunpack.c.h.b16 %v931
      %v1854 = vunpack.c.l.b16 %v932
      %v1855 = vunpack.c.h.b16 %v932
      %v1856 = vunpack.c.l.b16 %v933
      %v1857 = vunpack.c.h.b16 %v933
      %v1858 = vunpack.c.l.b16 %v934
      %v1859 = vunpack.c.h.b16 %v934
      %v1860 = vunpack.c.l.b16 %v935
      %v1861 = vunpack.c.h.b16 %v935
      %v1862 = vunpack.c.l.b16 %v936
      %v1863 = vunpack.c.h.b16 %v936
      %v1864 = vunpack.c.l.b16 %v937
      %v1865 = vunpack.c.h.b16 %v937
      %v1866 = vunpack.c.l.b16 %v938
      %v1867 = vunpack.c.h.b16 %v938
      %v1868 = vunpack.c.l.b16 %v939
      %v1869 = vunpack.c.h.b16 %v939
      %v1870 = vunpack.c.l.b16 %v940
      %v1871 = vunpack.c.h.b16 %v940
      %v1872 = vunpack.c.l.b16 %v941
      %v1873 = vunpack.c.h.b16 %v941
      %v1874 = vunpack.c.l.b16 %v942
      %v1875 = vunpack.c.h.b16 %v942
      %v1876 = vunpack.c.l.b16 %v943
      %v1877 = vunpack.c.h.b16 %v943
      %v1878 = vunpack.c.l.b16 %v944
      %v1879 = vunpack.c.h.b16 %v944
      %v1880 = vunpack.c.l.b16 %v945
      %v1881 = vunpack.c.h.b16 %v945
      %v1882 = vunpack.c.l.b16 %v946
      %v1883 = vunpack.c.h.b16 %v946
      %v1884 = vunpack.c.l.b16 %v947
      %v1885 = vunpack.c.h.b16 %v947
      %v1886 = vunpack.c.l.b16 %v948
      %v1887 = vunpack.c.h.b16 %v948
      %v1888 = vunpack.c.l.b16 %v949
      %v1889 = vunpack.c.h.b16 %v949
      %v1890 = vunpack.c.l.b16 %v950
      %v1891 = vunpack.c.h.b16 %v950
      %v1892 = vunpack.c.l.b16 %v951
      %v1893 = vunpack.c.h.b16 %v951
      %v1894 = vunpack.c.l.b16 %v952
      %v1895 = vunpack.c.h.b16 %v952
      %v1896 = vunpack.c.l.b16 %v953
      %v1897 = vunpack.c.h.b16 %v953
      %v1898 = vunpack.c.l.b16 %v954
      %v1899 = vunpack.c.h.b16 %v954
      %v1900 = vunpack.c.l.b16 %v955
      %v1901 = vunpack.c.h.b16 %v955
      %v1902 = vunpack.c.l.b16 %v956
      %v1903 = vunpack.c.h.b16 %v956
      %v1904 = vunpack.c.l.b16 %v957
      %v1905 = vunpack.c.h.b16 %v957
      %v1906 = vunpack.c.l.b16 %v958
      %v1907 = vunpack.c.h.b16 %v958
      %v1908 = vunpack.c.l.b16 %v959
      %v1909 = vunpack.c.h.b16 %v959
      %v1910 = vunpack.c.l.b16 %v960
      %v1911 = vunpack.c.h.b16 %v960
      %v1912 = vunpack.c.l.b16 %v961
      %v1913 = vunpack.c.h.b16 %v961
      %v1914 = vunpack.c.l.b16 %v962
      %v1915 = vunpack.c.h.b16 %v962
      %v1916 = vunpack.c.l.b16 %v963
      %v1917 = vunpack.c.h.b16 %v963
      %v1918 = vunpack.c.l.b16 %v964
      %v1919 = vunpack.c.h.b16 %v964
      %v1920 = vunpack.c.l.b16 %v965
      %v1921 = vunpack.c.h.b16 %v965
      %v1922 = vunpack.c.l.b16 %v966
      %v1923 = vunpack.c.h.b16 %v966
      %v1924 = vunpack.c.l.b16 %v967
      %v1925 = vunpack.c.h.b16 %v967
      %v1926 = vunpack.c.l.b16 %v968
      %v1927 = vunpack.c.h.b16 %v968
      %v1928 = vunpack.c.l.b16 %v969
      %v1929 = vunpack.c.h.b16 %v969
      %v1930 = vunpack.c.l.b16 %v970
      %v1931 = vunpack.c.h.b16 %v970
      %v1932 = vunpack.c.l.b16 %v971
      %v1933 = vunpack.c.h.b16 %v971
      %v1934 = vunpack.c.l.b16 %v972
      %v1935 = vunpack.c.h.b16 %v972
      %v1936 = vunpack.c.l.b16 %v973
      %v1937 = vunpack.c.h.b16 %v973
      %v1938 = vunpack.c.l.b16 %v974
      %v1939 = vunpack.c.h.b16 %v974
      %v1940 = vunpack.c.l.b16 %v975
      %v1941 = vunpack.c.h.b16 %v975
      %v1942 = vunpack.c.l.b16 %v976
      %v1943 = vunpack.c.h.b16 %v976
      %v1944 = vunpack.c.l.b16 %v977
      %v1945 = vunpack.c.h.b16 %v977
      %v1946 = vunpack.c.l.b16 %v978
      %v1947 = vunpack.c.h.b16 %v978
      %v1948 = vunpack.c.l.b16 %v979
      %v1949 = vunpack.c.h.b16 %v979
      %v1950 = vunpack.c.l.b16 %v980
      %v1951 = vunpack.c.h.b16 %v980
      %v1952 = vunpack.c.l.b16 %v981
      %v1953 = vunpack.c.h.b16 %v981
      %v1954 = vunpack.c.l.b16 %v982
      %v1955 = vunpack.c.h.b16 %v982
      %v1956 = vunpack.c.l.b16 %v983
      %v1957 = vunpack.c.h.b16 %v983
      %v1958 = vpack.c.b16 %v1358, %v1318
      %v1959 = vpack.c.b16 %v1359, %v1319
      %v1960 = vpack.c.b16 %v1360, %v1320
      %v1961 = vpack.c.b16 %v1361, %v1321
      %v1962 = vpack.c.b16 %v1362, %v1322
      %v1963 = vpack.c.b16 %v1363, %v1323
      %v1964 = vpack.c.b16 %v1364, %v1324
      %v1965 = vpack.c.b16 %v1365, %v1325
      %v1966 = vpack.c.b16 %v1366, %v1326
      %v1967 = vpack.c.b16 %v1367, %v1327
      %v1968 = vpack.c.b16 %v1368, %v1328
      %v1969 = vpack.c.b16 %v1369, %v1329
      %v1970 = vpack.c.b16 %v1370, %v1330
      %v1971 = vpack.c.b16 %v1371, %v1331
      %v1972 = vpack.c.b16 %v1372, %v1332
      %v1973 = vpack.c.b16 %v1373, %v1333
      %v1974 = vpack.c.b16 %v1374, %v1334
      %v1975 = vpack.c.b16 %v1375, %v1335
      %v1976 = vpack.c.b16 %v1376, %v1336
      %v1977 = vpack.c.b16 %v1377, %v1337
      %v1978 = vpack.c.b16 %v1378, %v1338
      %v1979 = vpack.c.b16 %v1379, %v1339
      %v1980 = vpack.c.b16 %v1380, %v1340
      %v1981 = vpack.c.b16 %v1381, %v1341
      %v1982 = vpack.c.b16 %v1382, %v1342
      %v1983 = vpack.c.b16 %v1383, %v1343
      %v1984 = vpack.c.b16 %v1384, %v1344
      %v1985 = vpack.c.b16 %v1385, %v1345
      %v1986 = vpack.c.b16 %v1386, %v1346
      %v1987 = vpack.c.b16 %v1387, %v1347
      %v1988 = vpack.c.b16 %v1388, %v1348
      %v1989 = vpack.c.b16 %v1389, %v1349
      %v1990 = vpack.c.b16 %v1390, %v1350
      %v1991 = vpack.c.b16 %v1391, %v1351
      %v1992 = vpack.c.b16 %v1392, %v1352
      %v1993 = vpack.c.b16 %v1393, %v1353
      %v1994 = vpack.c.b16 %v1394, %v1354
      %v1995 = vpack.c.b16 %v1395, %v1355
      %v1996 = vpack.c.b16 %v1396, %v1356
      %v1997 = vpack.c.b16 %v1397, %v1357
      %v1998 = vpack.c.b16 %v1438, %v1398
      %v1999 = vpack.c.b16 %v1439, %v1399
      %v2000 = vpack.c.b16 %v1440, %v1400
      %v2001 = vpack.c.b16 %v1441, %v1401
      %v2002 = vpack.c.b16 %v1442, %v1402
      %v2003 = vpack.c.b16 %v1443, %v1403
      %v2004 = vpack.c.b16 %v1444, %v1404
      %v2005 = vpack.c.b16 %v1445, %v1405
      %v2006 = vpack.c.b16 %v1446, %v1406
      %v2007 = vpack.c.b16 %v1447, %v1407
      %v2008 = vpack.c.b16 %v1448, %v1408
      %v2009 = vpack.c.b16 %v1449, %v1409
      %v2010 = vpack.c.b16 %v1450, %v1410
      %v2011 = vpack.c.b16 %v1451, %v1411
      %v2012 = vpack.c.b16 %v1452, %v1412
      %v2013 = vpack.c.b16 %v1453, %v1413
      %v2014 = vpack.c.b16 %v1454, %v1414
      %v2015 = vpack.c.b16 %v1455, %v1415
      %v2016 = vpack.c.b16 %v1456, %v1416
      %v2017 = vpack.c.b16 %v1457, %v1417
      %v2018 = vpack.c.b16 %v1458, %v1418
      %v2019 = vpack.c.b16 %v1459, %v1419
      %v2020 = vpack.c.b16 %v1460, %v1420
      %v2021 = vpack.c.b16 %v1461, %v1421
      %v2022 = vpack.c.b16 %v1462, %v1422
      %v2023 = vpack.c.b16 %v1463, %v1423
      %v2024 = vpack.c.b16 %v1464, %v1424
      %v2025 = vpack.c.b16 %v1465, %v1425
      %v2026 = vpack.c.b16 %v1466, %v1426
      %v2027 = vpack.c.b16 %v1467, %v1427
      %v2028 = vpack.c.b16 %v1468, %v1428
      %v2029 = vpack.c.b16 %v1469, %v1429
      %v2030 = vpack.c.b16 %v1470, %v1430
      %v2031 = vpack.c.b16 %v1471, %v1431
      %v2032 = vpack.c.b16 %v1472, %v1432
      %v2033 = vpack.c.b16 %v1473, %v1433
      %v2034 = vpack.c.b16 %v1474, %v1434
      %v2035 = vpack.c.b16 %v1475, %v1435
      %v2036 = vpack.c.b16 %v1476, %v1436
      %v2037 = vpack.c.b16 %v1477, %v1437
      %v2038 = vpack.c.b16 %v1518, %v1478
      %v2039 = vpack.c.b16 %v1519, %v1479
      %v2040 = vpack.c.b16 %v1520, %v1480
      %v2041 = vpack.c.b16 %v1521, %v1481
      %v2042 = vpack.c.b16 %v1522, %v1482
      %v2043 = vpack.c.b16 %v1523, %v1483
      %v2044 = vpack.c.b16 %v1524, %v1484
      %v2045 = vpack.c.b16 %v1525, %v1485
      %v2046 = vpack.c.b16 %v1526, %v1486
      %v2047 = vpack.c.b16 %v1527, %v1487
      %v2048 = vpack.c.b16 %v1528, %v1488
      %v2049 = vpack.c.b16 %v1529, %v1489
      %v2050 = vpack.c.b16 %v1530, %v1490
      %v2051 = vpack.c.b16 %v1531, %v1491
      %v2052 = vpack.c.b16 %v1532, %v1492
      %v2053 = vpack.c.b16 %v1533, %v1493
      %v2054 = vpack.c.b16 %v1534, %v1494
      %v2055 = vpack.c.b16 %v1535, %v1495
      %v2056 = vpack.c.b16 %v1536, %v1496
      %v2057 = vpack.c.b16 %v1537, %v1497
      %v2058 = vpack.c.b16 %v1538, %v1498
      %v2059 = vpack.c.b16 %v1539, %v1499
      %v2060 = vpack.c.b16 %v1540, %v1500
      %v2061 = vpack.c.b16 %v1541, %v1501
      %v2062 = vpack.c.b16 %v1542, %v1502
      %v2063 = vpack.c.b16 %v1543, %v1503
      %v2064 = vpack.c.b16 %v1544, %v1504
      %v2065 = vpack.c.b16 %v1545, %v1505
      %v2066 = vpack.c.b16 %v1546, %v1506
      %v2067 = vpack.c.b16 %v1547, %v1507
      %v2068 = vpack.c.b16 %v1548, %v1508
      %v2069 = vpack.c.b16 %v1549, %v1509
      %v2070 = vpack.c.b16 %v1550, %v1510
      %v2071 = vpack.c.b16 %v1551, %v1511
      %v2072 = vpack.c.b16 %v1552, %v1512
      %v2073 = vpack.c.b16 %v1553, %v1513
      %v2074 = vpack.c.b16 %v1554, %v1514
      %v2075 = vpack.c.b16 %v1555, %v1515
      %v2076 = vpack.c.b16 %v1556, %v1516
      %v2077 = vpack.c.b16 %v1557, %v1517
      %v2078 = vpack.c.b16 %v1598, %v1558
      %v2079 = vpack.c.b16 %v1599, %v1559
      %v2080 = vpack.c.b16 %v1600, %v1560
      %v2081 = vpack.c.b16 %v1601, %v1561
      %v2082 = vpack.c.b16 %v1602, %v1562
      %v2083 = vpack.c.b16 %v1603, %v1563
      %v2084 = vpack.c.b16 %v1604, %v1564
      %v2085 = vpack.c.b16 %v1605, %v1565
      %v2086 = vpack.c.b16 %v1606, %v1566
      %v2087 = vpack.c.b16 %v1607, %v1567
      %v2088 = vpack.c.b16 %v1608, %v1568
      %v2089 = vpack.c.b16 %v1609, %v1569
      %v2090 = vpack.c.b16 %v1610, %v1570
      %v2091 = vpack.c.b16 %v1611, %v1571
      %v2092 = vpack.c.b16 %v1612, %v1572
      %v2093 = vpack.c.b16 %v1613, %v1573
      %v2094 = vpack.c.b16 %v1614, %v1574
      %v2095 = vpack.c.b16 %v1615, %v1575
      %v2096 = vpack.c.b16 %v1616, %v1576
      %v2097 = vpack.c.b16 %v1617, %v1577
      %v2098 = vpack.c.b16 %v1618, %v1578
      %v2099 = vpack.c.b16 %v1619, %v1579
      %v2100 = vpack.c.b16 %v1620, %v1580
      %v2101 = vpack.c.b16 %v1621, %v1581
      %v2102 = vpack.c.b16 %v1622, %v1582
      %v2103 = vpack.c.b16 %v1623, %v1583
      %v2104 = vpack.c.b16 %v1624, %v1584
      %v2105 = vpack.c.b16 %v1625, %v1585
      %v2106 = vpack.c.b16 %v1626, %v1586
      %v2107 = vpack.c.b16 %v1627, %v1587
      %v2108 = vpack.c.b16 %v1628, %v1588
      %v2109 = vpack.c.b16 %v1629, %v1589
      %v2110 = vpack.c.b16 %v1630, %v1590
      %v2111 = vpack.c.b16 %v1631, %v1591
      %v2112 = vpack.c.b16 %v1632, %v1592
      %v2113 = vpack.c.b16 %v1633, %v1593
      %v2114 = vpack.c.b16 %v1634, %v1594
      %v2115 = vpack.c.b16 %v1635, %v1595
      %v2116 = vpack.c.b16 %v1636, %v1596
      %v2117 = vpack.c.b16 %v1637, %v1597
      %v2118 = vpack.c.b16 %v1678, %v1638
      %v2119 = vpack.c.b16 %v1679, %v1639
      %v2120 = vpack.c.b16 %v1680, %v1640
      %v2121 = vpack.c.b16 %v1681, %v1641
      %v2122 = vpack.c.b16 %v1682, %v1642
      %v2123 = vpack.c.b16 %v1683, %v1643
      %v2124 = vpack.c.b16 %v1684, %v1644
      %v2125 = vpack.c.b16 %v1685, %v1645
      %v2126 = vpack.c.b16 %v1686, %v1646
      %v2127 = vpack.c.b16 %v1687, %v1647
      %v2128 = vpack.c.b16 %v1688, %v1648
      %v2129 = vpack.c.b16 %v1689, %v1649
      %v2130 = vpack.c.b16 %v1690, %v1650
      %v2131 = vpack.c.b16 %v1691, %v1651
      %v2132 = vpack.c.b16 %v1692, %v1652
      %v2133 = vpack.c.b16 %v1693, %v1653
      %v2134 = vpack.c.b16 %v1694, %v1654
      %v2135 = vpack.c.b16 %v1695, %v1655
      %v2136 = vpack.c.b16 %v1696, %v1656
      %v2137 = vpack.c.b16 %v1697, %v1657
      %v2138 = vpack.c.b16 %v1698, %v1658
      %v2139 = vpack.c.b16 %v1699, %v1659
      %v2140 = vpack.c.b16 %v1700, %v1660
      %v2141 = vpack.c.b16 %v1701, %v1661
      %v2142 = vpack.c.b16 %v1702, %v1662
      %v2143 = vpack.c.b16 %v1703, %v1663
      %v2144 = vpack.c.b16 %v1704, %v1664
      %v2145 = vpack.c.b16 %v1705, %v1665
      %v2146 = vpack.c.b16 %v1706, %v1666
      %v2147 = vpack.c.b16 %v1707, %v1667
      %v2148 = vpack.c.b16 %v1708, %v1668
      %v2149 = vpack.c.b16 %v1709, %v1669
      %v2150 = vpack.c.b16 %v1710, %v1670
      %v2151 = vpack.c.b16 %v1711, %v1671
      %v2152 = vpack.c.b16 %v1712, %v1672
      %v2153 = vpack.c.b16 %v1713, %v1673
      %v2154 = vpack.c.b16 %v1714, %v1674
      %v2155 = vpack.c.b16 %v1715, %v1675
      %v2156 = vpack.c.b16 %v1716, %v1676
      %v2157 = vpack.c.b16 %v1717, %v1677
      %v2158 = vpack.c.b16 %v1758, %v1718
      %v2159 = vpack.c.b16 %v1759, %v1719
      %v2160 = vpack.c.b16 %v1760, %v1720
      %v2161 = vpack.c.b16 %v1761, %v1721
      %v2162 = vpack.c.b16 %v1762, %v1722
      %v2163 = vpack.c.b16 %v1763, %v1723
      %v2164 = vpack.c.b16 %v1764, %v1724
      %v2165 = vpack.c.b16 %v1765, %v1725
      %v2166 = vpack.c.b16 %v1766, %v1726
      %v2167 = vpack.c.b16 %v1767, %v1727
      %v2168 = vpack.c.b16 %v1768, %v1728
      %v2169 = vpack.c.b16 %v1769, %v1729
      %v2170 = vpack.c.b16 %v1770, %v1730
      %v2171 = vpack.c.b16 %v1771, %v1731
      %v2172 = vpack.c.b16 %v1772, %v1732
      %v2173 = vpack.c.b16 %v1773, %v1733
      %v2174 = vpack.c.b16 %v1774, %v1734
      %v2175 = vpack.c.b16 %v1775, %v1735
      %v2176 = vpack.c.b16 %v1776, %v1736
      %v2177 = vpack.c.b16 %v1777, %v1737
      %v2178 = vpack.c.b16 %v1778, %v1738
      %v2179 = vpack.c.b16 %v1779, %v1739
      %v2180 = vpack.c.b16 %v1780, %v1740
      %v2181 = vpack.c.b16 %v1781, %v1741
      %v2182 = vpack.c.b16 %v1782, %v1742
      %v2183 = vpack.c.b16 %v1783, %v1743
      %v2184 = vpack.c.b16 %v1784, %v1744
      %v2185 = vpack.c.b16 %v1785, %v1745
      %v2186 = vpack.c.b16 %v1786, %v1746
      %v2187 = vpack.c.b16 %v1787, %v1747
      %v2188 = vpack.c.b16 %v1788, %v1748
      %v2189 = vpack.c.b16 %v1789, %v1749
      %v2190 = vpack.c.b16 %v1790, %v1750
      %v2191 = vpack.c.b16 %v1791, %v1751
      %v2192 = vpack.c.b16 %v1792, %v1752
      %v2193 = vpack.c.b16 %v1793, %v1753
      %v2194 = vpack.c.b16 %v1794, %v1754
      %v2195 = vpack.c.b16 %v1795, %v1755
      %v2196 = vpack.c.b16 %v1796, %v1756
      %v2197 = vpack.c.b16 %v1797, %v1757
      %v2198 = vpack.c.b16 %v1838, %v1798
      %v2199 = vpack.c.b16 %v1839, %v1799
      %v2200 = vpack.c.b16 %v1840, %v1800
      %v2201 = vpack.c.b16 %v1841, %v1801
      %v2202 = vpack.c.b16 %v1842, %v1802
      %v2203 = vpack.c.b16 %v1843, %v1803
      %v2204 = vpack.c.b16 %v1844, %v1804
      %v2205 = vpack.c.b16 %v1845, %v1805
      %v2206 = vpack.c.b16 %v1846, %v1806
      %v2207 = vpack.c.b16 %v1847, %v1807
      %v2208 = vpack.c.b16 %v1848, %v1808
      %v2209 = vpack.c.b16 %v1849, %v1809
      %v2210 = vpack.c.b16 %v1850, %v1810
      %v2211 = vpack.c.b16 %v1851, %v1811
      %v2212 = vpack.c.b16 %v1852, %v1812
      %v2213 = vpack.c.b16 %v1853, %v1813
      %v2214 = vpack.c.b16 %v1854, %v1814
      %v2215 = vpack.c.b16 %v1855, %v1815
      %v2216 = vpack.c.b16 %v1856, %v1816
      %v2217 = vpack.c.b16 %v1857, %v1817
      %v2218 = vpack.c.b16 %v1858, %v1818
      %v2219 = vpack.c.b16 %v1859, %v1819
      %v2220 = vpack.c.b16 %v1860, %v1820
      %v2221 = vpack.c.b16 %v1861, %v1821
      %v2222 = vpack.c.b16 %v1862, %v1822
      %v2223 = vpack.c.b16 %v1863, %v1823
      %v2224 = vpack.c.b16 %v1864, %v1824
      %v2225 = vpack.c.b16 %v1865, %v1825
      %v2226 = vpack.c.b16 %v1866, %v1826
      %v2227 = vpack.c.b16 %v1867, %v1827
      %v2228 = vpack.c.b16 %v1868, %v1828
      %v2229 = vpack.c.b16 %v1869, %v1829
      %v2230 = vpack.c.b16 %v1870, %v1830
      %v2231 = vpack.c.b16 %v1871, %v1831
      %v2232 = vpack.c.b16 %v1872, %v1832
      %v2233 = vpack.c.b16 %v1873, %v1833
      %v2234 = vpack.c.b16 %v1874, %v1834
      %v2235 = vpack.c.b16 %v1875, %v1835
      %v2236 = vpack.c.b16 %v1876, %v1836
      %v2237 = vpack.c.b16 %v1877, %v1837
      %v2238 = vpack.c.b16 %v1918, %v1878
      %v2239 = vpack.c.b16 %v1919, %v1879
      %v2240 = vpack.c.b16 %v1920, %v1880
      %v2241 = vpack.c.b16 %v1921, %v1881
      %v2242 = vpack.c.b16 %v1922, %v1882
      %v2243 = vpack.c.b16 %v1923, %v1883
      %v2244 = vpack.c.b16 %v1924, %v1884
      %v2245 = vpack.c.b16 %v1925, %v1885
      %v2246 = vpack.c.b16 %v1926, %v1886
      %v2247 = vpack.c.b16 %v1927, %v1887
      %v2248 = vpack.c.b16 %v1928, %v1888
      %v2249 = vpack.c.b16 %v1929, %v1889
      %v2250 = vpack.c.b16 %v1930, %v1890
      %v2251 = vpack.c.b16 %v1931, %v1891
      %v2252 = vpack.c.b16 %v1932, %v1892
      %v2253 = vpack.c.b16 %v1933, %v1893
      %v2254 = vpack.c.b16 %v1934, %v1894
      %v2255 = vpack.c.b16 %v1935, %v1895
      %v2256 = vpack.c.b16 %v1936, %v1896
      %v2257 = vpack.c.b16 %v1937, %v1897
      %v2258 = vpack.c.b16 %v1938, %v1898
      %v2259 = vpack.c.b16 %v1939, %v1899
      %v2260 = vpack.c.b16 %v1940, %v1900
      %v2261 = vpack.c.b16 %v1941, %v1901
      %v2262 = vpack.c.b16 %v1942, %v1902
      %v2263 = vpack.c.b16 %v1943, %v1903
      %v2264 = vpack.c.b16 %v1944, %v1904
      %v2265 = vpack.c.b16 %v1945, %v1905
      %v2266 = vpack.c.b16 %v1946, %v1906
      %v2267 = vpack.c.b16 %v1947, %v1907
      %v2268 = vpack.c.b16 %v1948, %v1908
      %v2269 = vpack.c.b16 %v1949, %v1909
      %v2270 = vpack.c.b16 %v1950, %v1910
      %v2271 = vpack.c.b16 %v1951, %v1911
      %v2272 = vpack.c.b16 %v1952, %v1912
      %v2273 = vpack.c.b16 %v1953, %v1913
      %v2274 = vpack.c.b16 %v1954, %v1914
      %v2275 = vpack.c.b16 %v1955, %v1915
      %v2276 = vpack.c.b16 %v1956, %v1916
      %v2277 = vpack.c.b16 %v1957, %v1917
      %2591 = vst [vmem:[#allocation1] ss:$4 sm:$0xff] %v984
      %s2593 = scalar_lea.vmem [#allocation1], 32
      %2594 = vst [vmem:[%s2593] ss:$4 sm:$0xff] %v985
      %v2595 = vld.sshfl [vmem:[#allocation1] sm:$0xff pattern:$0x73625140]
      %v2596 = vld.sshfl [vmem:[#allocation1 + $0x8] sm:$0xff pattern:$0x73625140]
      %v2597 = vld.sshfl [vmem:[#allocation1 + $0x10] sm:$0xff pattern:$0x73625140]
      %v2598 = vld.sshfl [vmem:[#allocation1 + $0x18] sm:$0xff pattern:$0x73625140]
      %v2599 = vld.sshfl [vmem:[#allocation1 + $0x20] sm:$0xff pattern:$0x73625140]
      %v2600 = vld.sshfl [vmem:[#allocation1 + $0x28] sm:$0xff pattern:$0x73625140]
      %v2601 = vld.sshfl [vmem:[#allocation1 + $0x30] sm:$0xff pattern:$0x73625140]
      %v2602 = vld.sshfl [vmem:[#allocation1 + $0x38] sm:$0xff pattern:$0x73625140]
      %2604 = vst [vmem:[#allocation1] ss:$4 sm:$0xff] %v986
      %2606 = vst [vmem:[%s2593] ss:$4 sm:$0xff] %v987
      %v2607 = vld.sshfl [vmem:[#allocation1] sm:$0xff pattern:$0x73625140]
      %v2608 = vld.sshfl [vmem:[#allocation1 + $0x8] sm:$0xff pattern:$0x73625140]
      %v2609 = vld.sshfl [vmem:[#allocation1 + $0x10] sm:$0xff pattern:$0x73625140]
      %v2610 = vld.sshfl [vmem:[#allocation1 + $0x18] sm:$0xff pattern:$0x73625140]
      %v2611 = vld.sshfl [vmem:[#allocation1 + $0x20] sm:$0xff pattern:$0x73625140]
      %v2612 = vld.sshfl [vmem:[#allocation1 + $0x28] sm:$0xff pattern:$0x73625140]
      %v2613 = vld.sshfl [vmem:[#allocation1 + $0x30] sm:$0xff pattern:$0x73625140]
      %v2614 = vld.sshfl [vmem:[#allocation1 + $0x38] sm:$0xff pattern:$0x73625140]
      %2616 = vst [vmem:[#allocation1] ss:$4 sm:$0xff] %v988
      %2618 = vst [vmem:[%s2593] ss:$4 sm:$0xff] %v989
      %v2619 = vld.sshfl [vmem:[#allocation1] sm:$0xff pattern:$0x73625140]
      %v2620 = vld.sshfl [vmem:[#allocation1 + $0x8] sm:$0xff pattern:$0x73625140]
      %v2621 = vld.sshfl [vmem:[#allocation1 + $0x10] sm:$0xff pattern:$0x73625140]
      %v2622 = vld.sshfl [vmem:[#allocation1 + $0x18] sm:$0xff pattern:$0x73625140]
      %v2623 = vld.sshfl [vmem:[#allocation1 + $0x20] sm:$0xff pattern:$0x73625140]
      %v2624 = vld.sshfl [vmem:[#allocation1 + $0x28] sm:$0xff pattern:$0x73625140]
      %v2625 = vld.sshfl [vmem:[#allocation1 + $0x30] sm:$0xff pattern:$0x73625140]
      %v2626 = vld.sshfl [vmem:[#allocation1 + $0x38] sm:$0xff pattern:$0x73625140]
      %2628 = vst [vmem:[#allocation1] ss:$4 sm:$0xff] %v990
      %2630 = vst [vmem:[%s2593] ss:$4 sm:$0xff] %v991
      %v2631 = vld.sshfl [vmem:[#allocation1] sm:$0xff pattern:$0x73625140]
      %v2632 = vld.sshfl [vmem:[#allocation1 + $0x8] sm:$0xff pattern:$0x73625140]
      %v2633 = vld.sshfl [vmem:[#allocation1 + $0x10] sm:$0xff pattern:$0x73625140]
      %v2634 = vld.sshfl [vmem:[#allocation1 + $0x18] sm:$0xff pattern:$0x73625140]
      %v2635 = vld.sshfl [vmem:[#allocation1 + $0x20] sm:$0xff pattern:$0x73625140]
      %v2636 = vld.sshfl [vmem:[#allocation1 + $0x28] sm:$0xff pattern:$0x73625140]
      %v2637 = vld.sshfl [vmem:[#allocation1 + $0x30] sm:$0xff pattern:$0x73625140]
      %v2638 = vld.sshfl [vmem:[#allocation1 + $0x38] sm:$0xff pattern:$0x73625140]
      %2640 = vst [vmem:[#allocation1] ss:$4 sm:$0xff] %v992
      %2642 = vst [vmem:[%s2593] ss:$4 sm:$0xff] %v993
      %v2643 = vld.sshfl [vmem:[#allocation1] sm:$0xff pattern:$0x73625140]
      %v2644 = vld.sshfl [vmem:[#allocation1 + $0x8] sm:$0xff pattern:$0x73625140]
      %v2645 = vld.sshfl [vmem:[#allocation1 + $0x10] sm:$0xff pattern:$0x73625140]
      %v2646 = vld.sshfl [vmem:[#allocation1 + $0x18] sm:$0xff pattern:$0x73625140]
      %v2647 = vld.sshfl [vmem:[#allocation1 + $0x20] sm:$0xff pattern:$0x73625140]
      %v2648 = vld.sshfl [vmem:[#allocation1 + $0x28] sm:$0xff pattern:$0x73625140]
      %v2649 = vld.sshfl [vmem:[#allocation1 + $0x30] sm:$0xff pattern:$0x73625140]
      %v2650 = vld.sshfl [vmem:[#allocation1 + $0x38] sm:$0xff pattern:$0x73625140]
      %vm2690 = vcmask 64512
      %v2692 = vsel %vm2690, %v1997, 0
      %v2695 = vsel %vm2690, %v2037, 0
      %v2698 = vsel %vm2690, %v2077, 0
      %v2701 = vsel %vm2690, %v2117, 0
      %v2704 = vsel %vm2690, %v2157, 0
      %v2707 = vsel %vm2690, %v2197, 0
      %v2710 = vsel %vm2690, %v2237, 0
      %v2713 = vsel %vm2690, %v2277, 0
      %v2715 = vsel %vm2690, %v2650, 0
      %2717 = vmatpush.bf16.xpose.msra.mxu0 0
      %2718 = vmatpush.bf16.xpose.msra.mxu0 0
      %2719 = vmatpush.bf16.xpose.msra.mxu0 0
      %2720 = vmatpush.bf16.xpose.msra.mxu0 0
      %2721 = vmatpush.bf16.xpose.msra.mxu0 0
      %2722 = vmatpush.bf16.xpose.msra.mxu0 0
      %2723 = vmatpush.bf16.xpose.msra.mxu0 0
      %2724 = vmatpush.bf16.xpose.msra.mxu0 %v2595
      %2725 = vmatmul.bf16.gmra.mxu0 %v1958
      %v2726 = vpop.f32.mrf.mxu0
      %v2727 = vadd.f32 %v996, %v2726
      %v2728 = vpop.f32.mrf.mxu0
      %v2729 = vadd.f32 %v996, %v2728
      %2730 = vmatmul.bf16.gmra.mxu0 %v1998
      %v2731 = vpop.f32.mrf.mxu0
      %v2732 = vadd.f32 %v996, %v2731
      %v2733 = vpop.f32.mrf.mxu0
      %v2734 = vadd.f32 %v996, %v2733
      %2735 = vmatmul.bf16.gmra.mxu0 %v2038
      %v2736 = vpop.f32.mrf.mxu0
      %v2737 = vadd.f32 %v996, %v2736
      %v2738 = vpop.f32.mrf.mxu0
      %v2739 = vadd.f32 %v996, %v2738
      %2740 = vmatmul.bf16.gmra.mxu0 %v2078
      %v2741 = vpop.f32.mrf.mxu0
      %v2742 = vadd.f32 %v996, %v2741
      %v2743 = vpop.f32.mrf.mxu0
      %v2744 = vadd.f32 %v996, %v2743
      %2745 = vmatmul.bf16.gmra.mxu0 %v2118
      %v2746 = vpop.f32.mrf.mxu0
      %v2747 = vadd.f32 %v996, %v2746
      %v2748 = vpop.f32.mrf.mxu0
      %v2749 = vadd.f32 %v996, %v2748
      %2750 = vmatmul.bf16.gmra.mxu0 %v2158
      %v2751 = vpop.f32.mrf.mxu0
      %v2752 = vadd.f32 %v996, %v2751
      %v2753 = vpop.f32.mrf.mxu0
      %v2754 = vadd.f32 %v996, %v2753
      %2755 = vmatmul.bf16.gmra.mxu0 %v2198
      %v2756 = vpop.f32.mrf.mxu0
      %v2757 = vadd.f32 %v996, %v2756
      %v2758 = vpop.f32.mrf.mxu0
      %v2759 = vadd.f32 %v996, %v2758
      %2760 = vmatmul.bf16.gmra.mxu0 %v2238
      %v2761 = vpop.f32.mrf.mxu0
      %v2762 = vadd.f32 %v996, %v2761
      %v2763 = vpop.f32.mrf.mxu0
      %v2764 = vadd.f32 %v996, %v2763
      %2765 = vdwg.mxu0
      %2766 = vmatpush.bf16.xpose.msra.mxu0 0
      %2767 = vmatpush.bf16.xpose.msra.mxu0 0
      %2768 = vmatpush.bf16.xpose.msra.mxu0 0
      %2769 = vmatpush.bf16.xpose.msra.mxu0 0
      %2770 = vmatpush.bf16.xpose.msra.mxu0 0
      %2771 = vmatpush.bf16.xpose.msra.mxu0 0
      %2772 = vmatpush.bf16.xpose.msra.mxu0 0
      %2773 = vmatpush.bf16.xpose.msra.mxu0 %v2596
      %2774 = vmatmul.bf16.gmra.mxu0 %v1959
      %v2775 = vpop.f32.mrf.mxu0
      %v2776 = vadd.f32 %v2727, %v2775
      %v2777 = vpop.f32.mrf.mxu0
      %v2778 = vadd.f32 %v2729, %v2777
      %2779 = vmatmul.bf16.gmra.mxu0 %v1999
      %v2780 = vpop.f32.mrf.mxu0
      %v2781 = vadd.f32 %v2732, %v2780
      %v2782 = vpop.f32.mrf.mxu0
      %v2783 = vadd.f32 %v2734, %v2782
      %2784 = vmatmul.bf16.gmra.mxu0 %v2039
      %v2785 = vpop.f32.mrf.mxu0
      %v2786 = vadd.f32 %v2737, %v2785
      %v2787 = vpop.f32.mrf.mxu0
      %v2788 = vadd.f32 %v2739, %v2787
      %2789 = vmatmul.bf16.gmra.mxu0 %v2079
      %v2790 = vpop.f32.mrf.mxu0
      %v2791 = vadd.f32 %v2742, %v2790
      %v2792 = vpop.f32.mrf.mxu0
      %v2793 = vadd.f32 %v2744, %v2792
      %2794 = vmatmul.bf16.gmra.mxu0 %v2119
      %v2795 = vpop.f32.mrf.mxu0
      %v2796 = vadd.f32 %v2747, %v2795
      %v2797 = vpop.f32.mrf.mxu0
      %v2798 = vadd.f32 %v2749, %v2797
      %2799 = vmatmul.bf16.gmra.mxu0 %v2159
      %v2800 = vpop.f32.mrf.mxu0
      %v2801 = vadd.f32 %v2752, %v2800
      %v2802 = vpop.f32.mrf.mxu0
      %v2803 = vadd.f32 %v2754, %v2802
      %2804 = vmatmul.bf16.gmra.mxu0 %v2199
      %v2805 = vpop.f32.mrf.mxu0
      %v2806 = vadd.f32 %v2757, %v2805
      %v2807 = vpop.f32.mrf.mxu0
      %v2808 = vadd.f32 %v2759, %v2807
      %2809 = vmatmul.bf16.gmra.mxu0 %v2239
      %v2810 = vpop.f32.mrf.mxu0
      %v2811 = vadd.f32 %v2762, %v2810
      %v2812 = vpop.f32.mrf.mxu0
      %v2813 = vadd.f32 %v2764, %v2812
      %2814 = vdwg.mxu0
      %2815 = vmatpush.bf16.xpose.msra.mxu0 0
      %2816 = vmatpush.bf16.xpose.msra.mxu0 0
      %2817 = vmatpush.bf16.xpose.msra.mxu0 0
      %2818 = vmatpush.bf16.xpose.msra.mxu0 0
      %2819 = vmatpush.bf16.xpose.msra.mxu0 0
      %2820 = vmatpush.bf16.xpose.msra.mxu0 0
      %2821 = vmatpush.bf16.xpose.msra.mxu0 0
      %2822 = vmatpush.bf16.xpose.msra.mxu0 %v2597
      %2823 = vmatmul.bf16.gmra.mxu0 %v1960
      %v2824 = vpop.f32.mrf.mxu0
      %v2825 = vadd.f32 %v2776, %v2824
      %v2826 = vpop.f32.mrf.mxu0
      %v2827 = vadd.f32 %v2778, %v2826
      %2828 = vmatmul.bf16.gmra.mxu0 %v2000
      %v2829 = vpop.f32.mrf.mxu0
      %v2830 = vadd.f32 %v2781, %v2829
      %v2831 = vpop.f32.mrf.mxu0
      %v2832 = vadd.f32 %v2783, %v2831
      %2833 = vmatmul.bf16.gmra.mxu0 %v2040
      %v2834 = vpop.f32.mrf.mxu0
      %v2835 = vadd.f32 %v2786, %v2834
      %v2836 = vpop.f32.mrf.mxu0
      %v2837 = vadd.f32 %v2788, %v2836
      %2838 = vmatmul.bf16.gmra.mxu0 %v2080
      %v2839 = vpop.f32.mrf.mxu0
      %v2840 = vadd.f32 %v2791, %v2839
      %v2841 = vpop.f32.mrf.mxu0
      %v2842 = vadd.f32 %v2793, %v2841
      %2843 = vmatmul.bf16.gmra.mxu0 %v2120
      %v2844 = vpop.f32.mrf.mxu0
      %v2845 = vadd.f32 %v2796, %v2844
      %v2846 = vpop.f32.mrf.mxu0
      %v2847 = vadd.f32 %v2798, %v2846
      %2848 = vmatmul.bf16.gmra.mxu0 %v2160
      %v2849 = vpop.f32.mrf.mxu0
      %v2850 = vadd.f32 %v2801, %v2849
      %v2851 = vpop.f32.mrf.mxu0
      %v2852 = vadd.f32 %v2803, %v2851
      %2853 = vmatmul.bf16.gmra.mxu0 %v2200
      %v2854 = vpop.f32.mrf.mxu0
      %v2855 = vadd.f32 %v2806, %v2854
      %v2856 = vpop.f32.mrf.mxu0
      %v2857 = vadd.f32 %v2808, %v2856
      %2858 = vmatmul.bf16.gmra.mxu0 %v2240
      %v2859 = vpop.f32.mrf.mxu0
      %v2860 = vadd.f32 %v2811, %v2859
      %v2861 = vpop.f32.mrf.mxu0
      %v2862 = vadd.f32 %v2813, %v2861
      %2863 = vdwg.mxu0
      %2864 = vmatpush.bf16.xpose.msra.mxu0 0
      %2865 = vmatpush.bf16.xpose.msra.mxu0 0
      %2866 = vmatpush.bf16.xpose.msra.mxu0 0
      %2867 = vmatpush.bf16.xpose.msra.mxu0 0
      %2868 = vmatpush.bf16.xpose.msra.mxu0 0
      %2869 = vmatpush.bf16.xpose.msra.mxu0 0
      %2870 = vmatpush.bf16.xpose.msra.mxu0 0
      %2871 = vmatpush.bf16.xpose.msra.mxu0 %v2598
      %2872 = vmatmul.bf16.gmra.mxu0 %v1961
      %v2873 = vpop.f32.mrf.mxu0
      %v2874 = vadd.f32 %v2825, %v2873
      %v2875 = vpop.f32.mrf.mxu0
      %v2876 = vadd.f32 %v2827, %v2875
      %2877 = vmatmul.bf16.gmra.mxu0 %v2001
      %v2878 = vpop.f32.mrf.mxu0
      %v2879 = vadd.f32 %v2830, %v2878
      %v2880 = vpop.f32.mrf.mxu0
      %v2881 = vadd.f32 %v2832, %v2880
      %2882 = vmatmul.bf16.gmra.mxu0 %v2041
      %v2883 = vpop.f32.mrf.mxu0
      %v2884 = vadd.f32 %v2835, %v2883
      %v2885 = vpop.f32.mrf.mxu0
      %v2886 = vadd.f32 %v2837, %v2885
      %2887 = vmatmul.bf16.gmra.mxu0 %v2081
      %v2888 = vpop.f32.mrf.mxu0
      %v2889 = vadd.f32 %v2840, %v2888
      %v2890 = vpop.f32.mrf.mxu0
      %v2891 = vadd.f32 %v2842, %v2890
      %2892 = vmatmul.bf16.gmra.mxu0 %v2121
      %v2893 = vpop.f32.mrf.mxu0
      %v2894 = vadd.f32 %v2845, %v2893
      %v2895 = vpop.f32.mrf.mxu0
      %v2896 = vadd.f32 %v2847, %v2895
      %2897 = vmatmul.bf16.gmra.mxu0 %v2161
      %v2898 = vpop.f32.mrf.mxu0
      %v2899 = vadd.f32 %v2850, %v2898
      %v2900 = vpop.f32.mrf.mxu0
      %v2901 = vadd.f32 %v2852, %v2900
      %2902 = vmatmul.bf16.gmra.mxu0 %v2201
      %v2903 = vpop.f32.mrf.mxu0
      %v2904 = vadd.f32 %v2855, %v2903
      %v2905 = vpop.f32.mrf.mxu0
      %v2906 = vadd.f32 %v2857, %v2905
      %2907 = vmatmul.bf16.gmra.mxu0 %v2241
      %v2908 = vpop.f32.mrf.mxu0
      %v2909 = vadd.f32 %v2860, %v2908
      %v2910 = vpop.f32.mrf.mxu0
      %v2911 = vadd.f32 %v2862, %v2910
      %2912 = vdwg.mxu0
      %2913 = vmatpush.bf16.xpose.msra.mxu0 0
      %2914 = vmatpush.bf16.xpose.msra.mxu0 0
      %2915 = vmatpush.bf16.xpose.msra.mxu0 0
      %2916 = vmatpush.bf16.xpose.msra.mxu0 0
      %2917 = vmatpush.bf16.xpose.msra.mxu0 0
      %2918 = vmatpush.bf16.xpose.msra.mxu0 0
      %2919 = vmatpush.bf16.xpose.msra.mxu0 0
      %2920 = vmatpush.bf16.xpose.msra.mxu0 %v2599
      %2921 = vmatmul.bf16.gmra.mxu0 %v1962
      %v2922 = vpop.f32.mrf.mxu0
      %v2923 = vadd.f32 %v2874, %v2922
      %v2924 = vpop.f32.mrf.mxu0
      %v2925 = vadd.f32 %v2876, %v2924
      %2926 = vmatmul.bf16.gmra.mxu0 %v2002
      %v2927 = vpop.f32.mrf.mxu0
      %v2928 = vadd.f32 %v2879, %v2927
      %v2929 = vpop.f32.mrf.mxu0
      %v2930 = vadd.f32 %v2881, %v2929
      %2931 = vmatmul.bf16.gmra.mxu0 %v2042
      %v2932 = vpop.f32.mrf.mxu0
      %v2933 = vadd.f32 %v2884, %v2932
      %v2934 = vpop.f32.mrf.mxu0
      %v2935 = vadd.f32 %v2886, %v2934
      %2936 = vmatmul.bf16.gmra.mxu0 %v2082
      %v2937 = vpop.f32.mrf.mxu0
      %v2938 = vadd.f32 %v2889, %v2937
      %v2939 = vpop.f32.mrf.mxu0
      %v2940 = vadd.f32 %v2891, %v2939
      %2941 = vmatmul.bf16.gmra.mxu0 %v2122
      %v2942 = vpop.f32.mrf.mxu0
      %v2943 = vadd.f32 %v2894, %v2942
      %v2944 = vpop.f32.mrf.mxu0
      %v2945 = vadd.f32 %v2896, %v2944
      %2946 = vmatmul.bf16.gmra.mxu0 %v2162
      %v2947 = vpop.f32.mrf.mxu0
      %v2948 = vadd.f32 %v2899, %v2947
      %v2949 = vpop.f32.mrf.mxu0
      %v2950 = vadd.f32 %v2901, %v2949
      %2951 = vmatmul.bf16.gmra.mxu0 %v2202
      %v2952 = vpop.f32.mrf.mxu0
      %v2953 = vadd.f32 %v2904, %v2952
      %v2954 = vpop.f32.mrf.mxu0
      %v2955 = vadd.f32 %v2906, %v2954
      %2956 = vmatmul.bf16.gmra.mxu0 %v2242
      %v2957 = vpop.f32.mrf.mxu0
      %v2958 = vadd.f32 %v2909, %v2957
      %v2959 = vpop.f32.mrf.mxu0
      %v2960 = vadd.f32 %v2911, %v2959
      %2961 = vdwg.mxu0
      %2962 = vmatpush.bf16.xpose.msra.mxu0 0
      %2963 = vmatpush.bf16.xpose.msra.mxu0 0
      %2964 = vmatpush.bf16.xpose.msra.mxu0 0
      %2965 = vmatpush.bf16.xpose.msra.mxu0 0
      %2966 = vmatpush.bf16.xpose.msra.mxu0 0
      %2967 = vmatpush.bf16.xpose.msra.mxu0 0
      %2968 = vmatpush.bf16.xpose.msra.mxu0 0
      %2969 = vmatpush.bf16.xpose.msra.mxu0 %v2600
      %2970 = vmatmul.bf16.gmra.mxu0 %v1963
      %v2971 = vpop.f32.mrf.mxu0
      %v2972 = vadd.f32 %v2923, %v2971
      %v2973 = vpop.f32.mrf.mxu0
      %v2974 = vadd.f32 %v2925, %v2973
      %2975 = vmatmul.bf16.gmra.mxu0 %v2003
      %v2976 = vpop.f32.mrf.mxu0
      %v2977 = vadd.f32 %v2928, %v2976
      %v2978 = vpop.f32.mrf.mxu0
      %v2979 = vadd.f32 %v2930, %v2978
      %2980 = vmatmul.bf16.gmra.mxu0 %v2043
      %v2981 = vpop.f32.mrf.mxu0
      %v2982 = vadd.f32 %v2933, %v2981
      %v2983 = vpop.f32.mrf.mxu0
      %v2984 = vadd.f32 %v2935, %v2983
      %2985 = vmatmul.bf16.gmra.mxu0 %v2083
      %v2986 = vpop.f32.mrf.mxu0
      %v2987 = vadd.f32 %v2938, %v2986
      %v2988 = vpop.f32.mrf.mxu0
      %v2989 = vadd.f32 %v2940, %v2988
      %2990 = vmatmul.bf16.gmra.mxu0 %v2123
      %v2991 = vpop.f32.mrf.mxu0
      %v2992 = vadd.f32 %v2943, %v2991
      %v2993 = vpop.f32.mrf.mxu0
      %v2994 = vadd.f32 %v2945, %v2993
      %2995 = vmatmul.bf16.gmra.mxu0 %v2163
      %v2996 = vpop.f32.mrf.mxu0
      %v2997 = vadd.f32 %v2948, %v2996
      %v2998 = vpop.f32.mrf.mxu0
      %v2999 = vadd.f32 %v2950, %v2998
      %3000 = vmatmul.bf16.gmra.mxu0 %v2203
      %v3001 = vpop.f32.mrf.mxu0
      %v3002 = vadd.f32 %v2953, %v3001
      %v3003 = vpop.f32.mrf.mxu0
      %v3004 = vadd.f32 %v2955, %v3003
      %3005 = vmatmul.bf16.gmra.mxu0 %v2243
      %v3006 = vpop.f32.mrf.mxu0
      %v3007 = vadd.f32 %v2958, %v3006
      %v3008 = vpop.f32.mrf.mxu0
      %v3009 = vadd.f32 %v2960, %v3008
      %3010 = vdwg.mxu0
      %3011 = vmatpush.bf16.xpose.msra.mxu0 0
      %3012 = vmatpush.bf16.xpose.msra.mxu0 0
      %3013 = vmatpush.bf16.xpose.msra.mxu0 0
      %3014 = vmatpush.bf16.xpose.msra.mxu0 0
      %3015 = vmatpush.bf16.xpose.msra.mxu0 0
      %3016 = vmatpush.bf16.xpose.msra.mxu0 0
      %3017 = vmatpush.bf16.xpose.msra.mxu0 0
      %3018 = vmatpush.bf16.xpose.msra.mxu0 %v2601
      %3019 = vmatmul.bf16.gmra.mxu0 %v1964
      %v3020 = vpop.f32.mrf.mxu0
      %v3021 = vadd.f32 %v2972, %v3020
      %v3022 = vpop.f32.mrf.mxu0
      %v3023 = vadd.f32 %v2974, %v3022
      %3024 = vmatmul.bf16.gmra.mxu0 %v2004
      %v3025 = vpop.f32.mrf.mxu0
      %v3026 = vadd.f32 %v2977, %v3025
      %v3027 = vpop.f32.mrf.mxu0
      %v3028 = vadd.f32 %v2979, %v3027
      %3029 = vmatmul.bf16.gmra.mxu0 %v2044
      %v3030 = vpop.f32.mrf.mxu0
      %v3031 = vadd.f32 %v2982, %v3030
      %v3032 = vpop.f32.mrf.mxu0
      %v3033 = vadd.f32 %v2984, %v3032
      %3034 = vmatmul.bf16.gmra.mxu0 %v2084
      %v3035 = vpop.f32.mrf.mxu0
      %v3036 = vadd.f32 %v2987, %v3035
      %v3037 = vpop.f32.mrf.mxu0
      %v3038 = vadd.f32 %v2989, %v3037
      %3039 = vmatmul.bf16.gmra.mxu0 %v2124
      %v3040 = vpop.f32.mrf.mxu0
      %v3041 = vadd.f32 %v2992, %v3040
      %v3042 = vpop.f32.mrf.mxu0
      %v3043 = vadd.f32 %v2994, %v3042
      %3044 = vmatmul.bf16.gmra.mxu0 %v2164
      %v3045 = vpop.f32.mrf.mxu0
      %v3046 = vadd.f32 %v2997, %v3045
      %v3047 = vpop.f32.mrf.mxu0
      %v3048 = vadd.f32 %v2999, %v3047
      %3049 = vmatmul.bf16.gmra.mxu0 %v2204
      %v3050 = vpop.f32.mrf.mxu0
      %v3051 = vadd.f32 %v3002, %v3050
      %v3052 = vpop.f32.mrf.mxu0
      %v3053 = vadd.f32 %v3004, %v3052
      %3054 = vmatmul.bf16.gmra.mxu0 %v2244
      %v3055 = vpop.f32.mrf.mxu0
      %v3056 = vadd.f32 %v3007, %v3055
      %v3057 = vpop.f32.mrf.mxu0
      %v3058 = vadd.f32 %v3009, %v3057
      %3059 = vdwg.mxu0
      %3060 = vmatpush.bf16.xpose.msra.mxu0 0
      %3061 = vmatpush.bf16.xpose.msra.mxu0 0
      %3062 = vmatpush.bf16.xpose.msra.mxu0 0
      %3063 = vmatpush.bf16.xpose.msra.mxu0 0
      %3064 = vmatpush.bf16.xpose.msra.mxu0 0
      %3065 = vmatpush.bf16.xpose.msra.mxu0 0
      %3066 = vmatpush.bf16.xpose.msra.mxu0 0
      %3067 = vmatpush.bf16.xpose.msra.mxu0 %v2602
      %3068 = vmatmul.bf16.gmra.mxu0 %v1965
      %v3069 = vpop.f32.mrf.mxu0
      %v3070 = vadd.f32 %v3021, %v3069
      %v3071 = vpop.f32.mrf.mxu0
      %v3072 = vadd.f32 %v3023, %v3071
      %3073 = vmatmul.bf16.gmra.mxu0 %v2005
      %v3074 = vpop.f32.mrf.mxu0
      %v3075 = vadd.f32 %v3026, %v3074
      %v3076 = vpop.f32.mrf.mxu0
      %v3077 = vadd.f32 %v3028, %v3076
      %3078 = vmatmul.bf16.gmra.mxu0 %v2045
      %v3079 = vpop.f32.mrf.mxu0
      %v3080 = vadd.f32 %v3031, %v3079
      %v3081 = vpop.f32.mrf.mxu0
      %v3082 = vadd.f32 %v3033, %v3081
      %3083 = vmatmul.bf16.gmra.mxu0 %v2085
      %v3084 = vpop.f32.mrf.mxu0
      %v3085 = vadd.f32 %v3036, %v3084
      %v3086 = vpop.f32.mrf.mxu0
      %v3087 = vadd.f32 %v3038, %v3086
      %3088 = vmatmul.bf16.gmra.mxu0 %v2125
      %v3089 = vpop.f32.mrf.mxu0
      %v3090 = vadd.f32 %v3041, %v3089
      %v3091 = vpop.f32.mrf.mxu0
      %v3092 = vadd.f32 %v3043, %v3091
      %3093 = vmatmul.bf16.gmra.mxu0 %v2165
      %v3094 = vpop.f32.mrf.mxu0
      %v3095 = vadd.f32 %v3046, %v3094
      %v3096 = vpop.f32.mrf.mxu0
      %v3097 = vadd.f32 %v3048, %v3096
      %3098 = vmatmul.bf16.gmra.mxu0 %v2205
      %v3099 = vpop.f32.mrf.mxu0
      %v3100 = vadd.f32 %v3051, %v3099
      %v3101 = vpop.f32.mrf.mxu0
      %v3102 = vadd.f32 %v3053, %v3101
      %3103 = vmatmul.bf16.gmra.mxu0 %v2245
      %v3104 = vpop.f32.mrf.mxu0
      %v3105 = vadd.f32 %v3056, %v3104
      %v3106 = vpop.f32.mrf.mxu0
      %v3107 = vadd.f32 %v3058, %v3106
      %3108 = vdwg.mxu0
      %3109 = vmatpush.bf16.xpose.msra.mxu0 0
      %3110 = vmatpush.bf16.xpose.msra.mxu0 0
      %3111 = vmatpush.bf16.xpose.msra.mxu0 0
      %3112 = vmatpush.bf16.xpose.msra.mxu0 0
      %3113 = vmatpush.bf16.xpose.msra.mxu0 0
      %3114 = vmatpush.bf16.xpose.msra.mxu0 0
      %3115 = vmatpush.bf16.xpose.msra.mxu0 0
      %3116 = vmatpush.bf16.xpose.msra.mxu0 %v2607
      %3117 = vmatmul.bf16.gmra.mxu0 %v1966
      %v3118 = vpop.f32.mrf.mxu0
      %v3119 = vadd.f32 %v3070, %v3118
      %v3120 = vpop.f32.mrf.mxu0
      %v3121 = vadd.f32 %v3072, %v3120
      %3122 = vmatmul.bf16.gmra.mxu0 %v2006
      %v3123 = vpop.f32.mrf.mxu0
      %v3124 = vadd.f32 %v3075, %v3123
      %v3125 = vpop.f32.mrf.mxu0
      %v3126 = vadd.f32 %v3077, %v3125
      %3127 = vmatmul.bf16.gmra.mxu0 %v2046
      %v3128 = vpop.f32.mrf.mxu0
      %v3129 = vadd.f32 %v3080, %v3128
      %v3130 = vpop.f32.mrf.mxu0
      %v3131 = vadd.f32 %v3082, %v3130
      %3132 = vmatmul.bf16.gmra.mxu0 %v2086
      %v3133 = vpop.f32.mrf.mxu0
      %v3134 = vadd.f32 %v3085, %v3133
      %v3135 = vpop.f32.mrf.mxu0
      %v3136 = vadd.f32 %v3087, %v3135
      %3137 = vmatmul.bf16.gmra.mxu0 %v2126
      %v3138 = vpop.f32.mrf.mxu0
      %v3139 = vadd.f32 %v3090, %v3138
      %v3140 = vpop.f32.mrf.mxu0
      %v3141 = vadd.f32 %v3092, %v3140
      %3142 = vmatmul.bf16.gmra.mxu0 %v2166
      %v3143 = vpop.f32.mrf.mxu0
      %v3144 = vadd.f32 %v3095, %v3143
      %v3145 = vpop.f32.mrf.mxu0
      %v3146 = vadd.f32 %v3097, %v3145
      %3147 = vmatmul.bf16.gmra.mxu0 %v2206
      %v3148 = vpop.f32.mrf.mxu0
      %v3149 = vadd.f32 %v3100, %v3148
      %v3150 = vpop.f32.mrf.mxu0
      %v3151 = vadd.f32 %v3102, %v3150
      %3152 = vmatmul.bf16.gmra.mxu0 %v2246
      %v3153 = vpop.f32.mrf.mxu0
      %v3154 = vadd.f32 %v3105, %v3153
      %v3155 = vpop.f32.mrf.mxu0
      %v3156 = vadd.f32 %v3107, %v3155
      %3157 = vdwg.mxu0
      %3158 = vmatpush.bf16.xpose.msra.mxu0 0
      %3159 = vmatpush.bf16.xpose.msra.mxu0 0
      %3160 = vmatpush.bf16.xpose.msra.mxu0 0
      %3161 = vmatpush.bf16.xpose.msra.mxu0 0
      %3162 = vmatpush.bf16.xpose.msra.mxu0 0
      %3163 = vmatpush.bf16.xpose.msra.mxu0 0
      %3164 = vmatpush.bf16.xpose.msra.mxu0 0
      %3165 = vmatpush.bf16.xpose.msra.mxu0 %v2608
      %3166 = vmatmul.bf16.gmra.mxu0 %v1967
      %v3167 = vpop.f32.mrf.mxu0
      %v3168 = vadd.f32 %v3119, %v3167
      %v3169 = vpop.f32.mrf.mxu0
      %v3170 = vadd.f32 %v3121, %v3169
      %3171 = vmatmul.bf16.gmra.mxu0 %v2007
      %v3172 = vpop.f32.mrf.mxu0
      %v3173 = vadd.f32 %v3124, %v3172
      %v3174 = vpop.f32.mrf.mxu0
      %v3175 = vadd.f32 %v3126, %v3174
      %3176 = vmatmul.bf16.gmra.mxu0 %v2047
      %v3177 = vpop.f32.mrf.mxu0
      %v3178 = vadd.f32 %v3129, %v3177
      %v3179 = vpop.f32.mrf.mxu0
      %v3180 = vadd.f32 %v3131, %v3179
      %3181 = vmatmul.bf16.gmra.mxu0 %v2087
      %v3182 = vpop.f32.mrf.mxu0
      %v3183 = vadd.f32 %v3134, %v3182
      %v3184 = vpop.f32.mrf.mxu0
      %v3185 = vadd.f32 %v3136, %v3184
      %3186 = vmatmul.bf16.gmra.mxu0 %v2127
      %v3187 = vpop.f32.mrf.mxu0
      %v3188 = vadd.f32 %v3139, %v3187
      %v3189 = vpop.f32.mrf.mxu0
      %v3190 = vadd.f32 %v3141, %v3189
      %3191 = vmatmul.bf16.gmra.mxu0 %v2167
      %v3192 = vpop.f32.mrf.mxu0
      %v3193 = vadd.f32 %v3144, %v3192
      %v3194 = vpop.f32.mrf.mxu0
      %v3195 = vadd.f32 %v3146, %v3194
      %3196 = vmatmul.bf16.gmra.mxu0 %v2207
      %v3197 = vpop.f32.mrf.mxu0
      %v3198 = vadd.f32 %v3149, %v3197
      %v3199 = vpop.f32.mrf.mxu0
      %v3200 = vadd.f32 %v3151, %v3199
      %3201 = vmatmul.bf16.gmra.mxu0 %v2247
      %v3202 = vpop.f32.mrf.mxu0
      %v3203 = vadd.f32 %v3154, %v3202
      %v3204 = vpop.f32.mrf.mxu0
      %v3205 = vadd.f32 %v3156, %v3204
      %3206 = vdwg.mxu0
      %3207 = vmatpush.bf16.xpose.msra.mxu0 0
      %3208 = vmatpush.bf16.xpose.msra.mxu0 0
      %3209 = vmatpush.bf16.xpose.msra.mxu0 0
      %3210 = vmatpush.bf16.xpose.msra.mxu0 0
      %3211 = vmatpush.bf16.xpose.msra.mxu0 0
      %3212 = vmatpush.bf16.xpose.msra.mxu0 0
      %3213 = vmatpush.bf16.xpose.msra.mxu0 0
      %3214 = vmatpush.bf16.xpose.msra.mxu0 %v2609
      %3215 = vmatmul.bf16.gmra.mxu0 %v1968
      %v3216 = vpop.f32.mrf.mxu0
      %v3217 = vadd.f32 %v3168, %v3216
      %v3218 = vpop.f32.mrf.mxu0
      %v3219 = vadd.f32 %v3170, %v3218
      %3220 = vmatmul.bf16.gmra.mxu0 %v2008
      %v3221 = vpop.f32.mrf.mxu0
      %v3222 = vadd.f32 %v3173, %v3221
      %v3223 = vpop.f32.mrf.mxu0
      %v3224 = vadd.f32 %v3175, %v3223
      %3225 = vmatmul.bf16.gmra.mxu0 %v2048
      %v3226 = vpop.f32.mrf.mxu0
      %v3227 = vadd.f32 %v3178, %v3226
      %v3228 = vpop.f32.mrf.mxu0
      %v3229 = vadd.f32 %v3180, %v3228
      %3230 = vmatmul.bf16.gmra.mxu0 %v2088
      %v3231 = vpop.f32.mrf.mxu0
      %v3232 = vadd.f32 %v3183, %v3231
      %v3233 = vpop.f32.mrf.mxu0
      %v3234 = vadd.f32 %v3185, %v3233
      %3235 = vmatmul.bf16.gmra.mxu0 %v2128
      %v3236 = vpop.f32.mrf.mxu0
      %v3237 = vadd.f32 %v3188, %v3236
      %v3238 = vpop.f32.mrf.mxu0
      %v3239 = vadd.f32 %v3190, %v3238
      %3240 = vmatmul.bf16.gmra.mxu0 %v2168
      %v3241 = vpop.f32.mrf.mxu0
      %v3242 = vadd.f32 %v3193, %v3241
      %v3243 = vpop.f32.mrf.mxu0
      %v3244 = vadd.f32 %v3195, %v3243
      %3245 = vmatmul.bf16.gmra.mxu0 %v2208
      %v3246 = vpop.f32.mrf.mxu0
      %v3247 = vadd.f32 %v3198, %v3246
      %v3248 = vpop.f32.mrf.mxu0
      %v3249 = vadd.f32 %v3200, %v3248
      %3250 = vmatmul.bf16.gmra.mxu0 %v2248
      %v3251 = vpop.f32.mrf.mxu0
      %v3252 = vadd.f32 %v3203, %v3251
      %v3253 = vpop.f32.mrf.mxu0
      %v3254 = vadd.f32 %v3205, %v3253
      %3255 = vdwg.mxu0
      %3256 = vmatpush.bf16.xpose.msra.mxu0 0
      %3257 = vmatpush.bf16.xpose.msra.mxu0 0
      %3258 = vmatpush.bf16.xpose.msra.mxu0 0
      %3259 = vmatpush.bf16.xpose.msra.mxu0 0
      %3260 = vmatpush.bf16.xpose.msra.mxu0 0
      %3261 = vmatpush.bf16.xpose.msra.mxu0 0
      %3262 = vmatpush.bf16.xpose.msra.mxu0 0
      %3263 = vmatpush.bf16.xpose.msra.mxu0 %v2610
      %3264 = vmatmul.bf16.gmra.mxu0 %v1969
      %v3265 = vpop.f32.mrf.mxu0
      %v3266 = vadd.f32 %v3217, %v3265
      %v3267 = vpop.f32.mrf.mxu0
      %v3268 = vadd.f32 %v3219, %v3267
      %3269 = vmatmul.bf16.gmra.mxu0 %v2009
      %v3270 = vpop.f32.mrf.mxu0
      %v3271 = vadd.f32 %v3222, %v3270
      %v3272 = vpop.f32.mrf.mxu0
      %v3273 = vadd.f32 %v3224, %v3272
      %3274 = vmatmul.bf16.gmra.mxu0 %v2049
      %v3275 = vpop.f32.mrf.mxu0
      %v3276 = vadd.f32 %v3227, %v3275
      %v3277 = vpop.f32.mrf.mxu0
      %v3278 = vadd.f32 %v3229, %v3277
      %3279 = vmatmul.bf16.gmra.mxu0 %v2089
      %v3280 = vpop.f32.mrf.mxu0
      %v3281 = vadd.f32 %v3232, %v3280
      %v3282 = vpop.f32.mrf.mxu0
      %v3283 = vadd.f32 %v3234, %v3282
      %3284 = vmatmul.bf16.gmra.mxu0 %v2129
      %v3285 = vpop.f32.mrf.mxu0
      %v3286 = vadd.f32 %v3237, %v3285
      %v3287 = vpop.f32.mrf.mxu0
      %v3288 = vadd.f32 %v3239, %v3287
      %3289 = vmatmul.bf16.gmra.mxu0 %v2169
      %v3290 = vpop.f32.mrf.mxu0
      %v3291 = vadd.f32 %v3242, %v3290
      %v3292 = vpop.f32.mrf.mxu0
      %v3293 = vadd.f32 %v3244, %v3292
      %3294 = vmatmul.bf16.gmra.mxu0 %v2209
      %v3295 = vpop.f32.mrf.mxu0
      %v3296 = vadd.f32 %v3247, %v3295
      %v3297 = vpop.f32.mrf.mxu0
      %v3298 = vadd.f32 %v3249, %v3297
      %3299 = vmatmul.bf16.gmra.mxu0 %v2249
      %v3300 = vpop.f32.mrf.mxu0
      %v3301 = vadd.f32 %v3252, %v3300
      %v3302 = vpop.f32.mrf.mxu0
      %v3303 = vadd.f32 %v3254, %v3302
      %3304 = vdwg.mxu0
      %3305 = vmatpush.bf16.xpose.msra.mxu0 0
      %3306 = vmatpush.bf16.xpose.msra.mxu0 0
      %3307 = vmatpush.bf16.xpose.msra.mxu0 0
      %3308 = vmatpush.bf16.xpose.msra.mxu0 0
      %3309 = vmatpush.bf16.xpose.msra.mxu0 0
      %3310 = vmatpush.bf16.xpose.msra.mxu0 0
      %3311 = vmatpush.bf16.xpose.msra.mxu0 0
      %3312 = vmatpush.bf16.xpose.msra.mxu0 %v2611
      %3313 = vmatmul.bf16.gmra.mxu0 %v1970
      %v3314 = vpop.f32.mrf.mxu0
      %v3315 = vadd.f32 %v3266, %v3314
      %v3316 = vpop.f32.mrf.mxu0
      %v3317 = vadd.f32 %v3268, %v3316
      %3318 = vmatmul.bf16.gmra.mxu0 %v2010
      %v3319 = vpop.f32.mrf.mxu0
      %v3320 = vadd.f32 %v3271, %v3319
      %v3321 = vpop.f32.mrf.mxu0
      %v3322 = vadd.f32 %v3273, %v3321
      %3323 = vmatmul.bf16.gmra.mxu0 %v2050
      %v3324 = vpop.f32.mrf.mxu0
      %v3325 = vadd.f32 %v3276, %v3324
      %v3326 = vpop.f32.mrf.mxu0
      %v3327 = vadd.f32 %v3278, %v3326
      %3328 = vmatmul.bf16.gmra.mxu0 %v2090
      %v3329 = vpop.f32.mrf.mxu0
      %v3330 = vadd.f32 %v3281, %v3329
      %v3331 = vpop.f32.mrf.mxu0
      %v3332 = vadd.f32 %v3283, %v3331
      %3333 = vmatmul.bf16.gmra.mxu0 %v2130
      %v3334 = vpop.f32.mrf.mxu0
      %v3335 = vadd.f32 %v3286, %v3334
      %v3336 = vpop.f32.mrf.mxu0
      %v3337 = vadd.f32 %v3288, %v3336
      %3338 = vmatmul.bf16.gmra.mxu0 %v2170
      %v3339 = vpop.f32.mrf.mxu0
      %v3340 = vadd.f32 %v3291, %v3339
      %v3341 = vpop.f32.mrf.mxu0
      %v3342 = vadd.f32 %v3293, %v3341
      %3343 = vmatmul.bf16.gmra.mxu0 %v2210
      %v3344 = vpop.f32.mrf.mxu0
      %v3345 = vadd.f32 %v3296, %v3344
      %v3346 = vpop.f32.mrf.mxu0
      %v3347 = vadd.f32 %v3298, %v3346
      %3348 = vmatmul.bf16.gmra.mxu0 %v2250
      %v3349 = vpop.f32.mrf.mxu0
      %v3350 = vadd.f32 %v3301, %v3349
      %v3351 = vpop.f32.mrf.mxu0
      %v3352 = vadd.f32 %v3303, %v3351
      %3353 = vdwg.mxu0
      %3354 = vmatpush.bf16.xpose.msra.mxu0 0
      %3355 = vmatpush.bf16.xpose.msra.mxu0 0
      %3356 = vmatpush.bf16.xpose.msra.mxu0 0
      %3357 = vmatpush.bf16.xpose.msra.mxu0 0
      %3358 = vmatpush.bf16.xpose.msra.mxu0 0
      %3359 = vmatpush.bf16.xpose.msra.mxu0 0
      %3360 = vmatpush.bf16.xpose.msra.mxu0 0
      %3361 = vmatpush.bf16.xpose.msra.mxu0 %v2612
      %3362 = vmatmul.bf16.gmra.mxu0 %v1971
      %v3363 = vpop.f32.mrf.mxu0
      %v3364 = vadd.f32 %v3315, %v3363
      %v3365 = vpop.f32.mrf.mxu0
      %v3366 = vadd.f32 %v3317, %v3365
      %3367 = vmatmul.bf16.gmra.mxu0 %v2011
      %v3368 = vpop.f32.mrf.mxu0
      %v3369 = vadd.f32 %v3320, %v3368
      %v3370 = vpop.f32.mrf.mxu0
      %v3371 = vadd.f32 %v3322, %v3370
      %3372 = vmatmul.bf16.gmra.mxu0 %v2051
      %v3373 = vpop.f32.mrf.mxu0
      %v3374 = vadd.f32 %v3325, %v3373
      %v3375 = vpop.f32.mrf.mxu0
      %v3376 = vadd.f32 %v3327, %v3375
      %3377 = vmatmul.bf16.gmra.mxu0 %v2091
      %v3378 = vpop.f32.mrf.mxu0
      %v3379 = vadd.f32 %v3330, %v3378
      %v3380 = vpop.f32.mrf.mxu0
      %v3381 = vadd.f32 %v3332, %v3380
      %3382 = vmatmul.bf16.gmra.mxu0 %v2131
      %v3383 = vpop.f32.mrf.mxu0
      %v3384 = vadd.f32 %v3335, %v3383
      %v3385 = vpop.f32.mrf.mxu0
      %v3386 = vadd.f32 %v3337, %v3385
      %3387 = vmatmul.bf16.gmra.mxu0 %v2171
      %v3388 = vpop.f32.mrf.mxu0
      %v3389 = vadd.f32 %v3340, %v3388
      %v3390 = vpop.f32.mrf.mxu0
      %v3391 = vadd.f32 %v3342, %v3390
      %3392 = vmatmul.bf16.gmra.mxu0 %v2211
      %v3393 = vpop.f32.mrf.mxu0
      %v3394 = vadd.f32 %v3345, %v3393
      %v3395 = vpop.f32.mrf.mxu0
      %v3396 = vadd.f32 %v3347, %v3395
      %3397 = vmatmul.bf16.gmra.mxu0 %v2251
      %v3398 = vpop.f32.mrf.mxu0
      %v3399 = vadd.f32 %v3350, %v3398
      %v3400 = vpop.f32.mrf.mxu0
      %v3401 = vadd.f32 %v3352, %v3400
      %3402 = vdwg.mxu0
      %3403 = vmatpush.bf16.xpose.msra.mxu0 0
      %3404 = vmatpush.bf16.xpose.msra.mxu0 0
      %3405 = vmatpush.bf16.xpose.msra.mxu0 0
      %3406 = vmatpush.bf16.xpose.msra.mxu0 0
      %3407 = vmatpush.bf16.xpose.msra.mxu0 0
      %3408 = vmatpush.bf16.xpose.msra.mxu0 0
      %3409 = vmatpush.bf16.xpose.msra.mxu0 0
      %3410 = vmatpush.bf16.xpose.msra.mxu0 %v2613
      %3411 = vmatmul.bf16.gmra.mxu0 %v1972
      %v3412 = vpop.f32.mrf.mxu0
      %v3413 = vadd.f32 %v3364, %v3412
      %v3414 = vpop.f32.mrf.mxu0
      %v3415 = vadd.f32 %v3366, %v3414
      %3416 = vmatmul.bf16.gmra.mxu0 %v2012
      %v3417 = vpop.f32.mrf.mxu0
      %v3418 = vadd.f32 %v3369, %v3417
      %v3419 = vpop.f32.mrf.mxu0
      %v3420 = vadd.f32 %v3371, %v3419
      %3421 = vmatmul.bf16.gmra.mxu0 %v2052
      %v3422 = vpop.f32.mrf.mxu0
      %v3423 = vadd.f32 %v3374, %v3422
      %v3424 = vpop.f32.mrf.mxu0
      %v3425 = vadd.f32 %v3376, %v3424
      %3426 = vmatmul.bf16.gmra.mxu0 %v2092
      %v3427 = vpop.f32.mrf.mxu0
      %v3428 = vadd.f32 %v3379, %v3427
      %v3429 = vpop.f32.mrf.mxu0
      %v3430 = vadd.f32 %v3381, %v3429
      %3431 = vmatmul.bf16.gmra.mxu0 %v2132
      %v3432 = vpop.f32.mrf.mxu0
      %v3433 = vadd.f32 %v3384, %v3432
      %v3434 = vpop.f32.mrf.mxu0
      %v3435 = vadd.f32 %v3386, %v3434
      %3436 = vmatmul.bf16.gmra.mxu0 %v2172
      %v3437 = vpop.f32.mrf.mxu0
      %v3438 = vadd.f32 %v3389, %v3437
      %v3439 = vpop.f32.mrf.mxu0
      %v3440 = vadd.f32 %v3391, %v3439
      %3441 = vmatmul.bf16.gmra.mxu0 %v2212
      %v3442 = vpop.f32.mrf.mxu0
      %v3443 = vadd.f32 %v3394, %v3442
      %v3444 = vpop.f32.mrf.mxu0
      %v3445 = vadd.f32 %v3396, %v3444
      %3446 = vmatmul.bf16.gmra.mxu0 %v2252
      %v3447 = vpop.f32.mrf.mxu0
      %v3448 = vadd.f32 %v3399, %v3447
      %v3449 = vpop.f32.mrf.mxu0
      %v3450 = vadd.f32 %v3401, %v3449
      %3451 = vdwg.mxu0
      %3452 = vmatpush.bf16.xpose.msra.mxu0 0
      %3453 = vmatpush.bf16.xpose.msra.mxu0 0
      %3454 = vmatpush.bf16.xpose.msra.mxu0 0
      %3455 = vmatpush.bf16.xpose.msra.mxu0 0
      %3456 = vmatpush.bf16.xpose.msra.mxu0 0
      %3457 = vmatpush.bf16.xpose.msra.mxu0 0
      %3458 = vmatpush.bf16.xpose.msra.mxu0 0
      %3459 = vmatpush.bf16.xpose.msra.mxu0 %v2614
      %3460 = vmatmul.bf16.gmra.mxu0 %v1973
      %v3461 = vpop.f32.mrf.mxu0
      %v3462 = vadd.f32 %v3413, %v3461
      %v3463 = vpop.f32.mrf.mxu0
      %v3464 = vadd.f32 %v3415, %v3463
      %3465 = vmatmul.bf16.gmra.mxu0 %v2013
      %v3466 = vpop.f32.mrf.mxu0
      %v3467 = vadd.f32 %v3418, %v3466
      %v3468 = vpop.f32.mrf.mxu0
      %v3469 = vadd.f32 %v3420, %v3468
      %3470 = vmatmul.bf16.gmra.mxu0 %v2053
      %v3471 = vpop.f32.mrf.mxu0
      %v3472 = vadd.f32 %v3423, %v3471
      %v3473 = vpop.f32.mrf.mxu0
      %v3474 = vadd.f32 %v3425, %v3473
      %3475 = vmatmul.bf16.gmra.mxu0 %v2093
      %v3476 = vpop.f32.mrf.mxu0
      %v3477 = vadd.f32 %v3428, %v3476
      %v3478 = vpop.f32.mrf.mxu0
      %v3479 = vadd.f32 %v3430, %v3478
      %3480 = vmatmul.bf16.gmra.mxu0 %v2133
      %v3481 = vpop.f32.mrf.mxu0
      %v3482 = vadd.f32 %v3433, %v3481
      %v3483 = vpop.f32.mrf.mxu0
      %v3484 = vadd.f32 %v3435, %v3483
      %3485 = vmatmul.bf16.gmra.mxu0 %v2173
      %v3486 = vpop.f32.mrf.mxu0
      %v3487 = vadd.f32 %v3438, %v3486
      %v3488 = vpop.f32.mrf.mxu0
      %v3489 = vadd.f32 %v3440, %v3488
      %3490 = vmatmul.bf16.gmra.mxu0 %v2213
      %v3491 = vpop.f32.mrf.mxu0
      %v3492 = vadd.f32 %v3443, %v3491
      %v3493 = vpop.f32.mrf.mxu0
      %v3494 = vadd.f32 %v3445, %v3493
      %3495 = vmatmul.bf16.gmra.mxu0 %v2253
      %v3496 = vpop.f32.mrf.mxu0
      %v3497 = vadd.f32 %v3448, %v3496
      %v3498 = vpop.f32.mrf.mxu0
      %v3499 = vadd.f32 %v3450, %v3498
      %3500 = vdwg.mxu0
      %3501 = vmatpush.bf16.xpose.msra.mxu0 0
      %3502 = vmatpush.bf16.xpose.msra.mxu0 0
      %3503 = vmatpush.bf16.xpose.msra.mxu0 0
      %3504 = vmatpush.bf16.xpose.msra.mxu0 0
      %3505 = vmatpush.bf16.xpose.msra.mxu0 0
      %3506 = vmatpush.bf16.xpose.msra.mxu0 0
      %3507 = vmatpush.bf16.xpose.msra.mxu0 0
      %3508 = vmatpush.bf16.xpose.msra.mxu0 %v2619
      %3509 = vmatmul.bf16.gmra.mxu0 %v1974
      %v3510 = vpop.f32.mrf.mxu0
      %v3511 = vadd.f32 %v3462, %v3510
      %v3512 = vpop.f32.mrf.mxu0
      %v3513 = vadd.f32 %v3464, %v3512
      %3514 = vmatmul.bf16.gmra.mxu0 %v2014
      %v3515 = vpop.f32.mrf.mxu0
      %v3516 = vadd.f32 %v3467, %v3515
      %v3517 = vpop.f32.mrf.mxu0
      %v3518 = vadd.f32 %v3469, %v3517
      %3519 = vmatmul.bf16.gmra.mxu0 %v2054
      %v3520 = vpop.f32.mrf.mxu0
      %v3521 = vadd.f32 %v3472, %v3520
      %v3522 = vpop.f32.mrf.mxu0
      %v3523 = vadd.f32 %v3474, %v3522
      %3524 = vmatmul.bf16.gmra.mxu0 %v2094
      %v3525 = vpop.f32.mrf.mxu0
      %v3526 = vadd.f32 %v3477, %v3525
      %v3527 = vpop.f32.mrf.mxu0
      %v3528 = vadd.f32 %v3479, %v3527
      %3529 = vmatmul.bf16.gmra.mxu0 %v2134
      %v3530 = vpop.f32.mrf.mxu0
      %v3531 = vadd.f32 %v3482, %v3530
      %v3532 = vpop.f32.mrf.mxu0
      %v3533 = vadd.f32 %v3484, %v3532
      %3534 = vmatmul.bf16.gmra.mxu0 %v2174
      %v3535 = vpop.f32.mrf.mxu0
      %v3536 = vadd.f32 %v3487, %v3535
      %v3537 = vpop.f32.mrf.mxu0
      %v3538 = vadd.f32 %v3489, %v3537
      %3539 = vmatmul.bf16.gmra.mxu0 %v2214
      %v3540 = vpop.f32.mrf.mxu0
      %v3541 = vadd.f32 %v3492, %v3540
      %v3542 = vpop.f32.mrf.mxu0
      %v3543 = vadd.f32 %v3494, %v3542
      %3544 = vmatmul.bf16.gmra.mxu0 %v2254
      %v3545 = vpop.f32.mrf.mxu0
      %v3546 = vadd.f32 %v3497, %v3545
      %v3547 = vpop.f32.mrf.mxu0
      %v3548 = vadd.f32 %v3499, %v3547
      %3549 = vdwg.mxu0
      %3550 = vmatpush.bf16.xpose.msra.mxu0 0
      %3551 = vmatpush.bf16.xpose.msra.mxu0 0
      %3552 = vmatpush.bf16.xpose.msra.mxu0 0
      %3553 = vmatpush.bf16.xpose.msra.mxu0 0
      %3554 = vmatpush.bf16.xpose.msra.mxu0 0
      %3555 = vmatpush.bf16.xpose.msra.mxu0 0
      %3556 = vmatpush.bf16.xpose.msra.mxu0 0
      %3557 = vmatpush.bf16.xpose.msra.mxu0 %v2620
      %3558 = vmatmul.bf16.gmra.mxu0 %v1975
      %v3559 = vpop.f32.mrf.mxu0
      %v3560 = vadd.f32 %v3511, %v3559
      %v3561 = vpop.f32.mrf.mxu0
      %v3562 = vadd.f32 %v3513, %v3561
      %3563 = vmatmul.bf16.gmra.mxu0 %v2015
      %v3564 = vpop.f32.mrf.mxu0
      %v3565 = vadd.f32 %v3516, %v3564
      %v3566 = vpop.f32.mrf.mxu0
      %v3567 = vadd.f32 %v3518, %v3566
      %3568 = vmatmul.bf16.gmra.mxu0 %v2055
      %v3569 = vpop.f32.mrf.mxu0
      %v3570 = vadd.f32 %v3521, %v3569
      %v3571 = vpop.f32.mrf.mxu0
      %v3572 = vadd.f32 %v3523, %v3571
      %3573 = vmatmul.bf16.gmra.mxu0 %v2095
      %v3574 = vpop.f32.mrf.mxu0
      %v3575 = vadd.f32 %v3526, %v3574
      %v3576 = vpop.f32.mrf.mxu0
      %v3577 = vadd.f32 %v3528, %v3576
      %3578 = vmatmul.bf16.gmra.mxu0 %v2135
      %v3579 = vpop.f32.mrf.mxu0
      %v3580 = vadd.f32 %v3531, %v3579
      %v3581 = vpop.f32.mrf.mxu0
      %v3582 = vadd.f32 %v3533, %v3581
      %3583 = vmatmul.bf16.gmra.mxu0 %v2175
      %v3584 = vpop.f32.mrf.mxu0
      %v3585 = vadd.f32 %v3536, %v3584
      %v3586 = vpop.f32.mrf.mxu0
      %v3587 = vadd.f32 %v3538, %v3586
      %3588 = vmatmul.bf16.gmra.mxu0 %v2215
      %v3589 = vpop.f32.mrf.mxu0
      %v3590 = vadd.f32 %v3541, %v3589
      %v3591 = vpop.f32.mrf.mxu0
      %v3592 = vadd.f32 %v3543, %v3591
      %3593 = vmatmul.bf16.gmra.mxu0 %v2255
      %v3594 = vpop.f32.mrf.mxu0
      %v3595 = vadd.f32 %v3546, %v3594
      %v3596 = vpop.f32.mrf.mxu0
      %v3597 = vadd.f32 %v3548, %v3596
      %3598 = vdwg.mxu0
      %3599 = vmatpush.bf16.xpose.msra.mxu0 0
      %3600 = vmatpush.bf16.xpose.msra.mxu0 0
      %3601 = vmatpush.bf16.xpose.msra.mxu0 0
      %3602 = vmatpush.bf16.xpose.msra.mxu0 0
      %3603 = vmatpush.bf16.xpose.msra.mxu0 0
      %3604 = vmatpush.bf16.xpose.msra.mxu0 0
      %3605 = vmatpush.bf16.xpose.msra.mxu0 0
      %3606 = vmatpush.bf16.xpose.msra.mxu0 %v2621
      %3607 = vmatmul.bf16.gmra.mxu0 %v1976
      %v3608 = vpop.f32.mrf.mxu0
      %v3609 = vadd.f32 %v3560, %v3608
      %v3610 = vpop.f32.mrf.mxu0
      %v3611 = vadd.f32 %v3562, %v3610
      %3612 = vmatmul.bf16.gmra.mxu0 %v2016
      %v3613 = vpop.f32.mrf.mxu0
      %v3614 = vadd.f32 %v3565, %v3613
      %v3615 = vpop.f32.mrf.mxu0
      %v3616 = vadd.f32 %v3567, %v3615
      %3617 = vmatmul.bf16.gmra.mxu0 %v2056
      %v3618 = vpop.f32.mrf.mxu0
      %v3619 = vadd.f32 %v3570, %v3618
      %v3620 = vpop.f32.mrf.mxu0
      %v3621 = vadd.f32 %v3572, %v3620
      %3622 = vmatmul.bf16.gmra.mxu0 %v2096
      %v3623 = vpop.f32.mrf.mxu0
      %v3624 = vadd.f32 %v3575, %v3623
      %v3625 = vpop.f32.mrf.mxu0
      %v3626 = vadd.f32 %v3577, %v3625
      %3627 = vmatmul.bf16.gmra.mxu0 %v2136
      %v3628 = vpop.f32.mrf.mxu0
      %v3629 = vadd.f32 %v3580, %v3628
      %v3630 = vpop.f32.mrf.mxu0
      %v3631 = vadd.f32 %v3582, %v3630
      %3632 = vmatmul.bf16.gmra.mxu0 %v2176
      %v3633 = vpop.f32.mrf.mxu0
      %v3634 = vadd.f32 %v3585, %v3633
      %v3635 = vpop.f32.mrf.mxu0
      %v3636 = vadd.f32 %v3587, %v3635
      %3637 = vmatmul.bf16.gmra.mxu0 %v2216
      %v3638 = vpop.f32.mrf.mxu0
      %v3639 = vadd.f32 %v3590, %v3638
      %v3640 = vpop.f32.mrf.mxu0
      %v3641 = vadd.f32 %v3592, %v3640
      %3642 = vmatmul.bf16.gmra.mxu0 %v2256
      %v3643 = vpop.f32.mrf.mxu0
      %v3644 = vadd.f32 %v3595, %v3643
      %v3645 = vpop.f32.mrf.mxu0
      %v3646 = vadd.f32 %v3597, %v3645
      %3647 = vdwg.mxu0
      %3648 = vmatpush.bf16.xpose.msra.mxu0 0
      %3649 = vmatpush.bf16.xpose.msra.mxu0 0
      %3650 = vmatpush.bf16.xpose.msra.mxu0 0
      %3651 = vmatpush.bf16.xpose.msra.mxu0 0
      %3652 = vmatpush.bf16.xpose.msra.mxu0 0
      %3653 = vmatpush.bf16.xpose.msra.mxu0 0
      %3654 = vmatpush.bf16.xpose.msra.mxu0 0
      %3655 = vmatpush.bf16.xpose.msra.mxu0 %v2622
      %3656 = vmatmul.bf16.gmra.mxu0 %v1977
      %v3657 = vpop.f32.mrf.mxu0
      %v3658 = vadd.f32 %v3609, %v3657
      %v3659 = vpop.f32.mrf.mxu0
      %v3660 = vadd.f32 %v3611, %v3659
      %3661 = vmatmul.bf16.gmra.mxu0 %v2017
      %v3662 = vpop.f32.mrf.mxu0
      %v3663 = vadd.f32 %v3614, %v3662
      %v3664 = vpop.f32.mrf.mxu0
      %v3665 = vadd.f32 %v3616, %v3664
      %3666 = vmatmul.bf16.gmra.mxu0 %v2057
      %v3667 = vpop.f32.mrf.mxu0
      %v3668 = vadd.f32 %v3619, %v3667
      %v3669 = vpop.f32.mrf.mxu0
      %v3670 = vadd.f32 %v3621, %v3669
      %3671 = vmatmul.bf16.gmra.mxu0 %v2097
      %v3672 = vpop.f32.mrf.mxu0
      %v3673 = vadd.f32 %v3624, %v3672
      %v3674 = vpop.f32.mrf.mxu0
      %v3675 = vadd.f32 %v3626, %v3674
      %3676 = vmatmul.bf16.gmra.mxu0 %v2137
      %v3677 = vpop.f32.mrf.mxu0
      %v3678 = vadd.f32 %v3629, %v3677
      %v3679 = vpop.f32.mrf.mxu0
      %v3680 = vadd.f32 %v3631, %v3679
      %3681 = vmatmul.bf16.gmra.mxu0 %v2177
      %v3682 = vpop.f32.mrf.mxu0
      %v3683 = vadd.f32 %v3634, %v3682
      %v3684 = vpop.f32.mrf.mxu0
      %v3685 = vadd.f32 %v3636, %v3684
      %3686 = vmatmul.bf16.gmra.mxu0 %v2217
      %v3687 = vpop.f32.mrf.mxu0
      %v3688 = vadd.f32 %v3639, %v3687
      %v3689 = vpop.f32.mrf.mxu0
      %v3690 = vadd.f32 %v3641, %v3689
      %3691 = vmatmul.bf16.gmra.mxu0 %v2257
      %v3692 = vpop.f32.mrf.mxu0
      %v3693 = vadd.f32 %v3644, %v3692
      %v3694 = vpop.f32.mrf.mxu0
      %v3695 = vadd.f32 %v3646, %v3694
      %3696 = vdwg.mxu0
      %3697 = vmatpush.bf16.xpose.msra.mxu0 0
      %3698 = vmatpush.bf16.xpose.msra.mxu0 0
      %3699 = vmatpush.bf16.xpose.msra.mxu0 0
      %3700 = vmatpush.bf16.xpose.msra.mxu0 0
      %3701 = vmatpush.bf16.xpose.msra.mxu0 0
      %3702 = vmatpush.bf16.xpose.msra.mxu0 0
      %3703 = vmatpush.bf16.xpose.msra.mxu0 0
      %3704 = vmatpush.bf16.xpose.msra.mxu0 %v2623
      %3705 = vmatmul.bf16.gmra.mxu0 %v1978
      %v3706 = vpop.f32.mrf.mxu0
      %v3707 = vadd.f32 %v3658, %v3706
      %v3708 = vpop.f32.mrf.mxu0
      %v3709 = vadd.f32 %v3660, %v3708
      %3710 = vmatmul.bf16.gmra.mxu0 %v2018
      %v3711 = vpop.f32.mrf.mxu0
      %v3712 = vadd.f32 %v3663, %v3711
      %v3713 = vpop.f32.mrf.mxu0
      %v3714 = vadd.f32 %v3665, %v3713
      %3715 = vmatmul.bf16.gmra.mxu0 %v2058
      %v3716 = vpop.f32.mrf.mxu0
      %v3717 = vadd.f32 %v3668, %v3716
      %v3718 = vpop.f32.mrf.mxu0
      %v3719 = vadd.f32 %v3670, %v3718
      %3720 = vmatmul.bf16.gmra.mxu0 %v2098
      %v3721 = vpop.f32.mrf.mxu0
      %v3722 = vadd.f32 %v3673, %v3721
      %v3723 = vpop.f32.mrf.mxu0
      %v3724 = vadd.f32 %v3675, %v3723
      %3725 = vmatmul.bf16.gmra.mxu0 %v2138
      %v3726 = vpop.f32.mrf.mxu0
      %v3727 = vadd.f32 %v3678, %v3726
      %v3728 = vpop.f32.mrf.mxu0
      %v3729 = vadd.f32 %v3680, %v3728
      %3730 = vmatmul.bf16.gmra.mxu0 %v2178
      %v3731 = vpop.f32.mrf.mxu0
      %v3732 = vadd.f32 %v3683, %v3731
      %v3733 = vpop.f32.mrf.mxu0
      %v3734 = vadd.f32 %v3685, %v3733
      %3735 = vmatmul.bf16.gmra.mxu0 %v2218
      %v3736 = vpop.f32.mrf.mxu0
      %v3737 = vadd.f32 %v3688, %v3736
      %v3738 = vpop.f32.mrf.mxu0
      %v3739 = vadd.f32 %v3690, %v3738
      %3740 = vmatmul.bf16.gmra.mxu0 %v2258
      %v3741 = vpop.f32.mrf.mxu0
      %v3742 = vadd.f32 %v3693, %v3741
      %v3743 = vpop.f32.mrf.mxu0
      %v3744 = vadd.f32 %v3695, %v3743
      %3745 = vdwg.mxu0
      %3746 = vmatpush.bf16.xpose.msra.mxu0 0
      %3747 = vmatpush.bf16.xpose.msra.mxu0 0
      %3748 = vmatpush.bf16.xpose.msra.mxu0 0
      %3749 = vmatpush.bf16.xpose.msra.mxu0 0
      %3750 = vmatpush.bf16.xpose.msra.mxu0 0
      %3751 = vmatpush.bf16.xpose.msra.mxu0 0
      %3752 = vmatpush.bf16.xpose.msra.mxu0 0
      %3753 = vmatpush.bf16.xpose.msra.mxu0 %v2624
      %3754 = vmatmul.bf16.gmra.mxu0 %v1979
      %v3755 = vpop.f32.mrf.mxu0
      %v3756 = vadd.f32 %v3707, %v3755
      %v3757 = vpop.f32.mrf.mxu0
      %v3758 = vadd.f32 %v3709, %v3757
      %3759 = vmatmul.bf16.gmra.mxu0 %v2019
      %v3760 = vpop.f32.mrf.mxu0
      %v3761 = vadd.f32 %v3712, %v3760
      %v3762 = vpop.f32.mrf.mxu0
      %v3763 = vadd.f32 %v3714, %v3762
      %3764 = vmatmul.bf16.gmra.mxu0 %v2059
      %v3765 = vpop.f32.mrf.mxu0
      %v3766 = vadd.f32 %v3717, %v3765
      %v3767 = vpop.f32.mrf.mxu0
      %v3768 = vadd.f32 %v3719, %v3767
      %3769 = vmatmul.bf16.gmra.mxu0 %v2099
      %v3770 = vpop.f32.mrf.mxu0
      %v3771 = vadd.f32 %v3722, %v3770
      %v3772 = vpop.f32.mrf.mxu0
      %v3773 = vadd.f32 %v3724, %v3772
      %3774 = vmatmul.bf16.gmra.mxu0 %v2139
      %v3775 = vpop.f32.mrf.mxu0
      %v3776 = vadd.f32 %v3727, %v3775
      %v3777 = vpop.f32.mrf.mxu0
      %v3778 = vadd.f32 %v3729, %v3777
      %3779 = vmatmul.bf16.gmra.mxu0 %v2179
      %v3780 = vpop.f32.mrf.mxu0
      %v3781 = vadd.f32 %v3732, %v3780
      %v3782 = vpop.f32.mrf.mxu0
      %v3783 = vadd.f32 %v3734, %v3782
      %3784 = vmatmul.bf16.gmra.mxu0 %v2219
      %v3785 = vpop.f32.mrf.mxu0
      %v3786 = vadd.f32 %v3737, %v3785
      %v3787 = vpop.f32.mrf.mxu0
      %v3788 = vadd.f32 %v3739, %v3787
      %3789 = vmatmul.bf16.gmra.mxu0 %v2259
      %v3790 = vpop.f32.mrf.mxu0
      %v3791 = vadd.f32 %v3742, %v3790
      %v3792 = vpop.f32.mrf.mxu0
      %v3793 = vadd.f32 %v3744, %v3792
      %3794 = vdwg.mxu0
      %3795 = vmatpush.bf16.xpose.msra.mxu0 0
      %3796 = vmatpush.bf16.xpose.msra.mxu0 0
      %3797 = vmatpush.bf16.xpose.msra.mxu0 0
      %3798 = vmatpush.bf16.xpose.msra.mxu0 0
      %3799 = vmatpush.bf16.xpose.msra.mxu0 0
      %3800 = vmatpush.bf16.xpose.msra.mxu0 0
      %3801 = vmatpush.bf16.xpose.msra.mxu0 0
      %3802 = vmatpush.bf16.xpose.msra.mxu0 %v2625
      %3803 = vmatmul.bf16.gmra.mxu0 %v1980
      %v3804 = vpop.f32.mrf.mxu0
      %v3805 = vadd.f32 %v3756, %v3804
      %v3806 = vpop.f32.mrf.mxu0
      %v3807 = vadd.f32 %v3758, %v3806
      %3808 = vmatmul.bf16.gmra.mxu0 %v2020
      %v3809 = vpop.f32.mrf.mxu0
      %v3810 = vadd.f32 %v3761, %v3809
      %v3811 = vpop.f32.mrf.mxu0
      %v3812 = vadd.f32 %v3763, %v3811
      %3813 = vmatmul.bf16.gmra.mxu0 %v2060
      %v3814 = vpop.f32.mrf.mxu0
      %v3815 = vadd.f32 %v3766, %v3814
      %v3816 = vpop.f32.mrf.mxu0
      %v3817 = vadd.f32 %v3768, %v3816
      %3818 = vmatmul.bf16.gmra.mxu0 %v2100
      %v3819 = vpop.f32.mrf.mxu0
      %v3820 = vadd.f32 %v3771, %v3819
      %v3821 = vpop.f32.mrf.mxu0
      %v3822 = vadd.f32 %v3773, %v3821
      %3823 = vmatmul.bf16.gmra.mxu0 %v2140
      %v3824 = vpop.f32.mrf.mxu0
      %v3825 = vadd.f32 %v3776, %v3824
      %v3826 = vpop.f32.mrf.mxu0
      %v3827 = vadd.f32 %v3778, %v3826
      %3828 = vmatmul.bf16.gmra.mxu0 %v2180
      %v3829 = vpop.f32.mrf.mxu0
      %v3830 = vadd.f32 %v3781, %v3829
      %v3831 = vpop.f32.mrf.mxu0
      %v3832 = vadd.f32 %v3783, %v3831
      %3833 = vmatmul.bf16.gmra.mxu0 %v2220
      %v3834 = vpop.f32.mrf.mxu0
      %v3835 = vadd.f32 %v3786, %v3834
      %v3836 = vpop.f32.mrf.mxu0
      %v3837 = vadd.f32 %v3788, %v3836
      %3838 = vmatmul.bf16.gmra.mxu0 %v2260
      %v3839 = vpop.f32.mrf.mxu0
      %v3840 = vadd.f32 %v3791, %v3839
      %v3841 = vpop.f32.mrf.mxu0
      %v3842 = vadd.f32 %v3793, %v3841
      %3843 = vdwg.mxu0
      %3844 = vmatpush.bf16.xpose.msra.mxu0 0
      %3845 = vmatpush.bf16.xpose.msra.mxu0 0
      %3846 = vmatpush.bf16.xpose.msra.mxu0 0
      %3847 = vmatpush.bf16.xpose.msra.mxu0 0
      %3848 = vmatpush.bf16.xpose.msra.mxu0 0
      %3849 = vmatpush.bf16.xpose.msra.mxu0 0
      %3850 = vmatpush.bf16.xpose.msra.mxu0 0
      %3851 = vmatpush.bf16.xpose.msra.mxu0 %v2626
      %3852 = vmatmul.bf16.gmra.mxu0 %v1981
      %v3853 = vpop.f32.mrf.mxu0
      %v3854 = vadd.f32 %v3805, %v3853
      %v3855 = vpop.f32.mrf.mxu0
      %v3856 = vadd.f32 %v3807, %v3855
      %3857 = vmatmul.bf16.gmra.mxu0 %v2021
      %v3858 = vpop.f32.mrf.mxu0
      %v3859 = vadd.f32 %v3810, %v3858
      %v3860 = vpop.f32.mrf.mxu0
      %v3861 = vadd.f32 %v3812, %v3860
      %3862 = vmatmul.bf16.gmra.mxu0 %v2061
      %v3863 = vpop.f32.mrf.mxu0
      %v3864 = vadd.f32 %v3815, %v3863
      %v3865 = vpop.f32.mrf.mxu0
      %v3866 = vadd.f32 %v3817, %v3865
      %3867 = vmatmul.bf16.gmra.mxu0 %v2101
      %v3868 = vpop.f32.mrf.mxu0
      %v3869 = vadd.f32 %v3820, %v3868
      %v3870 = vpop.f32.mrf.mxu0
      %v3871 = vadd.f32 %v3822, %v3870
      %3872 = vmatmul.bf16.gmra.mxu0 %v2141
      %v3873 = vpop.f32.mrf.mxu0
      %v3874 = vadd.f32 %v3825, %v3873
      %v3875 = vpop.f32.mrf.mxu0
      %v3876 = vadd.f32 %v3827, %v3875
      %3877 = vmatmul.bf16.gmra.mxu0 %v2181
      %v3878 = vpop.f32.mrf.mxu0
      %v3879 = vadd.f32 %v3830, %v3878
      %v3880 = vpop.f32.mrf.mxu0
      %v3881 = vadd.f32 %v3832, %v3880
      %3882 = vmatmul.bf16.gmra.mxu0 %v2221
      %v3883 = vpop.f32.mrf.mxu0
      %v3884 = vadd.f32 %v3835, %v3883
      %v3885 = vpop.f32.mrf.mxu0
      %v3886 = vadd.f32 %v3837, %v3885
      %3887 = vmatmul.bf16.gmra.mxu0 %v2261
      %v3888 = vpop.f32.mrf.mxu0
      %v3889 = vadd.f32 %v3840, %v3888
      %v3890 = vpop.f32.mrf.mxu0
      %v3891 = vadd.f32 %v3842, %v3890
      %3892 = vdwg.mxu0
      %3893 = vmatpush.bf16.xpose.msra.mxu0 0
      %3894 = vmatpush.bf16.xpose.msra.mxu0 0
      %3895 = vmatpush.bf16.xpose.msra.mxu0 0
      %3896 = vmatpush.bf16.xpose.msra.mxu0 0
      %3897 = vmatpush.bf16.xpose.msra.mxu0 0
      %3898 = vmatpush.bf16.xpose.msra.mxu0 0
      %3899 = vmatpush.bf16.xpose.msra.mxu0 0
      %3900 = vmatpush.bf16.xpose.msra.mxu0 %v2631
      %3901 = vmatmul.bf16.gmra.mxu0 %v1982
      %v3902 = vpop.f32.mrf.mxu0
      %v3903 = vadd.f32 %v3854, %v3902
      %v3904 = vpop.f32.mrf.mxu0
      %v3905 = vadd.f32 %v3856, %v3904
      %3906 = vmatmul.bf16.gmra.mxu0 %v2022
      %v3907 = vpop.f32.mrf.mxu0
      %v3908 = vadd.f32 %v3859, %v3907
      %v3909 = vpop.f32.mrf.mxu0
      %v3910 = vadd.f32 %v3861, %v3909
      %3911 = vmatmul.bf16.gmra.mxu0 %v2062
      %v3912 = vpop.f32.mrf.mxu0
      %v3913 = vadd.f32 %v3864, %v3912
      %v3914 = vpop.f32.mrf.mxu0
      %v3915 = vadd.f32 %v3866, %v3914
      %3916 = vmatmul.bf16.gmra.mxu0 %v2102
      %v3917 = vpop.f32.mrf.mxu0
      %v3918 = vadd.f32 %v3869, %v3917
      %v3919 = vpop.f32.mrf.mxu0
      %v3920 = vadd.f32 %v3871, %v3919
      %3921 = vmatmul.bf16.gmra.mxu0 %v2142
      %v3922 = vpop.f32.mrf.mxu0
      %v3923 = vadd.f32 %v3874, %v3922
      %v3924 = vpop.f32.mrf.mxu0
      %v3925 = vadd.f32 %v3876, %v3924
      %3926 = vmatmul.bf16.gmra.mxu0 %v2182
      %v3927 = vpop.f32.mrf.mxu0
      %v3928 = vadd.f32 %v3879, %v3927
      %v3929 = vpop.f32.mrf.mxu0
      %v3930 = vadd.f32 %v3881, %v3929
      %3931 = vmatmul.bf16.gmra.mxu0 %v2222
      %v3932 = vpop.f32.mrf.mxu0
      %v3933 = vadd.f32 %v3884, %v3932
      %v3934 = vpop.f32.mrf.mxu0
      %v3935 = vadd.f32 %v3886, %v3934
      %3936 = vmatmul.bf16.gmra.mxu0 %v2262
      %v3937 = vpop.f32.mrf.mxu0
      %v3938 = vadd.f32 %v3889, %v3937
      %v3939 = vpop.f32.mrf.mxu0
      %v3940 = vadd.f32 %v3891, %v3939
      %3941 = vdwg.mxu0
      %3942 = vmatpush.bf16.xpose.msra.mxu0 0
      %3943 = vmatpush.bf16.xpose.msra.mxu0 0
      %3944 = vmatpush.bf16.xpose.msra.mxu0 0
      %3945 = vmatpush.bf16.xpose.msra.mxu0 0
      %3946 = vmatpush.bf16.xpose.msra.mxu0 0
      %3947 = vmatpush.bf16.xpose.msra.mxu0 0
      %3948 = vmatpush.bf16.xpose.msra.mxu0 0
      %3949 = vmatpush.bf16.xpose.msra.mxu0 %v2632
      %3950 = vmatmul.bf16.gmra.mxu0 %v1983
      %v3951 = vpop.f32.mrf.mxu0
      %v3952 = vadd.f32 %v3903, %v3951
      %v3953 = vpop.f32.mrf.mxu0
      %v3954 = vadd.f32 %v3905, %v3953
      %3955 = vmatmul.bf16.gmra.mxu0 %v2023
      %v3956 = vpop.f32.mrf.mxu0
      %v3957 = vadd.f32 %v3908, %v3956
      %v3958 = vpop.f32.mrf.mxu0
      %v3959 = vadd.f32 %v3910, %v3958
      %3960 = vmatmul.bf16.gmra.mxu0 %v2063
      %v3961 = vpop.f32.mrf.mxu0
      %v3962 = vadd.f32 %v3913, %v3961
      %v3963 = vpop.f32.mrf.mxu0
      %v3964 = vadd.f32 %v3915, %v3963
      %3965 = vmatmul.bf16.gmra.mxu0 %v2103
      %v3966 = vpop.f32.mrf.mxu0
      %v3967 = vadd.f32 %v3918, %v3966
      %v3968 = vpop.f32.mrf.mxu0
      %v3969 = vadd.f32 %v3920, %v3968
      %3970 = vmatmul.bf16.gmra.mxu0 %v2143
      %v3971 = vpop.f32.mrf.mxu0
      %v3972 = vadd.f32 %v3923, %v3971
      %v3973 = vpop.f32.mrf.mxu0
      %v3974 = vadd.f32 %v3925, %v3973
      %3975 = vmatmul.bf16.gmra.mxu0 %v2183
      %v3976 = vpop.f32.mrf.mxu0
      %v3977 = vadd.f32 %v3928, %v3976
      %v3978 = vpop.f32.mrf.mxu0
      %v3979 = vadd.f32 %v3930, %v3978
      %3980 = vmatmul.bf16.gmra.mxu0 %v2223
      %v3981 = vpop.f32.mrf.mxu0
      %v3982 = vadd.f32 %v3933, %v3981
      %v3983 = vpop.f32.mrf.mxu0
      %v3984 = vadd.f32 %v3935, %v3983
      %3985 = vmatmul.bf16.gmra.mxu0 %v2263
      %v3986 = vpop.f32.mrf.mxu0
      %v3987 = vadd.f32 %v3938, %v3986
      %v3988 = vpop.f32.mrf.mxu0
      %v3989 = vadd.f32 %v3940, %v3988
      %3990 = vdwg.mxu0
      %3991 = vmatpush.bf16.xpose.msra.mxu0 0
      %3992 = vmatpush.bf16.xpose.msra.mxu0 0
      %3993 = vmatpush.bf16.xpose.msra.mxu0 0
      %3994 = vmatpush.bf16.xpose.msra.mxu0 0
      %3995 = vmatpush.bf16.xpose.msra.mxu0 0
      %3996 = vmatpush.bf16.xpose.msra.mxu0 0
      %3997 = vmatpush.bf16.xpose.msra.mxu0 0
      %3998 = vmatpush.bf16.xpose.msra.mxu0 %v2633
      %3999 = vmatmul.bf16.gmra.mxu0 %v1984
      %v4000 = vpop.f32.mrf.mxu0
      %v4001 = vadd.f32 %v3952, %v4000
      %v4002 = vpop.f32.mrf.mxu0
      %v4003 = vadd.f32 %v3954, %v4002
      %4004 = vmatmul.bf16.gmra.mxu0 %v2024
      %v4005 = vpop.f32.mrf.mxu0
      %v4006 = vadd.f32 %v3957, %v4005
      %v4007 = vpop.f32.mrf.mxu0
      %v4008 = vadd.f32 %v3959, %v4007
      %4009 = vmatmul.bf16.gmra.mxu0 %v2064
      %v4010 = vpop.f32.mrf.mxu0
      %v4011 = vadd.f32 %v3962, %v4010
      %v4012 = vpop.f32.mrf.mxu0
      %v4013 = vadd.f32 %v3964, %v4012
      %4014 = vmatmul.bf16.gmra.mxu0 %v2104
      %v4015 = vpop.f32.mrf.mxu0
      %v4016 = vadd.f32 %v3967, %v4015
      %v4017 = vpop.f32.mrf.mxu0
      %v4018 = vadd.f32 %v3969, %v4017
      %4019 = vmatmul.bf16.gmra.mxu0 %v2144
      %v4020 = vpop.f32.mrf.mxu0
      %v4021 = vadd.f32 %v3972, %v4020
      %v4022 = vpop.f32.mrf.mxu0
      %v4023 = vadd.f32 %v3974, %v4022
      %4024 = vmatmul.bf16.gmra.mxu0 %v2184
      %v4025 = vpop.f32.mrf.mxu0
      %v4026 = vadd.f32 %v3977, %v4025
      %v4027 = vpop.f32.mrf.mxu0
      %v4028 = vadd.f32 %v3979, %v4027
      %4029 = vmatmul.bf16.gmra.mxu0 %v2224
      %v4030 = vpop.f32.mrf.mxu0
      %v4031 = vadd.f32 %v3982, %v4030
      %v4032 = vpop.f32.mrf.mxu0
      %v4033 = vadd.f32 %v3984, %v4032
      %4034 = vmatmul.bf16.gmra.mxu0 %v2264
      %v4035 = vpop.f32.mrf.mxu0
      %v4036 = vadd.f32 %v3987, %v4035
      %v4037 = vpop.f32.mrf.mxu0
      %v4038 = vadd.f32 %v3989, %v4037
      %4039 = vdwg.mxu0
      %4040 = vmatpush.bf16.xpose.msra.mxu0 0
      %4041 = vmatpush.bf16.xpose.msra.mxu0 0
      %4042 = vmatpush.bf16.xpose.msra.mxu0 0
      %4043 = vmatpush.bf16.xpose.msra.mxu0 0
      %4044 = vmatpush.bf16.xpose.msra.mxu0 0
      %4045 = vmatpush.bf16.xpose.msra.mxu0 0
      %4046 = vmatpush.bf16.xpose.msra.mxu0 0
      %4047 = vmatpush.bf16.xpose.msra.mxu0 %v2634
      %4048 = vmatmul.bf16.gmra.mxu0 %v1985
      %v4049 = vpop.f32.mrf.mxu0
      %v4050 = vadd.f32 %v4001, %v4049
      %v4051 = vpop.f32.mrf.mxu0
      %v4052 = vadd.f32 %v4003, %v4051
      %4053 = vmatmul.bf16.gmra.mxu0 %v2025
      %v4054 = vpop.f32.mrf.mxu0
      %v4055 = vadd.f32 %v4006, %v4054
      %v4056 = vpop.f32.mrf.mxu0
      %v4057 = vadd.f32 %v4008, %v4056
      %4058 = vmatmul.bf16.gmra.mxu0 %v2065
      %v4059 = vpop.f32.mrf.mxu0
      %v4060 = vadd.f32 %v4011, %v4059
      %v4061 = vpop.f32.mrf.mxu0
      %v4062 = vadd.f32 %v4013, %v4061
      %4063 = vmatmul.bf16.gmra.mxu0 %v2105
      %v4064 = vpop.f32.mrf.mxu0
      %v4065 = vadd.f32 %v4016, %v4064
      %v4066 = vpop.f32.mrf.mxu0
      %v4067 = vadd.f32 %v4018, %v4066
      %4068 = vmatmul.bf16.gmra.mxu0 %v2145
      %v4069 = vpop.f32.mrf.mxu0
      %v4070 = vadd.f32 %v4021, %v4069
      %v4071 = vpop.f32.mrf.mxu0
      %v4072 = vadd.f32 %v4023, %v4071
      %4073 = vmatmul.bf16.gmra.mxu0 %v2185
      %v4074 = vpop.f32.mrf.mxu0
      %v4075 = vadd.f32 %v4026, %v4074
      %v4076 = vpop.f32.mrf.mxu0
      %v4077 = vadd.f32 %v4028, %v4076
      %4078 = vmatmul.bf16.gmra.mxu0 %v2225
      %v4079 = vpop.f32.mrf.mxu0
      %v4080 = vadd.f32 %v4031, %v4079
      %v4081 = vpop.f32.mrf.mxu0
      %v4082 = vadd.f32 %v4033, %v4081
      %4083 = vmatmul.bf16.gmra.mxu0 %v2265
      %v4084 = vpop.f32.mrf.mxu0
      %v4085 = vadd.f32 %v4036, %v4084
      %v4086 = vpop.f32.mrf.mxu0
      %v4087 = vadd.f32 %v4038, %v4086
      %4088 = vdwg.mxu0
      %4089 = vmatpush.bf16.xpose.msra.mxu0 0
      %4090 = vmatpush.bf16.xpose.msra.mxu0 0
      %4091 = vmatpush.bf16.xpose.msra.mxu0 0
      %4092 = vmatpush.bf16.xpose.msra.mxu0 0
      %4093 = vmatpush.bf16.xpose.msra.mxu0 0
      %4094 = vmatpush.bf16.xpose.msra.mxu0 0
      %4095 = vmatpush.bf16.xpose.msra.mxu0 0
      %4096 = vmatpush.bf16.xpose.msra.mxu0 %v2635
      %4097 = vmatmul.bf16.gmra.mxu0 %v1986
      %v4098 = vpop.f32.mrf.mxu0
      %v4099 = vadd.f32 %v4050, %v4098
      %v4100 = vpop.f32.mrf.mxu0
      %v4101 = vadd.f32 %v4052, %v4100
      %4102 = vmatmul.bf16.gmra.mxu0 %v2026
      %v4103 = vpop.f32.mrf.mxu0
      %v4104 = vadd.f32 %v4055, %v4103
      %v4105 = vpop.f32.mrf.mxu0
      %v4106 = vadd.f32 %v4057, %v4105
      %4107 = vmatmul.bf16.gmra.mxu0 %v2066
      %v4108 = vpop.f32.mrf.mxu0
      %v4109 = vadd.f32 %v4060, %v4108
      %v4110 = vpop.f32.mrf.mxu0
      %v4111 = vadd.f32 %v4062, %v4110
      %4112 = vmatmul.bf16.gmra.mxu0 %v2106
      %v4113 = vpop.f32.mrf.mxu0
      %v4114 = vadd.f32 %v4065, %v4113
      %v4115 = vpop.f32.mrf.mxu0
      %v4116 = vadd.f32 %v4067, %v4115
      %4117 = vmatmul.bf16.gmra.mxu0 %v2146
      %v4118 = vpop.f32.mrf.mxu0
      %v4119 = vadd.f32 %v4070, %v4118
      %v4120 = vpop.f32.mrf.mxu0
      %v4121 = vadd.f32 %v4072, %v4120
      %4122 = vmatmul.bf16.gmra.mxu0 %v2186
      %v4123 = vpop.f32.mrf.mxu0
      %v4124 = vadd.f32 %v4075, %v4123
      %v4125 = vpop.f32.mrf.mxu0
      %v4126 = vadd.f32 %v4077, %v4125
      %4127 = vmatmul.bf16.gmra.mxu0 %v2226
      %v4128 = vpop.f32.mrf.mxu0
      %v4129 = vadd.f32 %v4080, %v4128
      %v4130 = vpop.f32.mrf.mxu0
      %v4131 = vadd.f32 %v4082, %v4130
      %4132 = vmatmul.bf16.gmra.mxu0 %v2266
      %v4133 = vpop.f32.mrf.mxu0
      %v4134 = vadd.f32 %v4085, %v4133
      %v4135 = vpop.f32.mrf.mxu0
      %v4136 = vadd.f32 %v4087, %v4135
      %4137 = vdwg.mxu0
      %4138 = vmatpush.bf16.xpose.msra.mxu0 0
      %4139 = vmatpush.bf16.xpose.msra.mxu0 0
      %4140 = vmatpush.bf16.xpose.msra.mxu0 0
      %4141 = vmatpush.bf16.xpose.msra.mxu0 0
      %4142 = vmatpush.bf16.xpose.msra.mxu0 0
      %4143 = vmatpush.bf16.xpose.msra.mxu0 0
      %4144 = vmatpush.bf16.xpose.msra.mxu0 0
      %4145 = vmatpush.bf16.xpose.msra.mxu0 %v2636
      %4146 = vmatmul.bf16.gmra.mxu0 %v1987
      %v4147 = vpop.f32.mrf.mxu0
      %v4148 = vadd.f32 %v4099, %v4147
      %v4149 = vpop.f32.mrf.mxu0
      %v4150 = vadd.f32 %v4101, %v4149
      %4151 = vmatmul.bf16.gmra.mxu0 %v2027
      %v4152 = vpop.f32.mrf.mxu0
      %v4153 = vadd.f32 %v4104, %v4152
      %v4154 = vpop.f32.mrf.mxu0
      %v4155 = vadd.f32 %v4106, %v4154
      %4156 = vmatmul.bf16.gmra.mxu0 %v2067
      %v4157 = vpop.f32.mrf.mxu0
      %v4158 = vadd.f32 %v4109, %v4157
      %v4159 = vpop.f32.mrf.mxu0
      %v4160 = vadd.f32 %v4111, %v4159
      %4161 = vmatmul.bf16.gmra.mxu0 %v2107
      %v4162 = vpop.f32.mrf.mxu0
      %v4163 = vadd.f32 %v4114, %v4162
      %v4164 = vpop.f32.mrf.mxu0
      %v4165 = vadd.f32 %v4116, %v4164
      %4166 = vmatmul.bf16.gmra.mxu0 %v2147
      %v4167 = vpop.f32.mrf.mxu0
      %v4168 = vadd.f32 %v4119, %v4167
      %v4169 = vpop.f32.mrf.mxu0
      %v4170 = vadd.f32 %v4121, %v4169
      %4171 = vmatmul.bf16.gmra.mxu0 %v2187
      %v4172 = vpop.f32.mrf.mxu0
      %v4173 = vadd.f32 %v4124, %v4172
      %v4174 = vpop.f32.mrf.mxu0
      %v4175 = vadd.f32 %v4126, %v4174
      %4176 = vmatmul.bf16.gmra.mxu0 %v2227
      %v4177 = vpop.f32.mrf.mxu0
      %v4178 = vadd.f32 %v4129, %v4177
      %v4179 = vpop.f32.mrf.mxu0
      %v4180 = vadd.f32 %v4131, %v4179
      %4181 = vmatmul.bf16.gmra.mxu0 %v2267
      %v4182 = vpop.f32.mrf.mxu0
      %v4183 = vadd.f32 %v4134, %v4182
      %v4184 = vpop.f32.mrf.mxu0
      %v4185 = vadd.f32 %v4136, %v4184
      %4186 = vdwg.mxu0
      %4187 = vmatpush.bf16.xpose.msra.mxu0 0
      %4188 = vmatpush.bf16.xpose.msra.mxu0 0
      %4189 = vmatpush.bf16.xpose.msra.mxu0 0
      %4190 = vmatpush.bf16.xpose.msra.mxu0 0
      %4191 = vmatpush.bf16.xpose.msra.mxu0 0
      %4192 = vmatpush.bf16.xpose.msra.mxu0 0
      %4193 = vmatpush.bf16.xpose.msra.mxu0 0
      %4194 = vmatpush.bf16.xpose.msra.mxu0 %v2637
      %4195 = vmatmul.bf16.gmra.mxu0 %v1988
      %v4196 = vpop.f32.mrf.mxu0
      %v4197 = vadd.f32 %v4148, %v4196
      %v4198 = vpop.f32.mrf.mxu0
      %v4199 = vadd.f32 %v4150, %v4198
      %4200 = vmatmul.bf16.gmra.mxu0 %v2028
      %v4201 = vpop.f32.mrf.mxu0
      %v4202 = vadd.f32 %v4153, %v4201
      %v4203 = vpop.f32.mrf.mxu0
      %v4204 = vadd.f32 %v4155, %v4203
      %4205 = vmatmul.bf16.gmra.mxu0 %v2068
      %v4206 = vpop.f32.mrf.mxu0
      %v4207 = vadd.f32 %v4158, %v4206
      %v4208 = vpop.f32.mrf.mxu0
      %v4209 = vadd.f32 %v4160, %v4208
      %4210 = vmatmul.bf16.gmra.mxu0 %v2108
      %v4211 = vpop.f32.mrf.mxu0
      %v4212 = vadd.f32 %v4163, %v4211
      %v4213 = vpop.f32.mrf.mxu0
      %v4214 = vadd.f32 %v4165, %v4213
      %4215 = vmatmul.bf16.gmra.mxu0 %v2148
      %v4216 = vpop.f32.mrf.mxu0
      %v4217 = vadd.f32 %v4168, %v4216
      %v4218 = vpop.f32.mrf.mxu0
      %v4219 = vadd.f32 %v4170, %v4218
      %4220 = vmatmul.bf16.gmra.mxu0 %v2188
      %v4221 = vpop.f32.mrf.mxu0
      %v4222 = vadd.f32 %v4173, %v4221
      %v4223 = vpop.f32.mrf.mxu0
      %v4224 = vadd.f32 %v4175, %v4223
      %4225 = vmatmul.bf16.gmra.mxu0 %v2228
      %v4226 = vpop.f32.mrf.mxu0
      %v4227 = vadd.f32 %v4178, %v4226
      %v4228 = vpop.f32.mrf.mxu0
      %v4229 = vadd.f32 %v4180, %v4228
      %4230 = vmatmul.bf16.gmra.mxu0 %v2268
      %v4231 = vpop.f32.mrf.mxu0
      %v4232 = vadd.f32 %v4183, %v4231
      %v4233 = vpop.f32.mrf.mxu0
      %v4234 = vadd.f32 %v4185, %v4233
      %4235 = vdwg.mxu0
      %4236 = vmatpush.bf16.xpose.msra.mxu0 0
      %4237 = vmatpush.bf16.xpose.msra.mxu0 0
      %4238 = vmatpush.bf16.xpose.msra.mxu0 0
      %4239 = vmatpush.bf16.xpose.msra.mxu0 0
      %4240 = vmatpush.bf16.xpose.msra.mxu0 0
      %4241 = vmatpush.bf16.xpose.msra.mxu0 0
      %4242 = vmatpush.bf16.xpose.msra.mxu0 0
      %4243 = vmatpush.bf16.xpose.msra.mxu0 %v2638
      %4244 = vmatmul.bf16.gmra.mxu0 %v1989
      %v4245 = vpop.f32.mrf.mxu0
      %v4246 = vadd.f32 %v4197, %v4245
      %v4247 = vpop.f32.mrf.mxu0
      %v4248 = vadd.f32 %v4199, %v4247
      %4249 = vmatmul.bf16.gmra.mxu0 %v2029
      %v4250 = vpop.f32.mrf.mxu0
      %v4251 = vadd.f32 %v4202, %v4250
      %v4252 = vpop.f32.mrf.mxu0
      %v4253 = vadd.f32 %v4204, %v4252
      %4254 = vmatmul.bf16.gmra.mxu0 %v2069
      %v4255 = vpop.f32.mrf.mxu0
      %v4256 = vadd.f32 %v4207, %v4255
      %v4257 = vpop.f32.mrf.mxu0
      %v4258 = vadd.f32 %v4209, %v4257
      %4259 = vmatmul.bf16.gmra.mxu0 %v2109
      %v4260 = vpop.f32.mrf.mxu0
      %v4261 = vadd.f32 %v4212, %v4260
      %v4262 = vpop.f32.mrf.mxu0
      %v4263 = vadd.f32 %v4214, %v4262
      %4264 = vmatmul.bf16.gmra.mxu0 %v2149
      %v4265 = vpop.f32.mrf.mxu0
      %v4266 = vadd.f32 %v4217, %v4265
      %v4267 = vpop.f32.mrf.mxu0
      %v4268 = vadd.f32 %v4219, %v4267
      %4269 = vmatmul.bf16.gmra.mxu0 %v2189
      %v4270 = vpop.f32.mrf.mxu0
      %v4271 = vadd.f32 %v4222, %v4270
      %v4272 = vpop.f32.mrf.mxu0
      %v4273 = vadd.f32 %v4224, %v4272
      %4274 = vmatmul.bf16.gmra.mxu0 %v2229
      %v4275 = vpop.f32.mrf.mxu0
      %v4276 = vadd.f32 %v4227, %v4275
      %v4277 = vpop.f32.mrf.mxu0
      %v4278 = vadd.f32 %v4229, %v4277
      %4279 = vmatmul.bf16.gmra.mxu0 %v2269
      %v4280 = vpop.f32.mrf.mxu0
      %v4281 = vadd.f32 %v4232, %v4280
      %v4282 = vpop.f32.mrf.mxu0
      %v4283 = vadd.f32 %v4234, %v4282
      %4284 = vdwg.mxu0
      %4285 = vmatpush.bf16.xpose.msra.mxu0 0
      %4286 = vmatpush.bf16.xpose.msra.mxu0 0
      %4287 = vmatpush.bf16.xpose.msra.mxu0 0
      %4288 = vmatpush.bf16.xpose.msra.mxu0 0
      %4289 = vmatpush.bf16.xpose.msra.mxu0 0
      %4290 = vmatpush.bf16.xpose.msra.mxu0 0
      %4291 = vmatpush.bf16.xpose.msra.mxu0 0
      %4292 = vmatpush.bf16.xpose.msra.mxu0 %v2643
      %4293 = vmatmul.bf16.gmra.mxu0 %v1990
      %v4294 = vpop.f32.mrf.mxu0
      %v4295 = vadd.f32 %v4246, %v4294
      %v4296 = vpop.f32.mrf.mxu0
      %v4297 = vadd.f32 %v4248, %v4296
      %4298 = vmatmul.bf16.gmra.mxu0 %v2030
      %v4299 = vpop.f32.mrf.mxu0
      %v4300 = vadd.f32 %v4251, %v4299
      %v4301 = vpop.f32.mrf.mxu0
      %v4302 = vadd.f32 %v4253, %v4301
      %4303 = vmatmul.bf16.gmra.mxu0 %v2070
      %v4304 = vpop.f32.mrf.mxu0
      %v4305 = vadd.f32 %v4256, %v4304
      %v4306 = vpop.f32.mrf.mxu0
      %v4307 = vadd.f32 %v4258, %v4306
      %4308 = vmatmul.bf16.gmra.mxu0 %v2110
      %v4309 = vpop.f32.mrf.mxu0
      %v4310 = vadd.f32 %v4261, %v4309
      %v4311 = vpop.f32.mrf.mxu0
      %v4312 = vadd.f32 %v4263, %v4311
      %4313 = vmatmul.bf16.gmra.mxu0 %v2150
      %v4314 = vpop.f32.mrf.mxu0
      %v4315 = vadd.f32 %v4266, %v4314
      %v4316 = vpop.f32.mrf.mxu0
      %v4317 = vadd.f32 %v4268, %v4316
      %4318 = vmatmul.bf16.gmra.mxu0 %v2190
      %v4319 = vpop.f32.mrf.mxu0
      %v4320 = vadd.f32 %v4271, %v4319
      %v4321 = vpop.f32.mrf.mxu0
      %v4322 = vadd.f32 %v4273, %v4321
      %4323 = vmatmul.bf16.gmra.mxu0 %v2230
      %v4324 = vpop.f32.mrf.mxu0
      %v4325 = vadd.f32 %v4276, %v4324
      %v4326 = vpop.f32.mrf.mxu0
      %v4327 = vadd.f32 %v4278, %v4326
      %4328 = vmatmul.bf16.gmra.mxu0 %v2270
      %v4329 = vpop.f32.mrf.mxu0
      %v4330 = vadd.f32 %v4281, %v4329
      %v4331 = vpop.f32.mrf.mxu0
      %v4332 = vadd.f32 %v4283, %v4331
      %4333 = vdwg.mxu0
      %4334 = vmatpush.bf16.xpose.msra.mxu0 0
      %4335 = vmatpush.bf16.xpose.msra.mxu0 0
      %4336 = vmatpush.bf16.xpose.msra.mxu0 0
      %4337 = vmatpush.bf16.xpose.msra.mxu0 0
      %4338 = vmatpush.bf16.xpose.msra.mxu0 0
      %4339 = vmatpush.bf16.xpose.msra.mxu0 0
      %4340 = vmatpush.bf16.xpose.msra.mxu0 0
      %4341 = vmatpush.bf16.xpose.msra.mxu0 %v2644
      %4342 = vmatmul.bf16.gmra.mxu0 %v1991
      %v4343 = vpop.f32.mrf.mxu0
      %v4344 = vadd.f32 %v4295, %v4343
      %v4345 = vpop.f32.mrf.mxu0
      %v4346 = vadd.f32 %v4297, %v4345
      %4347 = vmatmul.bf16.gmra.mxu0 %v2031
      %v4348 = vpop.f32.mrf.mxu0
      %v4349 = vadd.f32 %v4300, %v4348
      %v4350 = vpop.f32.mrf.mxu0
      %v4351 = vadd.f32 %v4302, %v4350
      %4352 = vmatmul.bf16.gmra.mxu0 %v2071
      %v4353 = vpop.f32.mrf.mxu0
      %v4354 = vadd.f32 %v4305, %v4353
      %v4355 = vpop.f32.mrf.mxu0
      %v4356 = vadd.f32 %v4307, %v4355
      %4357 = vmatmul.bf16.gmra.mxu0 %v2111
      %v4358 = vpop.f32.mrf.mxu0
      %v4359 = vadd.f32 %v4310, %v4358
      %v4360 = vpop.f32.mrf.mxu0
      %v4361 = vadd.f32 %v4312, %v4360
      %4362 = vmatmul.bf16.gmra.mxu0 %v2151
      %v4363 = vpop.f32.mrf.mxu0
      %v4364 = vadd.f32 %v4315, %v4363
      %v4365 = vpop.f32.mrf.mxu0
      %v4366 = vadd.f32 %v4317, %v4365
      %4367 = vmatmul.bf16.gmra.mxu0 %v2191
      %v4368 = vpop.f32.mrf.mxu0
      %v4369 = vadd.f32 %v4320, %v4368
      %v4370 = vpop.f32.mrf.mxu0
      %v4371 = vadd.f32 %v4322, %v4370
      %4372 = vmatmul.bf16.gmra.mxu0 %v2231
      %v4373 = vpop.f32.mrf.mxu0
      %v4374 = vadd.f32 %v4325, %v4373
      %v4375 = vpop.f32.mrf.mxu0
      %v4376 = vadd.f32 %v4327, %v4375
      %4377 = vmatmul.bf16.gmra.mxu0 %v2271
      %v4378 = vpop.f32.mrf.mxu0
      %v4379 = vadd.f32 %v4330, %v4378
      %v4380 = vpop.f32.mrf.mxu0
      %v4381 = vadd.f32 %v4332, %v4380
      %4382 = vdwg.mxu0
      %4383 = vmatpush.bf16.xpose.msra.mxu0 0
      %4384 = vmatpush.bf16.xpose.msra.mxu0 0
      %4385 = vmatpush.bf16.xpose.msra.mxu0 0
      %4386 = vmatpush.bf16.xpose.msra.mxu0 0
      %4387 = vmatpush.bf16.xpose.msra.mxu0 0
      %4388 = vmatpush.bf16.xpose.msra.mxu0 0
      %4389 = vmatpush.bf16.xpose.msra.mxu0 0
      %4390 = vmatpush.bf16.xpose.msra.mxu0 %v2645
      %4391 = vmatmul.bf16.gmra.mxu0 %v1992
      %v4392 = vpop.f32.mrf.mxu0
      %v4393 = vadd.f32 %v4344, %v4392
      %v4394 = vpop.f32.mrf.mxu0
      %v4395 = vadd.f32 %v4346, %v4394
      %4396 = vmatmul.bf16.gmra.mxu0 %v2032
      %v4397 = vpop.f32.mrf.mxu0
      %v4398 = vadd.f32 %v4349, %v4397
      %v4399 = vpop.f32.mrf.mxu0
      %v4400 = vadd.f32 %v4351, %v4399
      %4401 = vmatmul.bf16.gmra.mxu0 %v2072
      %v4402 = vpop.f32.mrf.mxu0
      %v4403 = vadd.f32 %v4354, %v4402
      %v4404 = vpop.f32.mrf.mxu0
      %v4405 = vadd.f32 %v4356, %v4404
      %4406 = vmatmul.bf16.gmra.mxu0 %v2112
      %v4407 = vpop.f32.mrf.mxu0
      %v4408 = vadd.f32 %v4359, %v4407
      %v4409 = vpop.f32.mrf.mxu0
      %v4410 = vadd.f32 %v4361, %v4409
      %4411 = vmatmul.bf16.gmra.mxu0 %v2152
      %v4412 = vpop.f32.mrf.mxu0
      %v4413 = vadd.f32 %v4364, %v4412
      %v4414 = vpop.f32.mrf.mxu0
      %v4415 = vadd.f32 %v4366, %v4414
      %4416 = vmatmul.bf16.gmra.mxu0 %v2192
      %v4417 = vpop.f32.mrf.mxu0
      %v4418 = vadd.f32 %v4369, %v4417
      %v4419 = vpop.f32.mrf.mxu0
      %v4420 = vadd.f32 %v4371, %v4419
      %4421 = vmatmul.bf16.gmra.mxu0 %v2232
      %v4422 = vpop.f32.mrf.mxu0
      %v4423 = vadd.f32 %v4374, %v4422
      %v4424 = vpop.f32.mrf.mxu0
      %v4425 = vadd.f32 %v4376, %v4424
      %4426 = vmatmul.bf16.gmra.mxu0 %v2272
      %v4427 = vpop.f32.mrf.mxu0
      %v4428 = vadd.f32 %v4379, %v4427
      %v4429 = vpop.f32.mrf.mxu0
      %v4430 = vadd.f32 %v4381, %v4429
      %4431 = vdwg.mxu0
      %4432 = vmatpush.bf16.xpose.msra.mxu0 0
      %4433 = vmatpush.bf16.xpose.msra.mxu0 0
      %4434 = vmatpush.bf16.xpose.msra.mxu0 0
      %4435 = vmatpush.bf16.xpose.msra.mxu0 0
      %4436 = vmatpush.bf16.xpose.msra.mxu0 0
      %4437 = vmatpush.bf16.xpose.msra.mxu0 0
      %4438 = vmatpush.bf16.xpose.msra.mxu0 0
      %4439 = vmatpush.bf16.xpose.msra.mxu0 %v2646
      %4440 = vmatmul.bf16.gmra.mxu0 %v1993
      %v4441 = vpop.f32.mrf.mxu0
      %v4442 = vadd.f32 %v4393, %v4441
      %v4443 = vpop.f32.mrf.mxu0
      %v4444 = vadd.f32 %v4395, %v4443
      %4445 = vmatmul.bf16.gmra.mxu0 %v2033
      %v4446 = vpop.f32.mrf.mxu0
      %v4447 = vadd.f32 %v4398, %v4446
      %v4448 = vpop.f32.mrf.mxu0
      %v4449 = vadd.f32 %v4400, %v4448
      %4450 = vmatmul.bf16.gmra.mxu0 %v2073
      %v4451 = vpop.f32.mrf.mxu0
      %v4452 = vadd.f32 %v4403, %v4451
      %v4453 = vpop.f32.mrf.mxu0
      %v4454 = vadd.f32 %v4405, %v4453
      %4455 = vmatmul.bf16.gmra.mxu0 %v2113
      %v4456 = vpop.f32.mrf.mxu0
      %v4457 = vadd.f32 %v4408, %v4456
      %v4458 = vpop.f32.mrf.mxu0
      %v4459 = vadd.f32 %v4410, %v4458
      %4460 = vmatmul.bf16.gmra.mxu0 %v2153
      %v4461 = vpop.f32.mrf.mxu0
      %v4462 = vadd.f32 %v4413, %v4461
      %v4463 = vpop.f32.mrf.mxu0
      %v4464 = vadd.f32 %v4415, %v4463
      %4465 = vmatmul.bf16.gmra.mxu0 %v2193
      %v4466 = vpop.f32.mrf.mxu0
      %v4467 = vadd.f32 %v4418, %v4466
      %v4468 = vpop.f32.mrf.mxu0
      %v4469 = vadd.f32 %v4420, %v4468
      %4470 = vmatmul.bf16.gmra.mxu0 %v2233
      %v4471 = vpop.f32.mrf.mxu0
      %v4472 = vadd.f32 %v4423, %v4471
      %v4473 = vpop.f32.mrf.mxu0
      %v4474 = vadd.f32 %v4425, %v4473
      %4475 = vmatmul.bf16.gmra.mxu0 %v2273
      %v4476 = vpop.f32.mrf.mxu0
      %v4477 = vadd.f32 %v4428, %v4476
      %v4478 = vpop.f32.mrf.mxu0
      %v4479 = vadd.f32 %v4430, %v4478
      %4480 = vdwg.mxu0
      %4481 = vmatpush.bf16.xpose.msra.mxu0 0
      %4482 = vmatpush.bf16.xpose.msra.mxu0 0
      %4483 = vmatpush.bf16.xpose.msra.mxu0 0
      %4484 = vmatpush.bf16.xpose.msra.mxu0 0
      %4485 = vmatpush.bf16.xpose.msra.mxu0 0
      %4486 = vmatpush.bf16.xpose.msra.mxu0 0
      %4487 = vmatpush.bf16.xpose.msra.mxu0 0
      %4488 = vmatpush.bf16.xpose.msra.mxu0 %v2647
      %4489 = vmatmul.bf16.gmra.mxu0 %v1994
      %v4490 = vpop.f32.mrf.mxu0
      %v4491 = vadd.f32 %v4442, %v4490
      %v4492 = vpop.f32.mrf.mxu0
      %v4493 = vadd.f32 %v4444, %v4492
      %4494 = vmatmul.bf16.gmra.mxu0 %v2034
      %v4495 = vpop.f32.mrf.mxu0
      %v4496 = vadd.f32 %v4447, %v4495
      %v4497 = vpop.f32.mrf.mxu0
      %v4498 = vadd.f32 %v4449, %v4497
      %4499 = vmatmul.bf16.gmra.mxu0 %v2074
      %v4500 = vpop.f32.mrf.mxu0
      %v4501 = vadd.f32 %v4452, %v4500
      %v4502 = vpop.f32.mrf.mxu0
      %v4503 = vadd.f32 %v4454, %v4502
      %4504 = vmatmul.bf16.gmra.mxu0 %v2114
      %v4505 = vpop.f32.mrf.mxu0
      %v4506 = vadd.f32 %v4457, %v4505
      %v4507 = vpop.f32.mrf.mxu0
      %v4508 = vadd.f32 %v4459, %v4507
      %4509 = vmatmul.bf16.gmra.mxu0 %v2154
      %v4510 = vpop.f32.mrf.mxu0
      %v4511 = vadd.f32 %v4462, %v4510
      %v4512 = vpop.f32.mrf.mxu0
      %v4513 = vadd.f32 %v4464, %v4512
      %4514 = vmatmul.bf16.gmra.mxu0 %v2194
      %v4515 = vpop.f32.mrf.mxu0
      %v4516 = vadd.f32 %v4467, %v4515
      %v4517 = vpop.f32.mrf.mxu0
      %v4518 = vadd.f32 %v4469, %v4517
      %4519 = vmatmul.bf16.gmra.mxu0 %v2234
      %v4520 = vpop.f32.mrf.mxu0
      %v4521 = vadd.f32 %v4472, %v4520
      %v4522 = vpop.f32.mrf.mxu0
      %v4523 = vadd.f32 %v4474, %v4522
      %4524 = vmatmul.bf16.gmra.mxu0 %v2274
      %v4525 = vpop.f32.mrf.mxu0
      %v4526 = vadd.f32 %v4477, %v4525
      %v4527 = vpop.f32.mrf.mxu0
      %v4528 = vadd.f32 %v4479, %v4527
      %4529 = vdwg.mxu0
      %4530 = vmatpush.bf16.xpose.msra.mxu0 0
      %4531 = vmatpush.bf16.xpose.msra.mxu0 0
      %4532 = vmatpush.bf16.xpose.msra.mxu0 0
      %4533 = vmatpush.bf16.xpose.msra.mxu0 0
      %4534 = vmatpush.bf16.xpose.msra.mxu0 0
      %4535 = vmatpush.bf16.xpose.msra.mxu0 0
      %4536 = vmatpush.bf16.xpose.msra.mxu0 0
      %4537 = vmatpush.bf16.xpose.msra.mxu0 %v2648
      %4538 = vmatmul.bf16.gmra.mxu0 %v1995
      %v4539 = vpop.f32.mrf.mxu0
      %v4540 = vadd.f32 %v4491, %v4539
      %v4541 = vpop.f32.mrf.mxu0
      %v4542 = vadd.f32 %v4493, %v4541
      %4543 = vmatmul.bf16.gmra.mxu0 %v2035
      %v4544 = vpop.f32.mrf.mxu0
      %v4545 = vadd.f32 %v4496, %v4544
      %v4546 = vpop.f32.mrf.mxu0
      %v4547 = vadd.f32 %v4498, %v4546
      %4548 = vmatmul.bf16.gmra.mxu0 %v2075
      %v4549 = vpop.f32.mrf.mxu0
      %v4550 = vadd.f32 %v4501, %v4549
      %v4551 = vpop.f32.mrf.mxu0
      %v4552 = vadd.f32 %v4503, %v4551
      %4553 = vmatmul.bf16.gmra.mxu0 %v2115
      %v4554 = vpop.f32.mrf.mxu0
      %v4555 = vadd.f32 %v4506, %v4554
      %v4556 = vpop.f32.mrf.mxu0
      %v4557 = vadd.f32 %v4508, %v4556
      %4558 = vmatmul.bf16.gmra.mxu0 %v2155
      %v4559 = vpop.f32.mrf.mxu0
      %v4560 = vadd.f32 %v4511, %v4559
      %v4561 = vpop.f32.mrf.mxu0
      %v4562 = vadd.f32 %v4513, %v4561
      %4563 = vmatmul.bf16.gmra.mxu0 %v2195
      %v4564 = vpop.f32.mrf.mxu0
      %v4565 = vadd.f32 %v4516, %v4564
      %v4566 = vpop.f32.mrf.mxu0
      %v4567 = vadd.f32 %v4518, %v4566
      %4568 = vmatmul.bf16.gmra.mxu0 %v2235
      %v4569 = vpop.f32.mrf.mxu0
      %v4570 = vadd.f32 %v4521, %v4569
      %v4571 = vpop.f32.mrf.mxu0
      %v4572 = vadd.f32 %v4523, %v4571
      %4573 = vmatmul.bf16.gmra.mxu0 %v2275
      %v4574 = vpop.f32.mrf.mxu0
      %v4575 = vadd.f32 %v4526, %v4574
      %v4576 = vpop.f32.mrf.mxu0
      %v4577 = vadd.f32 %v4528, %v4576
      %4578 = vdwg.mxu0
      %4579 = vmatpush.bf16.xpose.msra.mxu0 0
      %4580 = vmatpush.bf16.xpose.msra.mxu0 0
      %4581 = vmatpush.bf16.xpose.msra.mxu0 0
      %4582 = vmatpush.bf16.xpose.msra.mxu0 0
      %4583 = vmatpush.bf16.xpose.msra.mxu0 0
      %4584 = vmatpush.bf16.xpose.msra.mxu0 0
      %4585 = vmatpush.bf16.xpose.msra.mxu0 0
      %4586 = vmatpush.bf16.xpose.msra.mxu0 %v2649
      %4587 = vmatmul.bf16.gmra.mxu0 %v1996
      %v4588 = vpop.f32.mrf.mxu0
      %v4589 = vadd.f32 %v4540, %v4588
      %v4590 = vpop.f32.mrf.mxu0
      %v4591 = vadd.f32 %v4542, %v4590
      %4592 = vmatmul.bf16.gmra.mxu0 %v2036
      %v4593 = vpop.f32.mrf.mxu0
      %v4594 = vadd.f32 %v4545, %v4593
      %v4595 = vpop.f32.mrf.mxu0
      %v4596 = vadd.f32 %v4547, %v4595
      %4597 = vmatmul.bf16.gmra.mxu0 %v2076
      %v4598 = vpop.f32.mrf.mxu0
      %v4599 = vadd.f32 %v4550, %v4598
      %v4600 = vpop.f32.mrf.mxu0
      %v4601 = vadd.f32 %v4552, %v4600
      %4602 = vmatmul.bf16.gmra.mxu0 %v2116
      %v4603 = vpop.f32.mrf.mxu0
      %v4604 = vadd.f32 %v4555, %v4603
      %v4605 = vpop.f32.mrf.mxu0
      %v4606 = vadd.f32 %v4557, %v4605
      %4607 = vmatmul.bf16.gmra.mxu0 %v2156
      %v4608 = vpop.f32.mrf.mxu0
      %v4609 = vadd.f32 %v4560, %v4608
      %v4610 = vpop.f32.mrf.mxu0
      %v4611 = vadd.f32 %v4562, %v4610
      %4612 = vmatmul.bf16.gmra.mxu0 %v2196
      %v4613 = vpop.f32.mrf.mxu0
      %v4614 = vadd.f32 %v4565, %v4613
      %v4615 = vpop.f32.mrf.mxu0
      %v4616 = vadd.f32 %v4567, %v4615
      %4617 = vmatmul.bf16.gmra.mxu0 %v2236
      %v4618 = vpop.f32.mrf.mxu0
      %v4619 = vadd.f32 %v4570, %v4618
      %v4620 = vpop.f32.mrf.mxu0
      %v4621 = vadd.f32 %v4572, %v4620
      %4622 = vmatmul.bf16.gmra.mxu0 %v2276
      %v4623 = vpop.f32.mrf.mxu0
      %v4624 = vadd.f32 %v4575, %v4623
      %v4625 = vpop.f32.mrf.mxu0
      %v4626 = vadd.f32 %v4577, %v4625
      %4627 = vdwg.mxu0
      %4628 = vmatpush.bf16.xpose.msra.mxu0 0
      %4629 = vmatpush.bf16.xpose.msra.mxu0 0
      %4630 = vmatpush.bf16.xpose.msra.mxu0 0
      %4631 = vmatpush.bf16.xpose.msra.mxu0 0
      %4632 = vmatpush.bf16.xpose.msra.mxu0 0
      %4633 = vmatpush.bf16.xpose.msra.mxu0 0
      %4634 = vmatpush.bf16.xpose.msra.mxu0 0
      %4635 = vmatpush.bf16.xpose.msra.mxu0 %v2715
      %4636 = vmatmul.bf16.gmra.mxu0 %v2692
      %v4637 = vpop.f32.mrf.mxu0
      %v4638 = vadd.f32 %v4589, %v4637
      %v4639 = vpop.f32.mrf.mxu0
      %v4640 = vadd.f32 %v4591, %v4639
      %4641 = vmatmul.bf16.gmra.mxu0 %v2695
      %v4642 = vpop.f32.mrf.mxu0
      %v4643 = vadd.f32 %v4594, %v4642
      %v4644 = vpop.f32.mrf.mxu0
      %v4645 = vadd.f32 %v4596, %v4644
      %4646 = vmatmul.bf16.gmra.mxu0 %v2698
      %v4647 = vpop.f32.mrf.mxu0
      %v4648 = vadd.f32 %v4599, %v4647
      %v4649 = vpop.f32.mrf.mxu0
      %v4650 = vadd.f32 %v4601, %v4649
      %4651 = vmatmul.bf16.gmra.mxu0 %v2701
      %v4652 = vpop.f32.mrf.mxu0
      %v4653 = vadd.f32 %v4604, %v4652
      %v4654 = vpop.f32.mrf.mxu0
      %v4655 = vadd.f32 %v4606, %v4654
      %4656 = vmatmul.bf16.gmra.mxu0 %v2704
      %v4657 = vpop.f32.mrf.mxu0
      %v4658 = vadd.f32 %v4609, %v4657
      %v4659 = vpop.f32.mrf.mxu0
      %v4660 = vadd.f32 %v4611, %v4659
      %4661 = vmatmul.bf16.gmra.mxu0 %v2707
      %v4662 = vpop.f32.mrf.mxu0
      %v4663 = vadd.f32 %v4614, %v4662
      %v4664 = vpop.f32.mrf.mxu0
      %v4665 = vadd.f32 %v4616, %v4664
      %4666 = vmatmul.bf16.gmra.mxu0 %v2710
      %v4667 = vpop.f32.mrf.mxu0
      %v4668 = vadd.f32 %v4619, %v4667
      %v4669 = vpop.f32.mrf.mxu0
      %v4670 = vadd.f32 %v4621, %v4669
      %4671 = vmatmul.bf16.gmra.mxu0 %v2713
      %v4672 = vpop.f32.mrf.mxu0
      %v4673 = vadd.f32 %v4624, %v4672
      %v4674 = vpop.f32.mrf.mxu0
      %v4675 = vadd.f32 %v4626, %v4674
      %4676 = vdwg.mxu0
      %v4677 = vtanh.pop %v4638
      %v4678 = vtanh.pop %v4640
      %v4679 = vtanh.pop %v4643
      %v4680 = vtanh.pop %v4645
      %v4681 = vtanh.pop %v4648
      %v4682 = vtanh.pop %v4650
      %v4683 = vtanh.pop %v4653
      %v4684 = vtanh.pop %v4655
      %v4685 = vtanh.pop %v4658
      %v4686 = vtanh.pop %v4660
      %v4687 = vtanh.pop %v4663
      %v4688 = vtanh.pop %v4665
      %v4689 = vtanh.pop %v4668
      %v4690 = vtanh.pop %v4670
      %v4691 = vtanh.pop %v4673
      %v4692 = vtanh.pop %v4675
      %v4693 = vld [vmem:[%s3] sm:$0x7]
      %v4694 = vld [vmem:[%s4] sm:$0x1]
      %v4696 = vperm.slane %v4694, 0
      %vm4698 = vcmask 23552
      %v4700 = vsel %vm4698, %v4677, 0
      %v4703 = vsel %vm4698, %v4678, 0
      %v4706 = vsel %vm4698, %v4679, 0
      %v4709 = vsel %vm4698, %v4680, 0
      %v4712 = vsel %vm4698, %v4681, 0
      %v4715 = vsel %vm4698, %v4682, 0
      %v4718 = vsel %vm4698, %v4683, 0
      %v4721 = vsel %vm4698, %v4684, 0
      %v4724 = vsel %vm4698, %v4685, 0
      %v4727 = vsel %vm4698, %v4686, 0
      %v4730 = vsel %vm4698, %v4687, 0
      %v4733 = vsel %vm4698, %v4688, 0
      %v4736 = vsel %vm4698, %v4689, 0
      %v4739 = vsel %vm4698, %v4690, 0
      %v4742 = vsel %vm4698, %v4691, 0
      %v4745 = vsel %vm4698, %v4692, 0
      %vm4747 = vcmask 1042432
      %v4749 = vsel %vm4747, %v4693, 0
      %4751 = vmatpush.msra.mxu0 0.0
      %4752 = vmatpush.msra.mxu0 0.0
      %4753 = vmatpush.msra.mxu0 0.0
      %4754 = vmatpush.msra.mxu0 0.0
      %4755 = vmatpush.msra.mxu0 0.0
      %4756 = vmatpush.msra.mxu0 0.0
      %4757 = vmatpush.msra.mxu0 0.0
      %4758 = vmatpush.msra.mxu0 0.0
      %4759 = vmatpush.msra.mxu0 0.0
      %4760 = vmatpush.msra.mxu0 0.0
      %4761 = vmatpush.msra.mxu0 0.0
      %4762 = vmatpush.msra.mxu0 0.0
      %4763 = vmatpush.msra.mxu0 0.0
      %4764 = vmatpush.msra.mxu0 0.0
      %4765 = vmatpush.msra.mxu0 0.0
      %4766 = vmatpush.msra.mxu0 %v4749
      %4767 = vmatmul.f32.gmra.mxu0 %v4700
      %v4768 = vpop.f32.mrf.mxu0
      %v4769 = vadd.f32 %v4696, %v4768
      %4770 = vmatmul.f32.gmra.mxu0 %v4703
      %v4771 = vpop.f32.mrf.mxu0
      %v4772 = vadd.f32 %v4696, %v4771
      %4773 = vmatmul.f32.gmra.mxu0 %v4706
      %v4774 = vpop.f32.mrf.mxu0
      %v4775 = vadd.f32 %v4696, %v4774
      %4776 = vmatmul.f32.gmra.mxu0 %v4709
      %v4777 = vpop.f32.mrf.mxu0
      %v4778 = vadd.f32 %v4696, %v4777
      %4779 = vmatmul.f32.gmra.mxu0 %v4712
      %v4780 = vpop.f32.mrf.mxu0
      %v4781 = vadd.f32 %v4696, %v4780
      %4782 = vmatmul.f32.gmra.mxu0 %v4715
      %v4783 = vpop.f32.mrf.mxu0
      %v4784 = vadd.f32 %v4696, %v4783
      %4785 = vmatmul.f32.gmra.mxu0 %v4718
      %v4786 = vpop.f32.mrf.mxu0
      %v4787 = vadd.f32 %v4696, %v4786
      %4788 = vmatmul.f32.gmra.mxu0 %v4721
      %v4789 = vpop.f32.mrf.mxu0
      %v4790 = vadd.f32 %v4696, %v4789
      %4791 = vmatmul.f32.gmra.mxu0 %v4724
      %v4792 = vpop.f32.mrf.mxu0
      %v4793 = vadd.f32 %v4696, %v4792
      %4794 = vmatmul.f32.gmra.mxu0 %v4727
      %v4795 = vpop.f32.mrf.mxu0
      %v4796 = vadd.f32 %v4696, %v4795
      %4797 = vmatmul.f32.gmra.mxu0 %v4730
      %v4798 = vpop.f32.mrf.mxu0
      %v4799 = vadd.f32 %v4696, %v4798
      %4800 = vmatmul.f32.gmra.mxu0 %v4733
      %v4801 = vpop.f32.mrf.mxu0
      %v4802 = vadd.f32 %v4696, %v4801
      %4803 = vmatmul.f32.gmra.mxu0 %v4736
      %v4804 = vpop.f32.mrf.mxu0
      %v4805 = vadd.f32 %v4696, %v4804
      %4806 = vmatmul.f32.gmra.mxu0 %v4739
      %v4807 = vpop.f32.mrf.mxu0
      %v4808 = vadd.f32 %v4696, %v4807
      %4809 = vmatmul.f32.gmra.mxu0 %v4742
      %v4810 = vpop.f32.mrf.mxu0
      %v4811 = vadd.f32 %v4696, %v4810
      %4812 = vmatmul.f32.gmra.mxu0 %v4745
      %v4813 = vpop.f32.mrf.mxu0
      %v4814 = vadd.f32 %v4696, %v4813
      %4815 = vdwg.mxu0
      %v4816 = vtanh.pop %v4769
      %v4817 = vtanh.pop %v4772
      %v4818 = vtanh.pop %v4775
      %v4819 = vtanh.pop %v4778
      %v4820 = vtanh.pop %v4781
      %v4821 = vtanh.pop %v4784
      %v4822 = vtanh.pop %v4787
      %v4823 = vtanh.pop %v4790
      %v4824 = vtanh.pop %v4793
      %v4825 = vtanh.pop %v4796
      %v4826 = vtanh.pop %v4799
      %v4827 = vtanh.pop %v4802
      %v4828 = vtanh.pop %v4805
      %v4829 = vtanh.pop %v4808
      %v4830 = vtanh.pop %v4811
      %v4831 = vtanh.pop %v4814
      %v4832 = vld [vmem:[%s5] sm:$0xff]
      %v4833 = vld [vmem:[%s5 + $0x8] sm:$0xff]
      %v4834 = vld [vmem:[%s5 + $0x10] sm:$0xf]
      %v4835 = vld [vmem:[%s6] sm:$0x1]
      %v4837 = vperm.slane %v4835, 0
      %vm4839 = vcmask 162816
      %v4841 = vsel %vm4839, %v4816, 0
      %v4844 = vsel %vm4839, %v4817, 0
      %v4847 = vsel %vm4839, %v4818, 0
      %v4850 = vsel %vm4839, %v4819, 0
      %v4853 = vsel %vm4839, %v4820, 0
      %v4856 = vsel %vm4839, %v4821, 0
      %v4859 = vsel %vm4839, %v4822, 0
      %v4862 = vsel %vm4839, %v4823, 0
      %v4865 = vsel %vm4839, %v4824, 0
      %v4868 = vsel %vm4839, %v4825, 0
      %v4871 = vsel %vm4839, %v4826, 0
      %v4874 = vsel %vm4839, %v4827, 0
      %v4877 = vsel %vm4839, %v4828, 0
      %v4880 = vsel %vm4839, %v4829, 0
      %v4883 = vsel %vm4839, %v4830, 0
      %v4886 = vsel %vm4839, %v4831, 0
      %vm4888 = vcmask 1043456
      %v4890 = vsel %vm4888, %v4834, 0
      %4892 = vmatpush.msra.mxu0 0.0
      %4893 = vmatpush.msra.mxu0 0.0
      %4894 = vmatpush.msra.mxu0 0.0
      %4895 = vmatpush.msra.mxu0 0.0
      %4896 = vmatpush.msra.mxu0 0.0
      %4897 = vmatpush.msra.mxu0 0.0
      %4898 = vmatpush.msra.mxu0 0.0
      %4899 = vmatpush.msra.mxu0 0.0
      %4900 = vmatpush.msra.mxu0 0.0
      %4901 = vmatpush.msra.mxu0 0.0
      %4902 = vmatpush.msra.mxu0 0.0
      %4903 = vmatpush.msra.mxu0 0.0
      %4904 = vmatpush.msra.mxu0 0.0
      %4905 = vmatpush.msra.mxu0 %v4890
      %4906 = vmatpush.msra.mxu0 %v4833
      %4907 = vmatpush.msra.mxu0 %v4832
      %4908 = vmatmul.f32.gmra.mxu0 %v4841
      %v4909 = vpop.f32.mrf.mxu0
      %v4910 = vadd.f32 %v4837, %v4909
      %4911 = vmatmul.f32.gmra.mxu0 %v4844
      %v4912 = vpop.f32.mrf.mxu0
      %v4913 = vadd.f32 %v4837, %v4912
      %4914 = vmatmul.f32.gmra.mxu0 %v4847
      %v4915 = vpop.f32.mrf.mxu0
      %v4916 = vadd.f32 %v4837, %v4915
      %4917 = vmatmul.f32.gmra.mxu0 %v4850
      %v4918 = vpop.f32.mrf.mxu0
      %v4919 = vadd.f32 %v4837, %v4918
      %4920 = vmatmul.f32.gmra.mxu0 %v4853
      %v4921 = vpop.f32.mrf.mxu0
      %v4922 = vadd.f32 %v4837, %v4921
      %4923 = vmatmul.f32.gmra.mxu0 %v4856
      %v4924 = vpop.f32.mrf.mxu0
      %v4925 = vadd.f32 %v4837, %v4924
      %4926 = vmatmul.f32.gmra.mxu0 %v4859
      %v4927 = vpop.f32.mrf.mxu0
      %v4928 = vadd.f32 %v4837, %v4927
      %4929 = vmatmul.f32.gmra.mxu0 %v4862
      %v4930 = vpop.f32.mrf.mxu0
      %v4931 = vadd.f32 %v4837, %v4930
      %4932 = vmatmul.f32.gmra.mxu0 %v4865
      %v4933 = vpop.f32.mrf.mxu0
      %v4934 = vadd.f32 %v4837, %v4933
      %4935 = vmatmul.f32.gmra.mxu0 %v4868
      %v4936 = vpop.f32.mrf.mxu0
      %v4937 = vadd.f32 %v4837, %v4936
      %4938 = vmatmul.f32.gmra.mxu0 %v4871
      %v4939 = vpop.f32.mrf.mxu0
      %v4940 = vadd.f32 %v4837, %v4939
      %4941 = vmatmul.f32.gmra.mxu0 %v4874
      %v4942 = vpop.f32.mrf.mxu0
      %v4943 = vadd.f32 %v4837, %v4942
      %4944 = vmatmul.f32.gmra.mxu0 %v4877
      %v4945 = vpop.f32.mrf.mxu0
      %v4946 = vadd.f32 %v4837, %v4945
      %4947 = vmatmul.f32.gmra.mxu0 %v4880
      %v4948 = vpop.f32.mrf.mxu0
      %v4949 = vadd.f32 %v4837, %v4948
      %4950 = vmatmul.f32.gmra.mxu0 %v4883
      %v4951 = vpop.f32.mrf.mxu0
      %v4952 = vadd.f32 %v4837, %v4951
      %4953 = vmatmul.f32.gmra.mxu0 %v4886
      %v4954 = vpop.f32.mrf.mxu0
      %v4955 = vadd.f32 %v4837, %v4954
      %4956 = vdwg.mxu0
      %v4957 = vtanh.pop %v4910
      %v4958 = vtanh.pop %v4913
      %v4959 = vtanh.pop %v4916
      %v4960 = vtanh.pop %v4919
      %v4961 = vtanh.pop %v4922
      %v4962 = vtanh.pop %v4925
      %v4963 = vtanh.pop %v4928
      %v4964 = vtanh.pop %v4931
      %v4965 = vtanh.pop %v4934
      %v4966 = vtanh.pop %v4937
      %v4967 = vtanh.pop %v4940
      %v4968 = vtanh.pop %v4943
      %v4969 = vtanh.pop %v4946
      %v4970 = vtanh.pop %v4949
      %v4971 = vtanh.pop %v4952
      %v4972 = vtanh.pop %v4955
      %v4973 = vld [vmem:[%s7] sm:$0xff]
      %v4974 = vld [vmem:[%s7 + $0x8] sm:$0xff]
      %v4975 = vld [vmem:[%s7 + $0x10] sm:$0xf]
      %v4976 = vld [vmem:[%s8] sm:$0x1]
      %v4978 = vperm.slane %v4976, 0
      %v4981 = vsel %vm4839, %v4957, 0
      %v4984 = vsel %vm4839, %v4958, 0
      %v4987 = vsel %vm4839, %v4959, 0
      %v4990 = vsel %vm4839, %v4960, 0
      %v4993 = vsel %vm4839, %v4961, 0
      %v4996 = vsel %vm4839, %v4962, 0
      %v4999 = vsel %vm4839, %v4963, 0
      %v5002 = vsel %vm4839, %v4964, 0
      %v5005 = vsel %vm4839, %v4965, 0
      %v5008 = vsel %vm4839, %v4966, 0
      %v5011 = vsel %vm4839, %v4967, 0
      %v5014 = vsel %vm4839, %v4968, 0
      %v5017 = vsel %vm4839, %v4969, 0
      %v5020 = vsel %vm4839, %v4970, 0
      %v5023 = vsel %vm4839, %v4971, 0
      %v5026 = vsel %vm4839, %v4972, 0
      %v5029 = vsel %vm4888, %v4975, 0
      %5031 = vmatpush.msra.mxu0 0.0
      %5032 = vmatpush.msra.mxu0 0.0
      %5033 = vmatpush.msra.mxu0 0.0
      %5034 = vmatpush.msra.mxu0 0.0
      %5035 = vmatpush.msra.mxu0 0.0
      %5036 = vmatpush.msra.mxu0 0.0
      %5037 = vmatpush.msra.mxu0 0.0
      %5038 = vmatpush.msra.mxu0 0.0
      %5039 = vmatpush.msra.mxu0 0.0
      %5040 = vmatpush.msra.mxu0 0.0
      %5041 = vmatpush.msra.mxu0 0.0
      %5042 = vmatpush.msra.mxu0 0.0
      %5043 = vmatpush.msra.mxu0 0.0
      %5044 = vmatpush.msra.mxu0 %v5029
      %5045 = vmatpush.msra.mxu0 %v4974
      %5046 = vmatpush.msra.mxu0 %v4973
      %5047 = vmatmul.f32.gmra.mxu0 %v4981
      %v5048 = vpop.f32.mrf.mxu0
      %v5049 = vadd.f32 %v4978, %v5048
      %5050 = vmatmul.f32.gmra.mxu0 %v4984
      %v5051 = vpop.f32.mrf.mxu0
      %v5052 = vadd.f32 %v4978, %v5051
      %5053 = vmatmul.f32.gmra.mxu0 %v4987
      %v5054 = vpop.f32.mrf.mxu0
      %v5055 = vadd.f32 %v4978, %v5054
      %5056 = vmatmul.f32.gmra.mxu0 %v4990
      %v5057 = vpop.f32.mrf.mxu0
      %v5058 = vadd.f32 %v4978, %v5057
      %5059 = vmatmul.f32.gmra.mxu0 %v4993
      %v5060 = vpop.f32.mrf.mxu0
      %v5061 = vadd.f32 %v4978, %v5060
      %5062 = vmatmul.f32.gmra.mxu0 %v4996
      %v5063 = vpop.f32.mrf.mxu0
      %v5064 = vadd.f32 %v4978, %v5063
      %5065 = vmatmul.f32.gmra.mxu0 %v4999
      %v5066 = vpop.f32.mrf.mxu0
      %v5067 = vadd.f32 %v4978, %v5066
      %5068 = vmatmul.f32.gmra.mxu0 %v5002
      %v5069 = vpop.f32.mrf.mxu0
      %v5070 = vadd.f32 %v4978, %v5069
      %5071 = vmatmul.f32.gmra.mxu0 %v5005
      %v5072 = vpop.f32.mrf.mxu0
      %v5073 = vadd.f32 %v4978, %v5072
      %5074 = vmatmul.f32.gmra.mxu0 %v5008
      %v5075 = vpop.f32.mrf.mxu0
      %v5076 = vadd.f32 %v4978, %v5075
      %5077 = vmatmul.f32.gmra.mxu0 %v5011
      %v5078 = vpop.f32.mrf.mxu0
      %v5079 = vadd.f32 %v4978, %v5078
      %5080 = vmatmul.f32.gmra.mxu0 %v5014
      %v5081 = vpop.f32.mrf.mxu0
      %v5082 = vadd.f32 %v4978, %v5081
      %5083 = vmatmul.f32.gmra.mxu0 %v5017
      %v5084 = vpop.f32.mrf.mxu0
      %v5085 = vadd.f32 %v4978, %v5084
      %5086 = vmatmul.f32.gmra.mxu0 %v5020
      %v5087 = vpop.f32.mrf.mxu0
      %v5088 = vadd.f32 %v4978, %v5087
      %5089 = vmatmul.f32.gmra.mxu0 %v5023
      %v5090 = vpop.f32.mrf.mxu0
      %v5091 = vadd.f32 %v4978, %v5090
      %5092 = vmatmul.f32.gmra.mxu0 %v5026
      %v5093 = vpop.f32.mrf.mxu0
      %v5094 = vadd.f32 %v4978, %v5093
      %5095 = vdwg.mxu0
      %v5096 = vtanh.pop %v5049
      %v5097 = vtanh.pop %v5052
      %v5098 = vtanh.pop %v5055
      %v5099 = vtanh.pop %v5058
      %v5100 = vtanh.pop %v5061
      %v5101 = vtanh.pop %v5064
      %v5102 = vtanh.pop %v5067
      %v5103 = vtanh.pop %v5070
      %v5104 = vtanh.pop %v5073
      %v5105 = vtanh.pop %v5076
      %v5106 = vtanh.pop %v5079
      %v5107 = vtanh.pop %v5082
      %v5108 = vtanh.pop %v5085
      %v5109 = vtanh.pop %v5088
      %v5110 = vtanh.pop %v5091
      %v5111 = vtanh.pop %v5094
      %v5112 = vld [vmem:[%s9] sm:$0xff]
      %v5113 = vld [vmem:[%s9 + $0x8] sm:$0xff]
      %v5114 = vld [vmem:[%s9 + $0x10] sm:$0xf]
      %v5115 = vld [vmem:[%s10] sm:$0x1]
      %v5117 = vperm.slane %v5115, 0
      %v5120 = vsel %vm4839, %v5096, 0
      %v5123 = vsel %vm4839, %v5097, 0
      %v5126 = vsel %vm4839, %v5098, 0
      %v5129 = vsel %vm4839, %v5099, 0
      %v5132 = vsel %vm4839, %v5100, 0
      %v5135 = vsel %vm4839, %v5101, 0
      %v5138 = vsel %vm4839, %v5102, 0
      %v5141 = vsel %vm4839, %v5103, 0
      %v5144 = vsel %vm4839, %v5104, 0
      %v5147 = vsel %vm4839, %v5105, 0
      %v5150 = vsel %vm4839, %v5106, 0
      %v5153 = vsel %vm4839, %v5107, 0
      %v5156 = vsel %vm4839, %v5108, 0
      %v5159 = vsel %vm4839, %v5109, 0
      %v5162 = vsel %vm4839, %v5110, 0
      %v5165 = vsel %vm4839, %v5111, 0
      %v5168 = vsel %vm4888, %v5114, 0
      %5170 = vmatpush.msra.mxu0 0.0
      %5171 = vmatpush.msra.mxu0 0.0
      %5172 = vmatpush.msra.mxu0 0.0
      %5173 = vmatpush.msra.mxu0 0.0
      %5174 = vmatpush.msra.mxu0 0.0
      %5175 = vmatpush.msra.mxu0 0.0
      %5176 = vmatpush.msra.mxu0 0.0
      %5177 = vmatpush.msra.mxu0 0.0
      %5178 = vmatpush.msra.mxu0 0.0
      %5179 = vmatpush.msra.mxu0 0.0
      %5180 = vmatpush.msra.mxu0 0.0
      %5181 = vmatpush.msra.mxu0 0.0
      %5182 = vmatpush.msra.mxu0 0.0
      %5183 = vmatpush.msra.mxu0 %v5168
      %5184 = vmatpush.msra.mxu0 %v5113
      %5185 = vmatpush.msra.mxu0 %v5112
      %5186 = vmatmul.f32.gmra.mxu0 %v5120
      %v5187 = vpop.f32.mrf.mxu0
      %v5188 = vadd.f32 %v5117, %v5187
      %5189 = vmatmul.f32.gmra.mxu0 %v5123
      %v5190 = vpop.f32.mrf.mxu0
      %v5191 = vadd.f32 %v5117, %v5190
      %5192 = vmatmul.f32.gmra.mxu0 %v5126
      %v5193 = vpop.f32.mrf.mxu0
      %v5194 = vadd.f32 %v5117, %v5193
      %5195 = vmatmul.f32.gmra.mxu0 %v5129
      %v5196 = vpop.f32.mrf.mxu0
      %v5197 = vadd.f32 %v5117, %v5196
      %5198 = vmatmul.f32.gmra.mxu0 %v5132
      %v5199 = vpop.f32.mrf.mxu0
      %v5200 = vadd.f32 %v5117, %v5199
      %5201 = vmatmul.f32.gmra.mxu0 %v5135
      %v5202 = vpop.f32.mrf.mxu0
      %v5203 = vadd.f32 %v5117, %v5202
      %5204 = vmatmul.f32.gmra.mxu0 %v5138
      %v5205 = vpop.f32.mrf.mxu0
      %v5206 = vadd.f32 %v5117, %v5205
      %5207 = vmatmul.f32.gmra.mxu0 %v5141
      %v5208 = vpop.f32.mrf.mxu0
      %v5209 = vadd.f32 %v5117, %v5208
      %5210 = vmatmul.f32.gmra.mxu0 %v5144
      %v5211 = vpop.f32.mrf.mxu0
      %v5212 = vadd.f32 %v5117, %v5211
      %5213 = vmatmul.f32.gmra.mxu0 %v5147
      %v5214 = vpop.f32.mrf.mxu0
      %v5215 = vadd.f32 %v5117, %v5214
      %5216 = vmatmul.f32.gmra.mxu0 %v5150
      %v5217 = vpop.f32.mrf.mxu0
      %v5218 = vadd.f32 %v5117, %v5217
      %5219 = vmatmul.f32.gmra.mxu0 %v5153
      %v5220 = vpop.f32.mrf.mxu0
      %v5221 = vadd.f32 %v5117, %v5220
      %5222 = vmatmul.f32.gmra.mxu0 %v5156
      %v5223 = vpop.f32.mrf.mxu0
      %v5224 = vadd.f32 %v5117, %v5223
      %5225 = vmatmul.f32.gmra.mxu0 %v5159
      %v5226 = vpop.f32.mrf.mxu0
      %v5227 = vadd.f32 %v5117, %v5226
      %5228 = vmatmul.f32.gmra.mxu0 %v5162
      %v5229 = vpop.f32.mrf.mxu0
      %v5230 = vadd.f32 %v5117, %v5229
      %5231 = vmatmul.f32.gmra.mxu0 %v5165
      %v5232 = vpop.f32.mrf.mxu0
      %v5233 = vadd.f32 %v5117, %v5232
      %5234 = vdwg.mxu0
      %v5235 = vtanh.pop %v5188
      %v5236 = vtanh.pop %v5191
      %v5237 = vtanh.pop %v5194
      %v5238 = vtanh.pop %v5197
      %v5239 = vtanh.pop %v5200
      %v5240 = vtanh.pop %v5203
      %v5241 = vtanh.pop %v5206
      %v5242 = vtanh.pop %v5209
      %v5243 = vtanh.pop %v5212
      %v5244 = vtanh.pop %v5215
      %v5245 = vtanh.pop %v5218
      %v5246 = vtanh.pop %v5221
      %v5247 = vtanh.pop %v5224
      %v5248 = vtanh.pop %v5227
      %v5249 = vtanh.pop %v5230
      %v5250 = vtanh.pop %v5233
      %v5251 = vld [vmem:[%s11] sm:$0xff]
      %v5252 = vld [vmem:[%s11 + $0x8] sm:$0xff]
      %v5253 = vld [vmem:[%s11 + $0x10] sm:$0xf]
      %v5254 = vld [vmem:[%s12] sm:$0x1]
      %v5256 = vperm.slane %v5254, 0
      %v5259 = vsel %vm4839, %v5235, 0
      %v5262 = vsel %vm4839, %v5236, 0
      %v5265 = vsel %vm4839, %v5237, 0
      %v5268 = vsel %vm4839, %v5238, 0
      %v5271 = vsel %vm4839, %v5239, 0
      %v5274 = vsel %vm4839, %v5240, 0
      %v5277 = vsel %vm4839, %v5241, 0
      %v5280 = vsel %vm4839, %v5242, 0
      %v5283 = vsel %vm4839, %v5243, 0
      %v5286 = vsel %vm4839, %v5244, 0
      %v5289 = vsel %vm4839, %v5245, 0
      %v5292 = vsel %vm4839, %v5246, 0
      %v5295 = vsel %vm4839, %v5247, 0
      %v5298 = vsel %vm4839, %v5248, 0
      %v5301 = vsel %vm4839, %v5249, 0
      %v5304 = vsel %vm4839, %v5250, 0
      %v5307 = vsel %vm4888, %v5253, 0
      %5309 = vmatpush.msra.mxu0 0.0
      %5310 = vmatpush.msra.mxu0 0.0
      %5311 = vmatpush.msra.mxu0 0.0
      %5312 = vmatpush.msra.mxu0 0.0
      %5313 = vmatpush.msra.mxu0 0.0
      %5314 = vmatpush.msra.mxu0 0.0
      %5315 = vmatpush.msra.mxu0 0.0
      %5316 = vmatpush.msra.mxu0 0.0
      %5317 = vmatpush.msra.mxu0 0.0
      %5318 = vmatpush.msra.mxu0 0.0
      %5319 = vmatpush.msra.mxu0 0.0
      %5320 = vmatpush.msra.mxu0 0.0
      %5321 = vmatpush.msra.mxu0 0.0
      %5322 = vmatpush.msra.mxu0 %v5307
      %5323 = vmatpush.msra.mxu0 %v5252
      %5324 = vmatpush.msra.mxu0 %v5251
      %5325 = vmatmul.f32.gmra.mxu0 %v5259
      %v5326 = vpop.f32.mrf.mxu0
      %v5327 = vadd.f32 %v5256, %v5326
      %5328 = vmatmul.f32.gmra.mxu0 %v5262
      %v5329 = vpop.f32.mrf.mxu0
      %v5330 = vadd.f32 %v5256, %v5329
      %5331 = vmatmul.f32.gmra.mxu0 %v5265
      %v5332 = vpop.f32.mrf.mxu0
      %v5333 = vadd.f32 %v5256, %v5332
      %5334 = vmatmul.f32.gmra.mxu0 %v5268
      %v5335 = vpop.f32.mrf.mxu0
      %v5336 = vadd.f32 %v5256, %v5335
      %5337 = vmatmul.f32.gmra.mxu0 %v5271
      %v5338 = vpop.f32.mrf.mxu0
      %v5339 = vadd.f32 %v5256, %v5338
      %5340 = vmatmul.f32.gmra.mxu0 %v5274
      %v5341 = vpop.f32.mrf.mxu0
      %v5342 = vadd.f32 %v5256, %v5341
      %5343 = vmatmul.f32.gmra.mxu0 %v5277
      %v5344 = vpop.f32.mrf.mxu0
      %v5345 = vadd.f32 %v5256, %v5344
      %5346 = vmatmul.f32.gmra.mxu0 %v5280
      %v5347 = vpop.f32.mrf.mxu0
      %v5348 = vadd.f32 %v5256, %v5347
      %5349 = vmatmul.f32.gmra.mxu0 %v5283
      %v5350 = vpop.f32.mrf.mxu0
      %v5351 = vadd.f32 %v5256, %v5350
      %5352 = vmatmul.f32.gmra.mxu0 %v5286
      %v5353 = vpop.f32.mrf.mxu0
      %v5354 = vadd.f32 %v5256, %v5353
      %5355 = vmatmul.f32.gmra.mxu0 %v5289
      %v5356 = vpop.f32.mrf.mxu0
      %v5357 = vadd.f32 %v5256, %v5356
      %5358 = vmatmul.f32.gmra.mxu0 %v5292
      %v5359 = vpop.f32.mrf.mxu0
      %v5360 = vadd.f32 %v5256, %v5359
      %5361 = vmatmul.f32.gmra.mxu0 %v5295
      %v5362 = vpop.f32.mrf.mxu0
      %v5363 = vadd.f32 %v5256, %v5362
      %5364 = vmatmul.f32.gmra.mxu0 %v5298
      %v5365 = vpop.f32.mrf.mxu0
      %v5366 = vadd.f32 %v5256, %v5365
      %5367 = vmatmul.f32.gmra.mxu0 %v5301
      %v5368 = vpop.f32.mrf.mxu0
      %v5369 = vadd.f32 %v5256, %v5368
      %5370 = vmatmul.f32.gmra.mxu0 %v5304
      %v5371 = vpop.f32.mrf.mxu0
      %v5372 = vadd.f32 %v5256, %v5371
      %5373 = vdwg.mxu0
      %v5374 = vtanh.pop %v5327
      %v5375 = vtanh.pop %v5330
      %v5376 = vtanh.pop %v5333
      %v5377 = vtanh.pop %v5336
      %v5378 = vtanh.pop %v5339
      %v5379 = vtanh.pop %v5342
      %v5380 = vtanh.pop %v5345
      %v5381 = vtanh.pop %v5348
      %v5382 = vtanh.pop %v5351
      %v5383 = vtanh.pop %v5354
      %v5384 = vtanh.pop %v5357
      %v5385 = vtanh.pop %v5360
      %v5386 = vtanh.pop %v5363
      %v5387 = vtanh.pop %v5366
      %v5388 = vtanh.pop %v5369
      %v5389 = vtanh.pop %v5372
      %v5390 = vld [vmem:[%s13] sm:$0xff]
      %v5391 = vld [vmem:[%s13 + $0x8] sm:$0xff]
      %v5392 = vld [vmem:[%s13 + $0x10] sm:$0xf]
      %v5393 = vld [vmem:[%s14] sm:$0x1]
      %v5395 = vperm.slane %v5393, 0
      %v5398 = vsel %vm4839, %v5374, 0
      %v5401 = vsel %vm4839, %v5375, 0
      %v5404 = vsel %vm4839, %v5376, 0
      %v5407 = vsel %vm4839, %v5377, 0
      %v5410 = vsel %vm4839, %v5378, 0
      %v5413 = vsel %vm4839, %v5379, 0
      %v5416 = vsel %vm4839, %v5380, 0
      %v5419 = vsel %vm4839, %v5381, 0
      %v5422 = vsel %vm4839, %v5382, 0
      %v5425 = vsel %vm4839, %v5383, 0
      %v5428 = vsel %vm4839, %v5384, 0
      %v5431 = vsel %vm4839, %v5385, 0
      %v5434 = vsel %vm4839, %v5386, 0
      %v5437 = vsel %vm4839, %v5387, 0
      %v5440 = vsel %vm4839, %v5388, 0
      %v5443 = vsel %vm4839, %v5389, 0
      %v5446 = vsel %vm4888, %v5392, 0
      %5448 = vmatpush.msra.mxu0 0.0
      %5449 = vmatpush.msra.mxu0 0.0
      %5450 = vmatpush.msra.mxu0 0.0
      %5451 = vmatpush.msra.mxu0 0.0
      %5452 = vmatpush.msra.mxu0 0.0
      %5453 = vmatpush.msra.mxu0 0.0
      %5454 = vmatpush.msra.mxu0 0.0
      %5455 = vmatpush.msra.mxu0 0.0
      %5456 = vmatpush.msra.mxu0 0.0
      %5457 = vmatpush.msra.mxu0 0.0
      %5458 = vmatpush.msra.mxu0 0.0
      %5459 = vmatpush.msra.mxu0 0.0
      %5460 = vmatpush.msra.mxu0 0.0
      %5461 = vmatpush.msra.mxu0 %v5446
      %5462 = vmatpush.msra.mxu0 %v5391
      %5463 = vmatpush.msra.mxu0 %v5390
      %5464 = vmatmul.f32.gmra.mxu0 %v5398
      %v5465 = vpop.f32.mrf.mxu0
      %v5466 = vadd.f32 %v5395, %v5465
      %5467 = vmatmul.f32.gmra.mxu0 %v5401
      %v5468 = vpop.f32.mrf.mxu0
      %v5469 = vadd.f32 %v5395, %v5468
      %5470 = vmatmul.f32.gmra.mxu0 %v5404
      %v5471 = vpop.f32.mrf.mxu0
      %v5472 = vadd.f32 %v5395, %v5471
      %5473 = vmatmul.f32.gmra.mxu0 %v5407
      %v5474 = vpop.f32.mrf.mxu0
      %v5475 = vadd.f32 %v5395, %v5474
      %5476 = vmatmul.f32.gmra.mxu0 %v5410
      %v5477 = vpop.f32.mrf.mxu0
      %v5478 = vadd.f32 %v5395, %v5477
      %5479 = vmatmul.f32.gmra.mxu0 %v5413
      %v5480 = vpop.f32.mrf.mxu0
      %v5481 = vadd.f32 %v5395, %v5480
      %5482 = vmatmul.f32.gmra.mxu0 %v5416
      %v5483 = vpop.f32.mrf.mxu0
      %v5484 = vadd.f32 %v5395, %v5483
      %5485 = vmatmul.f32.gmra.mxu0 %v5419
      %v5486 = vpop.f32.mrf.mxu0
      %v5487 = vadd.f32 %v5395, %v5486
      %5488 = vmatmul.f32.gmra.mxu0 %v5422
      %v5489 = vpop.f32.mrf.mxu0
      %v5490 = vadd.f32 %v5395, %v5489
      %5491 = vmatmul.f32.gmra.mxu0 %v5425
      %v5492 = vpop.f32.mrf.mxu0
      %v5493 = vadd.f32 %v5395, %v5492
      %5494 = vmatmul.f32.gmra.mxu0 %v5428
      %v5495 = vpop.f32.mrf.mxu0
      %v5496 = vadd.f32 %v5395, %v5495
      %5497 = vmatmul.f32.gmra.mxu0 %v5431
      %v5498 = vpop.f32.mrf.mxu0
      %v5499 = vadd.f32 %v5395, %v5498
      %5500 = vmatmul.f32.gmra.mxu0 %v5434
      %v5501 = vpop.f32.mrf.mxu0
      %v5502 = vadd.f32 %v5395, %v5501
      %5503 = vmatmul.f32.gmra.mxu0 %v5437
      %v5504 = vpop.f32.mrf.mxu0
      %v5505 = vadd.f32 %v5395, %v5504
      %5506 = vmatmul.f32.gmra.mxu0 %v5440
      %v5507 = vpop.f32.mrf.mxu0
      %v5508 = vadd.f32 %v5395, %v5507
      %5509 = vmatmul.f32.gmra.mxu0 %v5443
      %v5510 = vpop.f32.mrf.mxu0
      %v5511 = vadd.f32 %v5395, %v5510
      %5512 = vdwg.mxu0
      %v5513 = vtanh.pop %v5466
      %v5514 = vtanh.pop %v5469
      %v5515 = vtanh.pop %v5472
      %v5516 = vtanh.pop %v5475
      %v5517 = vtanh.pop %v5478
      %v5518 = vtanh.pop %v5481
      %v5519 = vtanh.pop %v5484
      %v5520 = vtanh.pop %v5487
      %v5521 = vtanh.pop %v5490
      %v5522 = vtanh.pop %v5493
      %v5523 = vtanh.pop %v5496
      %v5524 = vtanh.pop %v5499
      %v5525 = vtanh.pop %v5502
      %v5526 = vtanh.pop %v5505
      %v5527 = vtanh.pop %v5508
      %v5528 = vtanh.pop %v5511
      %v5529 = vld [vmem:[%s15] sm:$0xff]
      %v5530 = vld [vmem:[%s15 + $0x8] sm:$0xff]
      %v5531 = vld [vmem:[%s15 + $0x10] sm:$0xf]
      %v5532 = vld [vmem:[%s16] sm:$0x1]
      %v5534 = vperm.slane %v5532, 0
      %v5537 = vsel %vm4839, %v5513, 0
      %v5540 = vsel %vm4839, %v5514, 0
      %v5543 = vsel %vm4839, %v5515, 0
      %v5546 = vsel %vm4839, %v5516, 0
      %v5549 = vsel %vm4839, %v5517, 0
      %v5552 = vsel %vm4839, %v5518, 0
      %v5555 = vsel %vm4839, %v5519, 0
      %v5558 = vsel %vm4839, %v5520, 0
      %v5561 = vsel %vm4839, %v5521, 0
      %v5564 = vsel %vm4839, %v5522, 0
      %v5567 = vsel %vm4839, %v5523, 0
      %v5570 = vsel %vm4839, %v5524, 0
      %v5573 = vsel %vm4839, %v5525, 0
      %v5576 = vsel %vm4839, %v5526, 0
      %v5579 = vsel %vm4839, %v5527, 0
      %v5582 = vsel %vm4839, %v5528, 0
      %v5585 = vsel %vm4888, %v5531, 0
      %5587 = vmatpush.msra.mxu0 0.0
      %5588 = vmatpush.msra.mxu0 0.0
      %5589 = vmatpush.msra.mxu0 0.0
      %5590 = vmatpush.msra.mxu0 0.0
      %5591 = vmatpush.msra.mxu0 0.0
      %5592 = vmatpush.msra.mxu0 0.0
      %5593 = vmatpush.msra.mxu0 0.0
      %5594 = vmatpush.msra.mxu0 0.0
      %5595 = vmatpush.msra.mxu0 0.0
      %5596 = vmatpush.msra.mxu0 0.0
      %5597 = vmatpush.msra.mxu0 0.0
      %5598 = vmatpush.msra.mxu0 0.0
      %5599 = vmatpush.msra.mxu0 0.0
      %5600 = vmatpush.msra.mxu0 %v5585
      %5601 = vmatpush.msra.mxu0 %v5530
      %5602 = vmatpush.msra.mxu0 %v5529
      %5603 = vmatmul.f32.gmra.mxu0 %v5537
      %v5604 = vpop.f32.mrf.mxu0
      %v5605 = vadd.f32 %v5534, %v5604
      %5606 = vmatmul.f32.gmra.mxu0 %v5540
      %v5607 = vpop.f32.mrf.mxu0
      %v5608 = vadd.f32 %v5534, %v5607
      %5609 = vmatmul.f32.gmra.mxu0 %v5543
      %v5610 = vpop.f32.mrf.mxu0
      %v5611 = vadd.f32 %v5534, %v5610
      %5612 = vmatmul.f32.gmra.mxu0 %v5546
      %v5613 = vpop.f32.mrf.mxu0
      %v5614 = vadd.f32 %v5534, %v5613
      %5615 = vmatmul.f32.gmra.mxu0 %v5549
      %v5616 = vpop.f32.mrf.mxu0
      %v5617 = vadd.f32 %v5534, %v5616
      %5618 = vmatmul.f32.gmra.mxu0 %v5552
      %v5619 = vpop.f32.mrf.mxu0
      %v5620 = vadd.f32 %v5534, %v5619
      %5621 = vmatmul.f32.gmra.mxu0 %v5555
      %v5622 = vpop.f32.mrf.mxu0
      %v5623 = vadd.f32 %v5534, %v5622
      %5624 = vmatmul.f32.gmra.mxu0 %v5558
      %v5625 = vpop.f32.mrf.mxu0
      %v5626 = vadd.f32 %v5534, %v5625
      %5627 = vmatmul.f32.gmra.mxu0 %v5561
      %v5628 = vpop.f32.mrf.mxu0
      %v5629 = vadd.f32 %v5534, %v5628
      %5630 = vmatmul.f32.gmra.mxu0 %v5564
      %v5631 = vpop.f32.mrf.mxu0
      %v5632 = vadd.f32 %v5534, %v5631
      %5633 = vmatmul.f32.gmra.mxu0 %v5567
      %v5634 = vpop.f32.mrf.mxu0
      %v5635 = vadd.f32 %v5534, %v5634
      %5636 = vmatmul.f32.gmra.mxu0 %v5570
      %v5637 = vpop.f32.mrf.mxu0
      %v5638 = vadd.f32 %v5534, %v5637
      %5639 = vmatmul.f32.gmra.mxu0 %v5573
      %v5640 = vpop.f32.mrf.mxu0
      %v5641 = vadd.f32 %v5534, %v5640
      %5642 = vmatmul.f32.gmra.mxu0 %v5576
      %v5643 = vpop.f32.mrf.mxu0
      %v5644 = vadd.f32 %v5534, %v5643
      %5645 = vmatmul.f32.gmra.mxu0 %v5579
      %v5646 = vpop.f32.mrf.mxu0
      %v5647 = vadd.f32 %v5534, %v5646
      %5648 = vmatmul.f32.gmra.mxu0 %v5582
      %v5649 = vpop.f32.mrf.mxu0
      %v5650 = vadd.f32 %v5534, %v5649
      %5651 = vdwg.mxu0
      %v5652 = vtanh.pop %v5605
      %v5653 = vtanh.pop %v5608
      %v5654 = vtanh.pop %v5611
      %v5655 = vtanh.pop %v5614
      %v5656 = vtanh.pop %v5617
      %v5657 = vtanh.pop %v5620
      %v5658 = vtanh.pop %v5623
      %v5659 = vtanh.pop %v5626
      %v5660 = vtanh.pop %v5629
      %v5661 = vtanh.pop %v5632
      %v5662 = vtanh.pop %v5635
      %v5663 = vtanh.pop %v5638
      %v5664 = vtanh.pop %v5641
      %v5665 = vtanh.pop %v5644
      %v5666 = vtanh.pop %v5647
      %v5667 = vtanh.pop %v5650
      %v5668 = vld [vmem:[%s17] sm:$0xff]
      %v5669 = vld [vmem:[%s17 + $0x8] sm:$0xff]
      %v5670 = vld [vmem:[%s17 + $0x10] sm:$0xf]
      %v5671 = vld [vmem:[%s18] sm:$0x1]
      %v5673 = vperm.slane %v5671, 0
      %v5676 = vsel %vm4839, %v5652, 0
      %v5679 = vsel %vm4839, %v5653, 0
      %v5682 = vsel %vm4839, %v5654, 0
      %v5685 = vsel %vm4839, %v5655, 0
      %v5688 = vsel %vm4839, %v5656, 0
      %v5691 = vsel %vm4839, %v5657, 0
      %v5694 = vsel %vm4839, %v5658, 0
      %v5697 = vsel %vm4839, %v5659, 0
      %v5700 = vsel %vm4839, %v5660, 0
      %v5703 = vsel %vm4839, %v5661, 0
      %v5706 = vsel %vm4839, %v5662, 0
      %v5709 = vsel %vm4839, %v5663, 0
      %v5712 = vsel %vm4839, %v5664, 0
      %v5715 = vsel %vm4839, %v5665, 0
      %v5718 = vsel %vm4839, %v5666, 0
      %v5721 = vsel %vm4839, %v5667, 0
      %v5724 = vsel %vm4888, %v5670, 0
      %5726 = vmatpush.msra.mxu0 0.0
      %5727 = vmatpush.msra.mxu0 0.0
      %5728 = vmatpush.msra.mxu0 0.0
      %5729 = vmatpush.msra.mxu0 0.0
      %5730 = vmatpush.msra.mxu0 0.0
      %5731 = vmatpush.msra.mxu0 0.0
      %5732 = vmatpush.msra.mxu0 0.0
      %5733 = vmatpush.msra.mxu0 0.0
      %5734 = vmatpush.msra.mxu0 0.0
      %5735 = vmatpush.msra.mxu0 0.0
      %5736 = vmatpush.msra.mxu0 0.0
      %5737 = vmatpush.msra.mxu0 0.0
      %5738 = vmatpush.msra.mxu0 0.0
      %5739 = vmatpush.msra.mxu0 %v5724
      %5740 = vmatpush.msra.mxu0 %v5669
      %5741 = vmatpush.msra.mxu0 %v5668
      %5742 = vmatmul.f32.gmra.mxu0 %v5676
      %v5743 = vpop.f32.mrf.mxu0
      %v5744 = vadd.f32 %v5673, %v5743
      %5745 = vmatmul.f32.gmra.mxu0 %v5679
      %v5746 = vpop.f32.mrf.mxu0
      %v5747 = vadd.f32 %v5673, %v5746
      %5748 = vmatmul.f32.gmra.mxu0 %v5682
      %v5749 = vpop.f32.mrf.mxu0
      %v5750 = vadd.f32 %v5673, %v5749
      %5751 = vmatmul.f32.gmra.mxu0 %v5685
      %v5752 = vpop.f32.mrf.mxu0
      %v5753 = vadd.f32 %v5673, %v5752
      %5754 = vmatmul.f32.gmra.mxu0 %v5688
      %v5755 = vpop.f32.mrf.mxu0
      %v5756 = vadd.f32 %v5673, %v5755
      %5757 = vmatmul.f32.gmra.mxu0 %v5691
      %v5758 = vpop.f32.mrf.mxu0
      %v5759 = vadd.f32 %v5673, %v5758
      %5760 = vmatmul.f32.gmra.mxu0 %v5694
      %v5761 = vpop.f32.mrf.mxu0
      %v5762 = vadd.f32 %v5673, %v5761
      %5763 = vmatmul.f32.gmra.mxu0 %v5697
      %v5764 = vpop.f32.mrf.mxu0
      %v5765 = vadd.f32 %v5673, %v5764
      %5766 = vmatmul.f32.gmra.mxu0 %v5700
      %v5767 = vpop.f32.mrf.mxu0
      %v5768 = vadd.f32 %v5673, %v5767
      %5769 = vmatmul.f32.gmra.mxu0 %v5703
      %v5770 = vpop.f32.mrf.mxu0
      %v5771 = vadd.f32 %v5673, %v5770
      %5772 = vmatmul.f32.gmra.mxu0 %v5706
      %v5773 = vpop.f32.mrf.mxu0
      %v5774 = vadd.f32 %v5673, %v5773
      %5775 = vmatmul.f32.gmra.mxu0 %v5709
      %v5776 = vpop.f32.mrf.mxu0
      %v5777 = vadd.f32 %v5673, %v5776
      %5778 = vmatmul.f32.gmra.mxu0 %v5712
      %v5779 = vpop.f32.mrf.mxu0
      %v5780 = vadd.f32 %v5673, %v5779
      %5781 = vmatmul.f32.gmra.mxu0 %v5715
      %v5782 = vpop.f32.mrf.mxu0
      %v5783 = vadd.f32 %v5673, %v5782
      %5784 = vmatmul.f32.gmra.mxu0 %v5718
      %v5785 = vpop.f32.mrf.mxu0
      %v5786 = vadd.f32 %v5673, %v5785
      %5787 = vmatmul.f32.gmra.mxu0 %v5721
      %v5788 = vpop.f32.mrf.mxu0
      %v5789 = vadd.f32 %v5673, %v5788
      %5790 = vdwg.mxu0
      %v5791 = vtanh.pop %v5744
      %v5792 = vtanh.pop %v5747
      %v5793 = vtanh.pop %v5750
      %v5794 = vtanh.pop %v5753
      %v5795 = vtanh.pop %v5756
      %v5796 = vtanh.pop %v5759
      %v5797 = vtanh.pop %v5762
      %v5798 = vtanh.pop %v5765
      %v5799 = vtanh.pop %v5768
      %v5800 = vtanh.pop %v5771
      %v5801 = vtanh.pop %v5774
      %v5802 = vtanh.pop %v5777
      %v5803 = vtanh.pop %v5780
      %v5804 = vtanh.pop %v5783
      %v5805 = vtanh.pop %v5786
      %v5806 = vtanh.pop %v5789
      %v5807 = vld [vmem:[%s19] sm:$0xff]
      %v5808 = vld [vmem:[%s19 + $0x8] sm:$0xff]
      %v5809 = vld [vmem:[%s19 + $0x10] sm:$0xf]
      %v5810 = vld [vmem:[%s20] sm:$0x1]
      %v5812 = vperm.slane %v5810, 0
      %v5815 = vsel %vm4839, %v5791, 0
      %v5818 = vsel %vm4839, %v5792, 0
      %v5821 = vsel %vm4839, %v5793, 0
      %v5824 = vsel %vm4839, %v5794, 0
      %v5827 = vsel %vm4839, %v5795, 0
      %v5830 = vsel %vm4839, %v5796, 0
      %v5833 = vsel %vm4839, %v5797, 0
      %v5836 = vsel %vm4839, %v5798, 0
      %v5839 = vsel %vm4839, %v5799, 0
      %v5842 = vsel %vm4839, %v5800, 0
      %v5845 = vsel %vm4839, %v5801, 0
      %v5848 = vsel %vm4839, %v5802, 0
      %v5851 = vsel %vm4839, %v5803, 0
      %v5854 = vsel %vm4839, %v5804, 0
      %v5857 = vsel %vm4839, %v5805, 0
      %v5860 = vsel %vm4839, %v5806, 0
      %v5863 = vsel %vm4888, %v5809, 0
      %5865 = vmatpush.msra.mxu0 0.0
      %5866 = vmatpush.msra.mxu0 0.0
      %5867 = vmatpush.msra.mxu0 0.0
      %5868 = vmatpush.msra.mxu0 0.0
      %5869 = vmatpush.msra.mxu0 0.0
      %5870 = vmatpush.msra.mxu0 0.0
      %5871 = vmatpush.msra.mxu0 0.0
      %5872 = vmatpush.msra.mxu0 0.0
      %5873 = vmatpush.msra.mxu0 0.0
      %5874 = vmatpush.msra.mxu0 0.0
      %5875 = vmatpush.msra.mxu0 0.0
      %5876 = vmatpush.msra.mxu0 0.0
      %5877 = vmatpush.msra.mxu0 0.0
      %5878 = vmatpush.msra.mxu0 %v5863
      %5879 = vmatpush.msra.mxu0 %v5808
      %5880 = vmatpush.msra.mxu0 %v5807
      %5881 = vmatmul.f32.gmra.mxu0 %v5815
      %v5882 = vpop.f32.mrf.mxu0
      %v5883 = vadd.f32 %v5812, %v5882
      %5884 = vmatmul.f32.gmra.mxu0 %v5818
      %v5885 = vpop.f32.mrf.mxu0
      %v5886 = vadd.f32 %v5812, %v5885
      %5887 = vmatmul.f32.gmra.mxu0 %v5821
      %v5888 = vpop.f32.mrf.mxu0
      %v5889 = vadd.f32 %v5812, %v5888
      %5890 = vmatmul.f32.gmra.mxu0 %v5824
      %v5891 = vpop.f32.mrf.mxu0
      %v5892 = vadd.f32 %v5812, %v5891
      %5893 = vmatmul.f32.gmra.mxu0 %v5827
      %v5894 = vpop.f32.mrf.mxu0
      %v5895 = vadd.f32 %v5812, %v5894
      %5896 = vmatmul.f32.gmra.mxu0 %v5830
      %v5897 = vpop.f32.mrf.mxu0
      %v5898 = vadd.f32 %v5812, %v5897
      %5899 = vmatmul.f32.gmra.mxu0 %v5833
      %v5900 = vpop.f32.mrf.mxu0
      %v5901 = vadd.f32 %v5812, %v5900
      %5902 = vmatmul.f32.gmra.mxu0 %v5836
      %v5903 = vpop.f32.mrf.mxu0
      %v5904 = vadd.f32 %v5812, %v5903
      %5905 = vmatmul.f32.gmra.mxu0 %v5839
      %v5906 = vpop.f32.mrf.mxu0
      %v5907 = vadd.f32 %v5812, %v5906
      %5908 = vmatmul.f32.gmra.mxu0 %v5842
      %v5909 = vpop.f32.mrf.mxu0
      %v5910 = vadd.f32 %v5812, %v5909
      %5911 = vmatmul.f32.gmra.mxu0 %v5845
      %v5912 = vpop.f32.mrf.mxu0
      %v5913 = vadd.f32 %v5812, %v5912
      %5914 = vmatmul.f32.gmra.mxu0 %v5848
      %v5915 = vpop.f32.mrf.mxu0
      %v5916 = vadd.f32 %v5812, %v5915
      %5917 = vmatmul.f32.gmra.mxu0 %v5851
      %v5918 = vpop.f32.mrf.mxu0
      %v5919 = vadd.f32 %v5812, %v5918
      %5920 = vmatmul.f32.gmra.mxu0 %v5854
      %v5921 = vpop.f32.mrf.mxu0
      %v5922 = vadd.f32 %v5812, %v5921
      %5923 = vmatmul.f32.gmra.mxu0 %v5857
      %v5924 = vpop.f32.mrf.mxu0
      %v5925 = vadd.f32 %v5812, %v5924
      %5926 = vmatmul.f32.gmra.mxu0 %v5860
      %v5927 = vpop.f32.mrf.mxu0
      %v5928 = vadd.f32 %v5812, %v5927
      %5929 = vdwg.mxu0
      %vm5930 = vcmask 15360
      %5931 = vst.msk [vmem:[%s661] sm:$0xff] %vm5930, %v5883
      %5932 = vst.msk [vmem:[%s661 + $0x8] sm:$0xff] %vm5930, %v5886
      %5933 = vst.msk [vmem:[%s661 + $0x10] sm:$0xff] %vm5930, %v5889
      %5934 = vst.msk [vmem:[%s661 + $0x18] sm:$0xff] %vm5930, %v5892
      %5935 = vst.msk [vmem:[%s661 + $0x20] sm:$0xff] %vm5930, %v5895
      %5936 = vst.msk [vmem:[%s661 + $0x28] sm:$0xff] %vm5930, %v5898
      %5937 = vst.msk [vmem:[%s661 + $0x30] sm:$0xff] %vm5930, %v5901
      %5938 = vst.msk [vmem:[%s661 + $0x38] sm:$0xff] %vm5930, %v5904
      %5939 = vst.msk [vmem:[%s661 + $0x40] sm:$0xff] %vm5930, %v5907
      %5940 = vst.msk [vmem:[%s661 + $0x48] sm:$0xff] %vm5930, %v5910
      %5941 = vst.msk [vmem:[%s661 + $0x50] sm:$0xff] %vm5930, %v5913
      %5942 = vst.msk [vmem:[%s661 + $0x58] sm:$0xff] %vm5930, %v5916
      %5943 = vst.msk [vmem:[%s661 + $0x60] sm:$0xff] %vm5930, %v5919
      %5944 = vst.msk [vmem:[%s661 + $0x68] sm:$0xff] %vm5930, %v5922
      %5945 = vst.msk [vmem:[%s661 + $0x70] sm:$0xff] %vm5930, %v5925
      %5946 = vst.msk [vmem:[%s661 + $0x78] sm:$0xff] %vm5930, %v5928
      %s5947 = smul.u32 16, %s32
      %p5948 = scmp.lt.s32.totalorder %s5947, 31
      %s5949 = scalar_select %p5948, %s5947, 31
      %s5950 = smul.addr %s5949, 8
      %s5951 = scalar_lea.vmem %s21, %s5950
      // Predicated region
      $region105: #{tpu_custom_call.1} parent=103 // pred_check
        %p5952 = pneg %p496
      $region106: #{tpu_custom_call.1} parent=103 // pred_check_branch
        %5954 = sbr.rel (%p5952) target = $region108
      $region107: #{tpu_custom_call.1} parent=103 // pred_region
        %s5955 = smul.u32 16, %s32
      $region108: #{tpu_custom_call.1} parent=103 // pred_fallthru
        _
    $region104: #{tpu_custom_call.1} parent=5 // pred_fallthru
      _
    %p5956 = scmp.le.s32.totalorder 2, %s27
    // Predicated region
    $region109: #{tpu_custom_call.1} parent=5 // pred_check
      %p5957 = pneg %p5956
    $region110: #{tpu_custom_call.1} parent=5 // pred_check_branch
      %5959 = sbr.rel (%p5957) target = $region112
    $region111: #{tpu_custom_call.1} parent=5 // pred_region
      %s5960 = ssub.s32 %s27, 2
      // Predicated region
      $region113: #{tpu_custom_call.1} parent=111 // pred_check
        %p5961 = pneg %p502
      $region114: #{tpu_custom_call.1} parent=111 // pred_check_branch
        %5963 = sbr.rel (%p5961) target = $region116
      $region115: #{tpu_custom_call.1} parent=111 // pred_region
        %s5964 = smul.u32 16, %s33
        %p5965 = scmp.lt.s32.totalorder %s5964, 31
        %s5966 = scalar_select %p5965, %s5964, 31
        %s5967 = smul.addr %s5966, 8
        %s5968 = scalar_lea.vmem %s21, %s5967
      $region116: #{tpu_custom_call.1} parent=111 // pred_fallthru
        _
    $region112: #{tpu_custom_call.1} parent=5 // pred_fallthru
      _
  $region6: #{tpu_custom_call.1} parent=0 // loop_footer
    %s31 = sadd.s32 1, %s27
  $region7: #{tpu_custom_call.1} parent=0 // loop_footer_branch
    %26 = sbr.rel target = $region3
  $region8: #{tpu_custom_call.1} parent=0 // loop_exit
    _

</llo_original>
